<compile_context>
chip_gen: v5e
topology: v5e:2x2
jax: 0.10.0
libtpu: 0.0.40
codegen_flags: <defaults>
</compile_context>

<pallas_src>
import functools

import jax
import jax.numpy as jnp
import numpy as np
from jax.experimental import pallas as pl
from jax.experimental.pallas import tpu as pltpu


# ----------------------------------------------------------------------------
# Pallas kernel: embedding -> fermi-block stream -> spin orbitals
# ----------------------------------------------------------------------------
def ansatz_fb_kernel(
    r_ref, a_ref, diag_ref, m_su_ref, m_sd_ref, m_pu_ref, m_pd_ref,
    s_w0_ref, s_b0_ref, s_wl_ref, s_bl_ref,
    p_w0_ref, p_b0_ref, p_wl_ref, p_bl_ref,
    v_w_ref, v_b_ref,
    wsu_ref, bsu_ref, wsd_ref, bsd_ref,
    orb_u_ref, orb_d_ref,
    *, n_u, n_d, n_a, n_det, n_fb, tb):
  f32 = jnp.float32
  bf16 = jnp.bfloat16
  n_e = n_u + n_d
  inv_nu = 1.0 / float(n_u)
  inv_nd = 1.0 / float(n_d)

  def mm(x, w):
    # bf16 at the MXU boundary, f32 accumulation.
    return jnp.dot(x.astype(bf16), w.astype(bf16), preferred_element_type=f32)

  r = r_ref[...]                      # (tb, n_e, 3)
  a = a_ref[...]                      # (n_a, 3)
  m_su = m_su_ref[...]                # (tb*n_e, tb*n_e)     0/1 up-spin broadcast-mean mask
  m_sd = m_sd_ref[...]                # (tb*n_e, tb*n_e)
  m_pu = m_pu_ref[...]                # (tb*n_e, tb*n_e*n_e) 0/1 pairwise up-spin pooling mask
  m_pd = m_pd_ref[...]                # (tb*n_e, tb*n_e*n_e)

  # ---- single electron embedding: cat_k [r - a_k, |r - a_k|] -> (tb*n_e, 4*n_a)
  # TODO(synk): no epsilon inside sqrt; fine for the forward pass, a backward
  # pass would need |r - a| > 0 guarding.
  r2 = r.reshape(tb * n_e, 3)
  s_parts = []
  env = jnp.zeros((tb * n_e, 1), f32)                 # sum_k exp(-|r - a_k|)
  for k in range(n_a):
    ra_k = r2 - a[k:k + 1, :]                         # (tb*n_e, 3)
    len_k = jnp.sqrt(jnp.sum(ra_k * ra_k, axis=-1, keepdims=True))
    s_parts += [ra_k, len_k]
    env = env + jnp.exp(-len_k)
  s_v = jnp.concatenate(s_parts, axis=-1)             # (tb*n_e, 4*n_a)

  # ---- pairwise embedding, row index = b*n_e*n_e + i*n_e + j
  rr = (r[:, None, :, :] - r[:, :, None, :]).reshape(tb * n_e * n_e, 3)
  rr_pe = rr + diag_ref[...]                          # +1 on all 3 comps of diagonal pairs
  rr_len = jnp.sqrt(jnp.sum(rr_pe * rr_pe, axis=-1, keepdims=True))
  p_v = jnp.concatenate([rr, rr_len], axis=-1)        # (tb*n_e*n_e, 4)

  # ---- fb-block layer with row-split weights (no feature concatenation):
  #   y = s@W_s + mean_up(s)@W_su + mean_dn(s)@W_sd + mean_up(p)@W_pu + mean_dn(p)@W_pd + b
  # means are computed as spin-mask pooling matmuls (MXU) scaled in f32.
  def s_layer(s, p, w, b):
    f_s = s.shape[-1]
    f_p = p.shape[-1]
    su = mm(m_su, s) * inv_nu                         # broadcasted per-sample up mean
    sd = mm(m_sd, s) * inv_nd
    pu = mm(m_pu, p) * inv_nu                         # per-(sample, j) up-pair mean
    pd = mm(m_pd, p) * inv_nd
    return (mm(s, w[:f_s])
            + mm(su, w[f_s:2 * f_s])
            + mm(sd, w[2 * f_s:3 * f_s])
            + mm(pu, w[3 * f_s:3 * f_s + f_p])
            + mm(pd, w[3 * f_s + f_p:3 * f_s + 2 * f_p])
            + b)

  # ---- stream
  s_v = jnp.tanh(s_layer(s_v, p_v, s_w0_ref[...], s_b0_ref[...]))
  p_v = jnp.tanh(mm(p_v, p_w0_ref[...]) + p_b0_ref[...])
  for l in range(n_fb):
    s_v = jnp.tanh(s_layer(s_v, p_v, s_wl_ref[l], s_bl_ref[l])) + s_v
    p_v = jnp.tanh(mm(p_v, p_wl_ref[l]) + p_bl_ref[l]) + p_v
  s_v = jnp.tanh(s_layer(s_v, p_v, v_w_ref[...], v_b_ref[...]))   # (tb*n_e, n_sv)

  # ---- spin orbitals (flattened over (j, det)); envelope = sum_k exp(-|r - a_k|)
  orb_u = (mm(s_v, wsu_ref[...]) + bsu_ref[...]) * env            # (tb*n_e, n_u*n_det)
  orb_d = (mm(s_v, wsd_ref[...]) + bsd_ref[...]) * env            # (tb*n_e, n_d*n_det)
  orb_u_ref[...] = orb_u.reshape(tb, n_e, n_u * n_det)[:, :n_u, :]
  orb_d_ref[...] = orb_d.reshape(tb, n_e, n_d * n_det)[:, n_u:, :]


# ----------------------------------------------------------------------------
# Wrapper: pallas_call + slogdet / log-psi glue
# ----------------------------------------------------------------------------
def ansatz_fb_forward(r, a, params, *, n_u, n_d, n_det, n_fb, block_b=None):
  n_b, n_e, _ = r.shape
  n_a = a.shape[0]
  assert n_u > 0 and n_d > 0, "empty spin channel is not supported"
  assert n_e == n_u + n_d

  (s_w0, s_b0, s_wl, s_bl, p_w0, p_b0, p_wl, p_bl,
   v_w, v_b, wsu, bsu, wsd, bsd, w_final) = params

  if block_b is None:
    # largest divisor of n_b bounded by a pairwise-stream row cap; prefer an
    # even number of batch tiles so v7x's two TensorCores split the grid.
    cap = max(1, 4096 // (n_e * n_e))
    divs = [d for d in range(1, n_b + 1) if n_b % d == 0 and d <= cap]
    even = [d for d in divs if (n_b // d) % 2 == 0]
    block_b = max(even) if even else max(divs)
  assert n_b % block_b == 0, "n_b must be divisible by the batch tile"
  n_tiles = n_b // block_b

  # ---- host-built constant masks (passed as resident inputs) ----
  # diagonal (+eye) indicator per flattened pair row (b, i, j)
  diag = np.tile(np.eye(n_e, dtype=np.float32).reshape(n_e * n_e, 1),
                 (block_b, 1))                                   # (tb*n_e^2, 1)
  # broadcasted per-sample spin-mean masks for the single-electron stream
  ones_u = np.zeros((n_e, n_e), np.float32); ones_u[:, :n_u] = 1.0
  ones_d = np.zeros((n_e, n_e), np.float32); ones_d[:, n_u:] = 1.0
  m_su = np.kron(np.eye(block_b, dtype=np.float32), ones_u)      # (tb*n_e, tb*n_e)
  m_sd = np.kron(np.eye(block_b, dtype=np.float32), ones_d)
  # pairwise pooling masks: row (b*n_e + j) sums rows (b*n_e^2 + i*n_e + j)
  pu1 = np.zeros((n_e, n_e * n_e), np.float32)
  pd1 = np.zeros((n_e, n_e * n_e), np.float32)
  for j in range(n_e):
    for i in range(n_u):
      pu1[j, i * n_e + j] = 1.0
    for i in range(n_u, n_e):
      pd1[j, i * n_e + j] = 1.0
  m_pu = np.kron(np.eye(block_b, dtype=np.float32), pu1)         # (tb*n_e, tb*n_e^2)
  m_pd = np.kron(np.eye(block_b, dtype=np.float32), pd1)

  kernel = functools.partial(
      ansatz_fb_kernel, n_u=n_u, n_d=n_d, n_a=n_a, n_det=n_det, n_fb=n_fb,
      tb=block_b)

  def rep(arr):
    nd = arr.ndim
    return pl.BlockSpec(arr.shape, lambda b, _nd=nd: (0,) * _nd)

  in_specs = [
      pl.BlockSpec((block_b, n_e, 3), lambda b: (b, 0, 0)),
      rep(a), rep(diag), rep(m_su), rep(m_sd), rep(m_pu), rep(m_pd),
      rep(s_w0), rep(s_b0), rep(s_wl), rep(s_bl),
      rep(p_w0), rep(p_b0), rep(p_wl), rep(p_bl),
      rep(v_w), rep(v_b),
      rep(wsu), rep(bsu), rep(wsd), rep(bsd),
  ]
  out_specs = [
      pl.BlockSpec((block_b, n_u, n_u * n_det), lambda b: (b, 0, 0)),
      pl.BlockSpec((block_b, n_d, n_d * n_det), lambda b: (b, 0, 0)),
  ]
  out_shape = [
      jax.ShapeDtypeStruct((n_b, n_u, n_u * n_det), jnp.float32),
      jax.ShapeDtypeStruct((n_b, n_d, n_d * n_det), jnp.float32),
  ]

  orb_u_flat, orb_d_flat = pl.pallas_call(
      kernel,
      out_shape=out_shape,
      grid_spec=pltpu.PrefetchScalarGridSpec(
          num_scalar_prefetch=0,
          grid=(n_tiles,),
          in_specs=in_specs,
          out_specs=out_specs),
      compiler_params=pltpu.CompilerParams(
          dimension_semantics=("parallel",),
          vmem_limit_bytes=32 * 1024 * 1024),
  )(r, a, jnp.asarray(diag), jnp.asarray(m_su), jnp.asarray(m_sd),
    jnp.asarray(m_pu), jnp.asarray(m_pd),
    s_w0, s_b0, s_wl, s_bl, p_w0, p_b0, p_wl, p_bl,
    v_w, v_b, wsu, bsu, wsd, bsd)

  # torch layout: orb[b, det, j, i]  (transpose(-1, 1) of (b, i, j, det))
  orb_u = jnp.transpose(orb_u_flat.reshape(n_b, n_u, n_u, n_det), (0, 3, 2, 1))
  orb_d = jnp.transpose(orb_d_flat.reshape(n_b, n_d, n_d, n_det), (0, 3, 2, 1))

  # TODO(synk): slogdet (LU factorization) has no clean Pallas TPU equivalent;
  # done in plain JAX together with the tiny final reduction.
  sign_u, logdet_u = jnp.linalg.slogdet(orb_u)
  sign_d, logdet_d = jnp.linalg.slogdet(orb_d)
  sign = sign_u * sign_d
  logdet = logdet_u + logdet_d
  maxlogdet = jnp.max(logdet, axis=-1, keepdims=True)
  sub_det = sign * jnp.exp(logdet - maxlogdet)
  psi_ish = sub_det @ w_final                                    # (n_b, n_final_out)
  log_psi = jnp.log(jnp.abs(jnp.squeeze(psi_ish))) + jnp.squeeze(maxlogdet)
  return log_psi, orb_u, orb_d


# ----------------------------------------------------------------------------
# Pure-JAX reference (mirrors the torch code 1:1) for correctness checking
# ----------------------------------------------------------------------------
def reference_forward(r, a, params, *, n_u, n_d, n_det, n_fb):
  (s_w0, s_b0, s_wl, s_bl, p_w0, p_b0, p_wl, p_bl,
   v_w, v_b, wsu, bsu, wsd, bsd, w_final) = params
  n_b, n_e, _ = r.shape

  ra = r[:, :, None, :] - a[None, None, :, :]
  ra_len = jnp.linalg.norm(ra, axis=-1, keepdims=True)
  eye = jnp.eye(n_e, dtype=r.dtype)[None, :, :, None]
  rr = r[:, None, :, :] - r[:, :, None, :]
  rr_len = jnp.linalg.norm(rr + eye, axis=-1, keepdims=True)
  s_v = jnp.concatenate([ra, ra_len], -1).reshape(n_b, n_e, -1)
  p_v = jnp.concatenate([rr, rr_len], -1)

  def fb(s, pv):
    su = jnp.tile(jnp.mean(s[:, :n_u], 1, keepdims=True), (1, n_e, 1))
    sd = jnp.tile(jnp.mean(s[:, n_u:], 1, keepdims=True), (1, n_e, 1))
    pu = jnp.mean(pv[:, :n_u], 1)
    pd = jnp.mean(pv[:, n_u:], 1)
    return jnp.concatenate([s, su, sd, pu, pd], -1)

  sb = fb(s_v, p_v)
  s = jnp.tanh(sb @ s_w0 + s_b0)
  pp = jnp.tanh(p_v @ p_w0 + p_b0)
  sb = fb(s, pp)
  for l in range(n_fb):
    s = jnp.tanh(sb @ s_wl[l] + s_bl[l]) + s
    pp = jnp.tanh(pp @ p_wl[l] + p_bl[l]) + pp
    sb = fb(s, pp)
  s = jnp.tanh(sb @ v_w + v_b)

  def orb_from_stream(s_spin, ra_spin, w, b, n_spin):
    s_w = (s_spin @ w + b).reshape(n_b, n_spin, n_spin, n_det)
    ex = jnp.exp(-jnp.linalg.norm(ra_spin, axis=-1))
    sum_a_exp = jnp.sum(ex, axis=-1, keepdims=True)[..., None]
    orb = s_w * sum_a_exp
    return jnp.transpose(orb, (0, 3, 2, 1))

  orb_u = orb_from_stream(s[:, :n_u], ra[:, :n_u], wsu, bsu, n_u)
  orb_d = orb_from_stream(s[:, n_u:], ra[:, n_u:], wsd, bsd, n_d)

  sign_u, logdet_u = jnp.linalg.slogdet(orb_u)
  sign_d, logdet_d = jnp.linalg.slogdet(orb_d)
  sign = sign_u * sign_d
  logdet = logdet_u + logdet_d
  maxlogdet = jnp.max(logdet, axis=-1, keepdims=True)
  sub_det = sign * jnp.exp(logdet - maxlogdet)
  psi_ish = sub_det @ w_final
  log_psi = jnp.log(jnp.abs(jnp.squeeze(psi_ish))) + jnp.squeeze(maxlogdet)
  return log_psi, orb_u, orb_d


# ----------------------------------------------------------------------------
# Deterministic parameter construction (synthetic, (in, out) layout)
# ----------------------------------------------------------------------------
def make_params(key, *, n_a, n_u, n_d, n_det, n_fb, n_pv, n_sv, n_final_out):
  n_p_in = 4
  n_s_in = 4 * n_a
  d_s0 = 3 * n_s_in + 2 * n_p_in
  n_sv_out = 3 * n_sv + 2 * n_pv

  shapes = dict(
      s_w0=(d_s0, n_sv), s_b0=(1, n_sv),
      s_wl=(n_fb, n_sv_out, n_sv), s_bl=(n_fb, 1, n_sv),
      p_w0=(n_p_in, n_pv), p_b0=(1, n_pv),
      p_wl=(n_fb, n_pv, n_pv), p_bl=(n_fb, 1, n_pv),
      v_w=(n_sv_out, n_sv), v_b=(1, n_sv),
      wsu=(n_sv, n_u * n_det), bsu=(1, n_u * n_det),
      wsd=(n_sv, n_d * n_det), bsd=(1, n_d * n_det),
  )
  keys = jax.random.split(key, len(shapes))
  params = {name: (0.1 * jax.random.normal(k, shp, jnp.float32))
            for (name, shp), k in zip(shapes.items(), keys)}
  w_final = jnp.full((n_det, n_final_out), 1.0 / n_det, jnp.float32)
  return (params["s_w0"], params["s_b0"], params["s_wl"], params["s_bl"],
          params["p_w0"], params["p_b0"], params["p_wl"], params["p_bl"],
          params["v_w"], params["v_b"],
          params["wsu"], params["bsu"], params["wsd"], params["bsd"],
          w_final)


if __name__ == "__main__":
  # small, forward-consistent shapes
  n_b, n_u, n_d = 8, 4, 4
  n_e = n_u + n_d
  n_a = 2
  n_det, n_fb, n_pv, n_sv, n_final_out = 4, 2, 8, 16, 1
  block_b = 4          # 4 samples / grid step -> 2 grid steps (even, v7x-friendly)

  key = jax.random.PRNGKey(0)
  k_r, k_a, k_p = jax.random.split(key, 3)
  r = jax.random.normal(k_r, (n_b, n_e, 3), jnp.float32)
  a = jax.random.normal(k_a, (n_a, 3), jnp.float32)
  params = make_params(k_p, n_a=n_a, n_u=n_u, n_d=n_d, n_det=n_det,
                       n_fb=n_fb, n_pv=n_pv, n_sv=n_sv,
                       n_final_out=n_final_out)

  fwd = jax.jit(functools.partial(
      ansatz_fb_forward, n_u=n_u, n_d=n_d, n_det=n_det, n_fb=n_fb,
      block_b=block_b))
  log_psi, orb_u, orb_d = jax.block_until_ready(fwd(r, a, params))

  # f32 reference (scoped 'highest' precision, no global config mutation)
  with jax.default_matmul_precision("highest"):
    log_psi_ref, orb_u_ref, orb_d_ref = jax.block_until_ready(
        reference_forward(r, a, params, n_u=n_u, n_d=n_d, n_det=n_det,
                          n_fb=n_fb))

  # kernel runs its matmuls in bf16 (f32 accumulation) -> compare with bf16-level tolerance
  np.testing.assert_allclose(np.asarray(orb_u), np.asarray(orb_u_ref),
                             rtol=5e-2, atol=5e-2)
  np.testing.assert_allclose(np.asarray(orb_d), np.asarray(orb_d_ref),
                             rtol=5e-2, atol=5e-2)
  assert np.all(np.isfinite(np.asarray(log_psi)))
  print("KERNEL_OK")
</pallas_src>

<mosaic_0001>
module attributes {stable_mosaic.version = 11 : i64} {
  func.func @ansatz_fb_kernel(%arg0: i32, %arg1: memref<4x8x3xf32, #tpu.memory_space<vmem>>, %arg2: memref<2x3xf32, #tpu.memory_space<vmem>>, %arg3: memref<256x1xf32, #tpu.memory_space<vmem>>, %arg4: memref<32x32xf32, #tpu.memory_space<vmem>>, %arg5: memref<32x32xf32, #tpu.memory_space<vmem>>, %arg6: memref<32x256xf32, #tpu.memory_space<vmem>>, %arg7: memref<32x256xf32, #tpu.memory_space<vmem>>, %arg8: memref<32x16xf32, #tpu.memory_space<vmem>>, %arg9: memref<1x16xf32, #tpu.memory_space<vmem>>, %arg10: memref<2x64x16xf32, #tpu.memory_space<vmem>>, %arg11: memref<2x1x16xf32, #tpu.memory_space<vmem>>, %arg12: memref<4x8xf32, #tpu.memory_space<vmem>>, %arg13: memref<1x8xf32, #tpu.memory_space<vmem>>, %arg14: memref<2x8x8xf32, #tpu.memory_space<vmem>>, %arg15: memref<2x1x8xf32, #tpu.memory_space<vmem>>, %arg16: memref<64x16xf32, #tpu.memory_space<vmem>>, %arg17: memref<1x16xf32, #tpu.memory_space<vmem>>, %arg18: memref<16x16xf32, #tpu.memory_space<vmem>>, %arg19: memref<1x16xf32, #tpu.memory_space<vmem>>, %arg20: memref<16x16xf32, #tpu.memory_space<vmem>>, %arg21: memref<1x16xf32, #tpu.memory_space<vmem>>, %arg22: memref<4x4x16xf32, #tpu.memory_space<vmem>>, %arg23: memref<4x4x16xf32, #tpu.memory_space<vmem>>) attributes {dimension_semantics = [#tpu.dimension_semantics<parallel>], iteration_bounds = array<i64: 2>, scalar_prefetch = 0 : i64, scratch_operands = 0 : i64, tpu.core_type = #tpu.core_type<tc>, window_params = [{transform_indices = @transform_0, window_bounds = array<i64: 4, 8, 3>}, {pipeline_mode = #tpu.pipeline_mode<synchronous>, transform_indices = @transform_1, window_bounds = array<i64: 2, 3>}, {pipeline_mode = #tpu.pipeline_mode<synchronous>, transform_indices = @transform_2, window_bounds = array<i64: 256, 1>}, {pipeline_mode = #tpu.pipeline_mode<synchronous>, transform_indices = @transform_3, window_bounds = array<i64: 32, 32>}, {pipeline_mode = #tpu.pipeline_mode<synchronous>, transform_indices = @transform_4, window_bounds = array<i64: 32, 32>}, {pipeline_mode = #tpu.pipeline_mode<synchronous>, transform_indices = @transform_5, window_bounds = array<i64: 32, 256>}, {pipeline_mode = #tpu.pipeline_mode<synchronous>, transform_indices = @transform_6, window_bounds = array<i64: 32, 256>}, {pipeline_mode = #tpu.pipeline_mode<synchronous>, transform_indices = @transform_7, window_bounds = array<i64: 32, 16>}, {pipeline_mode = #tpu.pipeline_mode<synchronous>, transform_indices = @transform_8, window_bounds = array<i64: 1, 16>}, {pipeline_mode = #tpu.pipeline_mode<synchronous>, transform_indices = @transform_9, window_bounds = array<i64: 2, 64, 16>}, {pipeline_mode = #tpu.pipeline_mode<synchronous>, transform_indices = @transform_10, window_bounds = array<i64: 2, 1, 16>}, {pipeline_mode = #tpu.pipeline_mode<synchronous>, transform_indices = @transform_11, window_bounds = array<i64: 4, 8>}, {pipeline_mode = #tpu.pipeline_mode<synchronous>, transform_indices = @transform_12, window_bounds = array<i64: 1, 8>}, {pipeline_mode = #tpu.pipeline_mode<synchronous>, transform_indices = @transform_13, window_bounds = array<i64: 2, 8, 8>}, {pipeline_mode = #tpu.pipeline_mode<synchronous>, transform_indices = @transform_14, window_bounds = array<i64: 2, 1, 8>}, {pipeline_mode = #tpu.pipeline_mode<synchronous>, transform_indices = @transform_15, window_bounds = array<i64: 64, 16>}, {pipeline_mode = #tpu.pipeline_mode<synchronous>, transform_indices = @transform_16, window_bounds = array<i64: 1, 16>}, {pipeline_mode = #tpu.pipeline_mode<synchronous>, transform_indices = @transform_17, window_bounds = array<i64: 16, 16>}, {pipeline_mode = #tpu.pipeline_mode<synchronous>, transform_indices = @transform_18, window_bounds = array<i64: 1, 16>}, {pipeline_mode = #tpu.pipeline_mode<synchronous>, transform_indices = @transform_19, window_bounds = array<i64: 16, 16>}, {pipeline_mode = #tpu.pipeline_mode<synchronous>, transform_indices = @transform_20, window_bounds = array<i64: 1, 16>}, {transform_indices = @transform_21, window_bounds = array<i64: 4, 4, 16>}, {transform_indices = @transform_22, window_bounds = array<i64: 4, 4, 16>}]} {
    %c0 = arith.constant 0 : index
    %c0_0 = arith.constant 0 : index
    %c0_1 = arith.constant 0 : index
    %0 = vector.load %arg1[%c0, %c0_0, %c0_1] : memref<4x8x3xf32, #tpu.memory_space<vmem>>, vector<4x8x3xf32>
    %c0_2 = arith.constant 0 : index
    %c0_3 = arith.constant 0 : index
    %1 = vector.load %arg2[%c0_2, %c0_3] : memref<2x3xf32, #tpu.memory_space<vmem>>, vector<2x3xf32>
    %c0_4 = arith.constant 0 : index
    %c0_5 = arith.constant 0 : index
    %2 = vector.load %arg4[%c0_4, %c0_5] : memref<32x32xf32, #tpu.memory_space<vmem>>, vector<32x32xf32>
    %c0_6 = arith.constant 0 : index
    %c0_7 = arith.constant 0 : index
    %3 = vector.load %arg5[%c0_6, %c0_7] : memref<32x32xf32, #tpu.memory_space<vmem>>, vector<32x32xf32>
    %c0_8 = arith.constant 0 : index
    %c0_9 = arith.constant 0 : index
    %4 = vector.load %arg6[%c0_8, %c0_9] : memref<32x256xf32, #tpu.memory_space<vmem>>, vector<32x256xf32>
    %c0_10 = arith.constant 0 : index
    %c0_11 = arith.constant 0 : index
    %5 = vector.load %arg7[%c0_10, %c0_11] : memref<32x256xf32, #tpu.memory_space<vmem>>, vector<32x256xf32>
    %6 = vector.shape_cast %0 : vector<4x8x3xf32> to vector<32x3xf32>
    %cst = arith.constant 0.000000e+00 : f32
    %7 = vector.broadcast %cst : f32 to vector<32x1xf32>
    %8 = vector.extract_strided_slice %1 {offsets = [0, 0], sizes = [1, 3], strides = [1, 1]} : vector<2x3xf32> to vector<1x3xf32>
    %9 = vector.broadcast %8 : vector<1x3xf32> to vector<32x3xf32>
    %10 = arith.subf %6, %9 : vector<32x3xf32>
    %11 = arith.mulf %10, %10 : vector<32x3xf32>
    %cst_12 = arith.constant dense<0.000000e+00> : vector<32xf32>
    %12 = vector.multi_reduction <add>, %11, %cst_12 [1] : vector<32x3xf32> to vector<32xf32>
    %13 = vector.shape_cast %12 : vector<32xf32> to vector<32x1xf32>
    %14 = math.sqrt %13 : vector<32x1xf32>
    %cst_13 = arith.constant 0.000000e+00 : f32
    %15 = vector.broadcast %cst_13 : f32 to vector<32x1xf32>
    %16 = arith.subf %15, %14 : vector<32x1xf32>
    %17 = math.exp %16 : vector<32x1xf32>
    %18 = arith.addf %7, %17 : vector<32x1xf32>
    %19 = vector.extract_strided_slice %1 {offsets = [1, 0], sizes = [1, 3], strides = [1, 1]} : vector<2x3xf32> to vector<1x3xf32>
    %20 = vector.broadcast %19 : vector<1x3xf32> to vector<32x3xf32>
    %21 = arith.subf %6, %20 : vector<32x3xf32>
    %22 = arith.mulf %21, %21 : vector<32x3xf32>
    %cst_14 = arith.constant dense<0.000000e+00> : vector<32xf32>
    %23 = vector.multi_reduction <add>, %22, %cst_14 [1] : vector<32x3xf32> to vector<32xf32>
    %24 = vector.shape_cast %23 : vector<32xf32> to vector<32x1xf32>
    %25 = math.sqrt %24 : vector<32x1xf32>
    %cst_15 = arith.constant 0.000000e+00 : f32
    %26 = vector.broadcast %cst_15 : f32 to vector<32x1xf32>
    %27 = arith.subf %26, %25 : vector<32x1xf32>
    %28 = math.exp %27 : vector<32x1xf32>
    %29 = arith.addf %18, %28 : vector<32x1xf32>
    %30 = tpu.concatenate %10, %14, %21, %25 in 1 : vector<32x3xf32>, vector<32x1xf32>, vector<32x3xf32>, vector<32x1xf32> -> vector<32x8xf32>
    %31 = vector.shape_cast %0 : vector<4x8x3xf32> to vector<4x1x8x3xf32>
    %32 = vector.shape_cast %0 : vector<4x8x3xf32> to vector<4x8x1x3xf32>
    %33 = vector.broadcast %31 : vector<4x1x8x3xf32> to vector<4x8x8x3xf32>
    %34 = vector.broadcast %32 : vector<4x8x1x3xf32> to vector<4x8x8x3xf32>
    %35 = arith.subf %33, %34 : vector<4x8x8x3xf32>
    %36 = vector.shape_cast %35 : vector<4x8x8x3xf32> to vector<256x3xf32>
    %c0_16 = arith.constant 0 : index
    %c0_17 = arith.constant 0 : index
    %37 = vector.load %arg3[%c0_16, %c0_17] : memref<256x1xf32, #tpu.memory_space<vmem>>, vector<256x1xf32>
    %38 = vector.broadcast %37 : vector<256x1xf32> to vector<256x3xf32>
    %39 = arith.addf %36, %38 : vector<256x3xf32>
    %40 = arith.mulf %39, %39 : vector<256x3xf32>
    %cst_18 = arith.constant dense<0.000000e+00> : vector<256xf32>
    %41 = vector.multi_reduction <add>, %40, %cst_18 [1] : vector<256x3xf32> to vector<256xf32>
    %42 = vector.shape_cast %41 : vector<256xf32> to vector<256x1xf32>
    %43 = math.sqrt %42 : vector<256x1xf32>
    %44 = tpu.concatenate %36, %43 in 1 : vector<256x3xf32>, vector<256x1xf32> -> vector<256x4xf32>
    %c0_19 = arith.constant 0 : index
    %c0_20 = arith.constant 0 : index
    %45 = vector.load %arg8[%c0_19, %c0_20] : memref<32x16xf32, #tpu.memory_space<vmem>>, vector<32x16xf32>
    %c0_21 = arith.constant 0 : index
    %c0_22 = arith.constant 0 : index
    %46 = vector.load %arg9[%c0_21, %c0_22] : memref<1x16xf32, #tpu.memory_space<vmem>>, vector<1x16xf32>
    %47 = arith.truncf %2 : vector<32x32xf32> to vector<32x32xbf16>
    %48 = arith.truncf %30 : vector<32x8xf32> to vector<32x8xbf16>
    %cst_23 = arith.constant dense<0.000000e+00> : vector<32x8xf32>
    %49 = tpu.matmul %47, %48, %cst_23 {dimension_numbers = #tpu.dot_dimension_numbers<[1], [0], [0], [1], [0, 0, 1, 1], [], []>} : vector<32x32xbf16>, vector<32x8xbf16>, vector<32x8xf32> -> vector<32x8xf32>
    %cst_24 = arith.constant 2.500000e-01 : f32
    %50 = vector.broadcast %cst_24 : f32 to vector<32x8xf32>
    %51 = arith.mulf %49, %50 : vector<32x8xf32>
    %52 = arith.truncf %3 : vector<32x32xf32> to vector<32x32xbf16>
    %53 = arith.truncf %30 : vector<32x8xf32> to vector<32x8xbf16>
    %cst_25 = arith.constant dense<0.000000e+00> : vector<32x8xf32>
    %54 = tpu.matmul %52, %53, %cst_25 {dimension_numbers = #tpu.dot_dimension_numbers<[1], [0], [0], [1], [0, 0, 1, 1], [], []>} : vector<32x32xbf16>, vector<32x8xbf16>, vector<32x8xf32> -> vector<32x8xf32>
    %cst_26 = arith.constant 2.500000e-01 : f32
    %55 = vector.broadcast %cst_26 : f32 to vector<32x8xf32>
    %56 = arith.mulf %54, %55 : vector<32x8xf32>
    %57 = arith.truncf %4 : vector<32x256xf32> to vector<32x256xbf16>
    %58 = arith.truncf %44 : vector<256x4xf32> to vector<256x4xbf16>
    %cst_27 = arith.constant dense<0.000000e+00> : vector<32x4xf32>
    %59 = tpu.matmul %57, %58, %cst_27 {dimension_numbers = #tpu.dot_dimension_numbers<[1], [0], [0], [1], [0, 0, 1, 1], [], []>} : vector<32x256xbf16>, vector<256x4xbf16>, vector<32x4xf32> -> vector<32x4xf32>
    %cst_28 = arith.constant 2.500000e-01 : f32
    %60 = vector.broadcast %cst_28 : f32 to vector<32x4xf32>
    %61 = arith.mulf %59, %60 : vector<32x4xf32>
    %62 = arith.truncf %5 : vector<32x256xf32> to vector<32x256xbf16>
    %63 = arith.truncf %44 : vector<256x4xf32> to vector<256x4xbf16>
    %cst_29 = arith.constant dense<0.000000e+00> : vector<32x4xf32>
    %64 = tpu.matmul %62, %63, %cst_29 {dimension_numbers = #tpu.dot_dimension_numbers<[1], [0], [0], [1], [0, 0, 1, 1], [], []>} : vector<32x256xbf16>, vector<256x4xbf16>, vector<32x4xf32> -> vector<32x4xf32>
    %cst_30 = arith.constant 2.500000e-01 : f32
    %65 = vector.broadcast %cst_30 : f32 to vector<32x4xf32>
    %66 = arith.mulf %64, %65 : vector<32x4xf32>
    %67 = vector.extract_strided_slice %45 {offsets = [0, 0], sizes = [8, 16], strides = [1, 1]} : vector<32x16xf32> to vector<8x16xf32>
    %68 = arith.truncf %30 : vector<32x8xf32> to vector<32x8xbf16>
    %69 = arith.truncf %67 : vector<8x16xf32> to vector<8x16xbf16>
    %cst_31 = arith.constant dense<0.000000e+00> : vector<32x16xf32>
    %70 = tpu.matmul %68, %69, %cst_31 {dimension_numbers = #tpu.dot_dimension_numbers<[1], [0], [0], [1], [0, 0, 1, 1], [], []>} : vector<32x8xbf16>, vector<8x16xbf16>, vector<32x16xf32> -> vector<32x16xf32>
    %71 = vector.extract_strided_slice %45 {offsets = [8, 0], sizes = [8, 16], strides = [1, 1]} : vector<32x16xf32> to vector<8x16xf32>
    %72 = arith.truncf %51 : vector<32x8xf32> to vector<32x8xbf16>
    %73 = arith.truncf %71 : vector<8x16xf32> to vector<8x16xbf16>
    %cst_32 = arith.constant dense<0.000000e+00> : vector<32x16xf32>
    %74 = tpu.matmul %72, %73, %cst_32 {dimension_numbers = #tpu.dot_dimension_numbers<[1], [0], [0], [1], [0, 0, 1, 1], [], []>} : vector<32x8xbf16>, vector<8x16xbf16>, vector<32x16xf32> -> vector<32x16xf32>
    %75 = arith.addf %70, %74 : vector<32x16xf32>
    %76 = vector.extract_strided_slice %45 {offsets = [16, 0], sizes = [8, 16], strides = [1, 1]} : vector<32x16xf32> to vector<8x16xf32>
    %77 = arith.truncf %56 : vector<32x8xf32> to vector<32x8xbf16>
    %78 = arith.truncf %76 : vector<8x16xf32> to vector<8x16xbf16>
    %cst_33 = arith.constant dense<0.000000e+00> : vector<32x16xf32>
    %79 = tpu.matmul %77, %78, %cst_33 {dimension_numbers = #tpu.dot_dimension_numbers<[1], [0], [0], [1], [0, 0, 1, 1], [], []>} : vector<32x8xbf16>, vector<8x16xbf16>, vector<32x16xf32> -> vector<32x16xf32>
    %80 = arith.addf %75, %79 : vector<32x16xf32>
    %81 = vector.extract_strided_slice %45 {offsets = [24, 0], sizes = [4, 16], strides = [1, 1]} : vector<32x16xf32> to vector<4x16xf32>
    %82 = arith.truncf %61 : vector<32x4xf32> to vector<32x4xbf16>
    %83 = arith.truncf %81 : vector<4x16xf32> to vector<4x16xbf16>
    %cst_34 = arith.constant dense<0.000000e+00> : vector<32x16xf32>
    %84 = tpu.matmul %82, %83, %cst_34 {dimension_numbers = #tpu.dot_dimension_numbers<[1], [0], [0], [1], [0, 0, 1, 1], [], []>} : vector<32x4xbf16>, vector<4x16xbf16>, vector<32x16xf32> -> vector<32x16xf32>
    %85 = arith.addf %80, %84 : vector<32x16xf32>
    %86 = vector.extract_strided_slice %45 {offsets = [28, 0], sizes = [4, 16], strides = [1, 1]} : vector<32x16xf32> to vector<4x16xf32>
    %87 = arith.truncf %66 : vector<32x4xf32> to vector<32x4xbf16>
    %88 = arith.truncf %86 : vector<4x16xf32> to vector<4x16xbf16>
    %cst_35 = arith.constant dense<0.000000e+00> : vector<32x16xf32>
    %89 = tpu.matmul %87, %88, %cst_35 {dimension_numbers = #tpu.dot_dimension_numbers<[1], [0], [0], [1], [0, 0, 1, 1], [], []>} : vector<32x4xbf16>, vector<4x16xbf16>, vector<32x16xf32> -> vector<32x16xf32>
    %90 = arith.addf %85, %89 : vector<32x16xf32>
    %91 = vector.broadcast %46 : vector<1x16xf32> to vector<32x16xf32>
    %92 = arith.addf %90, %91 : vector<32x16xf32>
    %93 = math.tanh %92 : vector<32x16xf32>
    %c0_36 = arith.constant 0 : index
    %c0_37 = arith.constant 0 : index
    %94 = vector.load %arg12[%c0_36, %c0_37] : memref<4x8xf32, #tpu.memory_space<vmem>>, vector<4x8xf32>
    %95 = arith.truncf %44 : vector<256x4xf32> to vector<256x4xbf16>
    %96 = arith.truncf %94 : vector<4x8xf32> to vector<4x8xbf16>
    %cst_38 = arith.constant dense<0.000000e+00> : vector<256x8xf32>
    %97 = tpu.matmul %95, %96, %cst_38 {dimension_numbers = #tpu.dot_dimension_numbers<[1], [0], [0], [1], [0, 0, 1, 1], [], []>} : vector<256x4xbf16>, vector<4x8xbf16>, vector<256x8xf32> -> vector<256x8xf32>
    %c0_39 = arith.constant 0 : index
    %c0_40 = arith.constant 0 : index
    %98 = vector.load %arg13[%c0_39, %c0_40] : memref<1x8xf32, #tpu.memory_space<vmem>>, vector<1x8xf32>
    %99 = vector.broadcast %98 : vector<1x8xf32> to vector<256x8xf32>
    %100 = arith.addf %97, %99 : vector<256x8xf32>
    %101 = math.tanh %100 : vector<256x8xf32>
    %c0_41 = arith.constant 0 : index
    %c0_42 = arith.constant 0 : index
    %c0_43 = arith.constant 0 : index
    %102 = vector.load %arg10[%c0_41, %c0_42, %c0_43] : memref<2x64x16xf32, #tpu.memory_space<vmem>>, vector<1x64x16xf32>
    %103 = vector.shape_cast %102 : vector<1x64x16xf32> to vector<64x16xf32>
    %c0_44 = arith.constant 0 : index
    %c0_45 = arith.constant 0 : index
    %c0_46 = arith.constant 0 : index
    %104 = vector.load %arg11[%c0_44, %c0_45, %c0_46] : memref<2x1x16xf32, #tpu.memory_space<vmem>>, vector<1x1x16xf32>
    %105 = vector.shape_cast %104 : vector<1x1x16xf32> to vector<1x16xf32>
    %106 = arith.truncf %2 : vector<32x32xf32> to vector<32x32xbf16>
    %107 = arith.truncf %93 : vector<32x16xf32> to vector<32x16xbf16>
    %cst_47 = arith.constant dense<0.000000e+00> : vector<32x16xf32>
    %108 = tpu.matmul %106, %107, %cst_47 {dimension_numbers = #tpu.dot_dimension_numbers<[1], [0], [0], [1], [0, 0, 1, 1], [], []>} : vector<32x32xbf16>, vector<32x16xbf16>, vector<32x16xf32> -> vector<32x16xf32>
    %cst_48 = arith.constant 2.500000e-01 : f32
    %109 = vector.broadcast %cst_48 : f32 to vector<32x16xf32>
    %110 = arith.mulf %108, %109 : vector<32x16xf32>
    %111 = arith.truncf %3 : vector<32x32xf32> to vector<32x32xbf16>
    %112 = arith.truncf %93 : vector<32x16xf32> to vector<32x16xbf16>
    %cst_49 = arith.constant dense<0.000000e+00> : vector<32x16xf32>
    %113 = tpu.matmul %111, %112, %cst_49 {dimension_numbers = #tpu.dot_dimension_numbers<[1], [0], [0], [1], [0, 0, 1, 1], [], []>} : vector<32x32xbf16>, vector<32x16xbf16>, vector<32x16xf32> -> vector<32x16xf32>
    %cst_50 = arith.constant 2.500000e-01 : f32
    %114 = vector.broadcast %cst_50 : f32 to vector<32x16xf32>
    %115 = arith.mulf %113, %114 : vector<32x16xf32>
    %116 = arith.truncf %4 : vector<32x256xf32> to vector<32x256xbf16>
    %117 = arith.truncf %101 : vector<256x8xf32> to vector<256x8xbf16>
    %cst_51 = arith.constant dense<0.000000e+00> : vector<32x8xf32>
    %118 = tpu.matmul %116, %117, %cst_51 {dimension_numbers = #tpu.dot_dimension_numbers<[1], [0], [0], [1], [0, 0, 1, 1], [], []>} : vector<32x256xbf16>, vector<256x8xbf16>, vector<32x8xf32> -> vector<32x8xf32>
    %cst_52 = arith.constant 2.500000e-01 : f32
    %119 = vector.broadcast %cst_52 : f32 to vector<32x8xf32>
    %120 = arith.mulf %118, %119 : vector<32x8xf32>
    %121 = arith.truncf %5 : vector<32x256xf32> to vector<32x256xbf16>
    %122 = arith.truncf %101 : vector<256x8xf32> to vector<256x8xbf16>
    %cst_53 = arith.constant dense<0.000000e+00> : vector<32x8xf32>
    %123 = tpu.matmul %121, %122, %cst_53 {dimension_numbers = #tpu.dot_dimension_numbers<[1], [0], [0], [1], [0, 0, 1, 1], [], []>} : vector<32x256xbf16>, vector<256x8xbf16>, vector<32x8xf32> -> vector<32x8xf32>
    %cst_54 = arith.constant 2.500000e-01 : f32
    %124 = vector.broadcast %cst_54 : f32 to vector<32x8xf32>
    %125 = arith.mulf %123, %124 : vector<32x8xf32>
    %126 = vector.extract_strided_slice %103 {offsets = [0, 0], sizes = [16, 16], strides = [1, 1]} : vector<64x16xf32> to vector<16x16xf32>
    %127 = arith.truncf %93 : vector<32x16xf32> to vector<32x16xbf16>
    %128 = arith.truncf %126 : vector<16x16xf32> to vector<16x16xbf16>
    %cst_55 = arith.constant dense<0.000000e+00> : vector<32x16xf32>
    %129 = tpu.matmul %127, %128, %cst_55 {dimension_numbers = #tpu.dot_dimension_numbers<[1], [0], [0], [1], [0, 0, 1, 1], [], []>} : vector<32x16xbf16>, vector<16x16xbf16>, vector<32x16xf32> -> vector<32x16xf32>
    %130 = vector.extract_strided_slice %103 {offsets = [16, 0], sizes = [16, 16], strides = [1, 1]} : vector<64x16xf32> to vector<16x16xf32>
    %131 = arith.truncf %110 : vector<32x16xf32> to vector<32x16xbf16>
    %132 = arith.truncf %130 : vector<16x16xf32> to vector<16x16xbf16>
    %cst_56 = arith.constant dense<0.000000e+00> : vector<32x16xf32>
    %133 = tpu.matmul %131, %132, %cst_56 {dimension_numbers = #tpu.dot_dimension_numbers<[1], [0], [0], [1], [0, 0, 1, 1], [], []>} : vector<32x16xbf16>, vector<16x16xbf16>, vector<32x16xf32> -> vector<32x16xf32>
    %134 = arith.addf %129, %133 : vector<32x16xf32>
    %135 = vector.extract_strided_slice %103 {offsets = [32, 0], sizes = [16, 16], strides = [1, 1]} : vector<64x16xf32> to vector<16x16xf32>
    %136 = arith.truncf %115 : vector<32x16xf32> to vector<32x16xbf16>
    %137 = arith.truncf %135 : vector<16x16xf32> to vector<16x16xbf16>
    %cst_57 = arith.constant dense<0.000000e+00> : vector<32x16xf32>
    %138 = tpu.matmul %136, %137, %cst_57 {dimension_numbers = #tpu.dot_dimension_numbers<[1], [0], [0], [1], [0, 0, 1, 1], [], []>} : vector<32x16xbf16>, vector<16x16xbf16>, vector<32x16xf32> -> vector<32x16xf32>
    %139 = arith.addf %134, %138 : vector<32x16xf32>
    %140 = vector.extract_strided_slice %103 {offsets = [48, 0], sizes = [8, 16], strides = [1, 1]} : vector<64x16xf32> to vector<8x16xf32>
    %141 = arith.truncf %120 : vector<32x8xf32> to vector<32x8xbf16>
    %142 = arith.truncf %140 : vector<8x16xf32> to vector<8x16xbf16>
    %cst_58 = arith.constant dense<0.000000e+00> : vector<32x16xf32>
    %143 = tpu.matmul %141, %142, %cst_58 {dimension_numbers = #tpu.dot_dimension_numbers<[1], [0], [0], [1], [0, 0, 1, 1], [], []>} : vector<32x8xbf16>, vector<8x16xbf16>, vector<32x16xf32> -> vector<32x16xf32>
    %144 = arith.addf %139, %143 : vector<32x16xf32>
    %145 = vector.extract_strided_slice %103 {offsets = [56, 0], sizes = [8, 16], strides = [1, 1]} : vector<64x16xf32> to vector<8x16xf32>
    %146 = arith.truncf %125 : vector<32x8xf32> to vector<32x8xbf16>
    %147 = arith.truncf %145 : vector<8x16xf32> to vector<8x16xbf16>
    %cst_59 = arith.constant dense<0.000000e+00> : vector<32x16xf32>
    %148 = tpu.matmul %146, %147, %cst_59 {dimension_numbers = #tpu.dot_dimension_numbers<[1], [0], [0], [1], [0, 0, 1, 1], [], []>} : vector<32x8xbf16>, vector<8x16xbf16>, vector<32x16xf32> -> vector<32x16xf32>
    %149 = arith.addf %144, %148 : vector<32x16xf32>
    %150 = vector.broadcast %105 : vector<1x16xf32> to vector<32x16xf32>
    %151 = arith.addf %149, %150 : vector<32x16xf32>
    %152 = math.tanh %151 : vector<32x16xf32>
    %153 = arith.addf %152, %93 : vector<32x16xf32>
    %c0_60 = arith.constant 0 : index
    %c0_61 = arith.constant 0 : index
    %c0_62 = arith.constant 0 : index
    %154 = vector.load %arg14[%c0_60, %c0_61, %c0_62] : memref<2x8x8xf32, #tpu.memory_space<vmem>>, vector<1x8x8xf32>
    %155 = vector.shape_cast %154 : vector<1x8x8xf32> to vector<8x8xf32>
    %156 = arith.truncf %101 : vector<256x8xf32> to vector<256x8xbf16>
    %157 = arith.truncf %155 : vector<8x8xf32> to vector<8x8xbf16>
    %cst_63 = arith.constant dense<0.000000e+00> : vector<256x8xf32>
    %158 = tpu.matmul %156, %157, %cst_63 {dimension_numbers = #tpu.dot_dimension_numbers<[1], [0], [0], [1], [0, 0, 1, 1], [], []>} : vector<256x8xbf16>, vector<8x8xbf16>, vector<256x8xf32> -> vector<256x8xf32>
    %c0_64 = arith.constant 0 : index
    %c0_65 = arith.constant 0 : index
    %c0_66 = arith.constant 0 : index
    %159 = vector.load %arg15[%c0_64, %c0_65, %c0_66] : memref<2x1x8xf32, #tpu.memory_space<vmem>>, vector<1x1x8xf32>
    %160 = vector.shape_cast %159 : vector<1x1x8xf32> to vector<1x8xf32>
    %161 = vector.broadcast %160 : vector<1x8xf32> to vector<256x8xf32>
    %162 = arith.addf %158, %161 : vector<256x8xf32>
    %163 = math.tanh %162 : vector<256x8xf32>
    %164 = arith.addf %163, %101 : vector<256x8xf32>
    %c1 = arith.constant 1 : index
    %c0_67 = arith.constant 0 : index
    %c0_68 = arith.constant 0 : index
    %165 = vector.load %arg10[%c1, %c0_67, %c0_68] : memref<2x64x16xf32, #tpu.memory_space<vmem>>, vector<1x64x16xf32>
    %166 = vector.shape_cast %165 : vector<1x64x16xf32> to vector<64x16xf32>
    %c1_69 = arith.constant 1 : index
    %c0_70 = arith.constant 0 : index
    %c0_71 = arith.constant 0 : index
    %167 = vector.load %arg11[%c1_69, %c0_70, %c0_71] : memref<2x1x16xf32, #tpu.memory_space<vmem>>, vector<1x1x16xf32>
    %168 = vector.shape_cast %167 : vector<1x1x16xf32> to vector<1x16xf32>
    %169 = arith.truncf %2 : vector<32x32xf32> to vector<32x32xbf16>
    %170 = arith.truncf %153 : vector<32x16xf32> to vector<32x16xbf16>
    %cst_72 = arith.constant dense<0.000000e+00> : vector<32x16xf32>
    %171 = tpu.matmul %169, %170, %cst_72 {dimension_numbers = #tpu.dot_dimension_numbers<[1], [0], [0], [1], [0, 0, 1, 1], [], []>} : vector<32x32xbf16>, vector<32x16xbf16>, vector<32x16xf32> -> vector<32x16xf32>
    %cst_73 = arith.constant 2.500000e-01 : f32
    %172 = vector.broadcast %cst_73 : f32 to vector<32x16xf32>
    %173 = arith.mulf %171, %172 : vector<32x16xf32>
    %174 = arith.truncf %3 : vector<32x32xf32> to vector<32x32xbf16>
    %175 = arith.truncf %153 : vector<32x16xf32> to vector<32x16xbf16>
    %cst_74 = arith.constant dense<0.000000e+00> : vector<32x16xf32>
    %176 = tpu.matmul %174, %175, %cst_74 {dimension_numbers = #tpu.dot_dimension_numbers<[1], [0], [0], [1], [0, 0, 1, 1], [], []>} : vector<32x32xbf16>, vector<32x16xbf16>, vector<32x16xf32> -> vector<32x16xf32>
    %cst_75 = arith.constant 2.500000e-01 : f32
    %177 = vector.broadcast %cst_75 : f32 to vector<32x16xf32>
    %178 = arith.mulf %176, %177 : vector<32x16xf32>
    %179 = arith.truncf %4 : vector<32x256xf32> to vector<32x256xbf16>
    %180 = arith.truncf %164 : vector<256x8xf32> to vector<256x8xbf16>
    %cst_76 = arith.constant dense<0.000000e+00> : vector<32x8xf32>
    %181 = tpu.matmul %179, %180, %cst_76 {dimension_numbers = #tpu.dot_dimension_numbers<[1], [0], [0], [1], [0, 0, 1, 1], [], []>} : vector<32x256xbf16>, vector<256x8xbf16>, vector<32x8xf32> -> vector<32x8xf32>
    %cst_77 = arith.constant 2.500000e-01 : f32
    %182 = vector.broadcast %cst_77 : f32 to vector<32x8xf32>
    %183 = arith.mulf %181, %182 : vector<32x8xf32>
    %184 = arith.truncf %5 : vector<32x256xf32> to vector<32x256xbf16>
    %185 = arith.truncf %164 : vector<256x8xf32> to vector<256x8xbf16>
    %cst_78 = arith.constant dense<0.000000e+00> : vector<32x8xf32>
    %186 = tpu.matmul %184, %185, %cst_78 {dimension_numbers = #tpu.dot_dimension_numbers<[1], [0], [0], [1], [0, 0, 1, 1], [], []>} : vector<32x256xbf16>, vector<256x8xbf16>, vector<32x8xf32> -> vector<32x8xf32>
    %cst_79 = arith.constant 2.500000e-01 : f32
    %187 = vector.broadcast %cst_79 : f32 to vector<32x8xf32>
    %188 = arith.mulf %186, %187 : vector<32x8xf32>
    %189 = vector.extract_strided_slice %166 {offsets = [0, 0], sizes = [16, 16], strides = [1, 1]} : vector<64x16xf32> to vector<16x16xf32>
    %190 = arith.truncf %153 : vector<32x16xf32> to vector<32x16xbf16>
    %191 = arith.truncf %189 : vector<16x16xf32> to vector<16x16xbf16>
    %cst_80 = arith.constant dense<0.000000e+00> : vector<32x16xf32>
    %192 = tpu.matmul %190, %191, %cst_80 {dimension_numbers = #tpu.dot_dimension_numbers<[1], [0], [0], [1], [0, 0, 1, 1], [], []>} : vector<32x16xbf16>, vector<16x16xbf16>, vector<32x16xf32> -> vector<32x16xf32>
    %193 = vector.extract_strided_slice %166 {offsets = [16, 0], sizes = [16, 16], strides = [1, 1]} : vector<64x16xf32> to vector<16x16xf32>
    %194 = arith.truncf %173 : vector<32x16xf32> to vector<32x16xbf16>
    %195 = arith.truncf %193 : vector<16x16xf32> to vector<16x16xbf16>
    %cst_81 = arith.constant dense<0.000000e+00> : vector<32x16xf32>
    %196 = tpu.matmul %194, %195, %cst_81 {dimension_numbers = #tpu.dot_dimension_numbers<[1], [0], [0], [1], [0, 0, 1, 1], [], []>} : vector<32x16xbf16>, vector<16x16xbf16>, vector<32x16xf32> -> vector<32x16xf32>
    %197 = arith.addf %192, %196 : vector<32x16xf32>
    %198 = vector.extract_strided_slice %166 {offsets = [32, 0], sizes = [16, 16], strides = [1, 1]} : vector<64x16xf32> to vector<16x16xf32>
    %199 = arith.truncf %178 : vector<32x16xf32> to vector<32x16xbf16>
    %200 = arith.truncf %198 : vector<16x16xf32> to vector<16x16xbf16>
    %cst_82 = arith.constant dense<0.000000e+00> : vector<32x16xf32>
    %201 = tpu.matmul %199, %200, %cst_82 {dimension_numbers = #tpu.dot_dimension_numbers<[1], [0], [0], [1], [0, 0, 1, 1], [], []>} : vector<32x16xbf16>, vector<16x16xbf16>, vector<32x16xf32> -> vector<32x16xf32>
    %202 = arith.addf %197, %201 : vector<32x16xf32>
    %203 = vector.extract_strided_slice %166 {offsets = [48, 0], sizes = [8, 16], strides = [1, 1]} : vector<64x16xf32> to vector<8x16xf32>
    %204 = arith.truncf %183 : vector<32x8xf32> to vector<32x8xbf16>
    %205 = arith.truncf %203 : vector<8x16xf32> to vector<8x16xbf16>
    %cst_83 = arith.constant dense<0.000000e+00> : vector<32x16xf32>
    %206 = tpu.matmul %204, %205, %cst_83 {dimension_numbers = #tpu.dot_dimension_numbers<[1], [0], [0], [1], [0, 0, 1, 1], [], []>} : vector<32x8xbf16>, vector<8x16xbf16>, vector<32x16xf32> -> vector<32x16xf32>
    %207 = arith.addf %202, %206 : vector<32x16xf32>
    %208 = vector.extract_strided_slice %166 {offsets = [56, 0], sizes = [8, 16], strides = [1, 1]} : vector<64x16xf32> to vector<8x16xf32>
    %209 = arith.truncf %188 : vector<32x8xf32> to vector<32x8xbf16>
    %210 = arith.truncf %208 : vector<8x16xf32> to vector<8x16xbf16>
    %cst_84 = arith.constant dense<0.000000e+00> : vector<32x16xf32>
    %211 = tpu.matmul %209, %210, %cst_84 {dimension_numbers = #tpu.dot_dimension_numbers<[1], [0], [0], [1], [0, 0, 1, 1], [], []>} : vector<32x8xbf16>, vector<8x16xbf16>, vector<32x16xf32> -> vector<32x16xf32>
    %212 = arith.addf %207, %211 : vector<32x16xf32>
    %213 = vector.broadcast %168 : vector<1x16xf32> to vector<32x16xf32>
    %214 = arith.addf %212, %213 : vector<32x16xf32>
    %215 = math.tanh %214 : vector<32x16xf32>
    %216 = arith.addf %215, %153 : vector<32x16xf32>
    %c1_85 = arith.constant 1 : index
    %c0_86 = arith.constant 0 : index
    %c0_87 = arith.constant 0 : index
    %217 = vector.load %arg14[%c1_85, %c0_86, %c0_87] : memref<2x8x8xf32, #tpu.memory_space<vmem>>, vector<1x8x8xf32>
    %218 = vector.shape_cast %217 : vector<1x8x8xf32> to vector<8x8xf32>
    %219 = arith.truncf %164 : vector<256x8xf32> to vector<256x8xbf16>
    %220 = arith.truncf %218 : vector<8x8xf32> to vector<8x8xbf16>
    %cst_88 = arith.constant dense<0.000000e+00> : vector<256x8xf32>
    %221 = tpu.matmul %219, %220, %cst_88 {dimension_numbers = #tpu.dot_dimension_numbers<[1], [0], [0], [1], [0, 0, 1, 1], [], []>} : vector<256x8xbf16>, vector<8x8xbf16>, vector<256x8xf32> -> vector<256x8xf32>
    %c1_89 = arith.constant 1 : index
    %c0_90 = arith.constant 0 : index
    %c0_91 = arith.constant 0 : index
    %222 = vector.load %arg15[%c1_89, %c0_90, %c0_91] : memref<2x1x8xf32, #tpu.memory_space<vmem>>, vector<1x1x8xf32>
    %223 = vector.shape_cast %222 : vector<1x1x8xf32> to vector<1x8xf32>
    %224 = vector.broadcast %223 : vector<1x8xf32> to vector<256x8xf32>
    %225 = arith.addf %221, %224 : vector<256x8xf32>
    %226 = math.tanh %225 : vector<256x8xf32>
    %227 = arith.addf %226, %164 : vector<256x8xf32>
    %c0_92 = arith.constant 0 : index
    %c0_93 = arith.constant 0 : index
    %228 = vector.load %arg16[%c0_92, %c0_93] : memref<64x16xf32, #tpu.memory_space<vmem>>, vector<64x16xf32>
    %c0_94 = arith.constant 0 : index
    %c0_95 = arith.constant 0 : index
    %229 = vector.load %arg17[%c0_94, %c0_95] : memref<1x16xf32, #tpu.memory_space<vmem>>, vector<1x16xf32>
    %230 = arith.truncf %2 : vector<32x32xf32> to vector<32x32xbf16>
    %231 = arith.truncf %216 : vector<32x16xf32> to vector<32x16xbf16>
    %cst_96 = arith.constant dense<0.000000e+00> : vector<32x16xf32>
    %232 = tpu.matmul %230, %231, %cst_96 {dimension_numbers = #tpu.dot_dimension_numbers<[1], [0], [0], [1], [0, 0, 1, 1], [], []>} : vector<32x32xbf16>, vector<32x16xbf16>, vector<32x16xf32> -> vector<32x16xf32>
    %cst_97 = arith.constant 2.500000e-01 : f32
    %233 = vector.broadcast %cst_97 : f32 to vector<32x16xf32>
    %234 = arith.mulf %232, %233 : vector<32x16xf32>
    %235 = arith.truncf %3 : vector<32x32xf32> to vector<32x32xbf16>
    %236 = arith.truncf %216 : vector<32x16xf32> to vector<32x16xbf16>
    %cst_98 = arith.constant dense<0.000000e+00> : vector<32x16xf32>
    %237 = tpu.matmul %235, %236, %cst_98 {dimension_numbers = #tpu.dot_dimension_numbers<[1], [0], [0], [1], [0, 0, 1, 1], [], []>} : vector<32x32xbf16>, vector<32x16xbf16>, vector<32x16xf32> -> vector<32x16xf32>
    %cst_99 = arith.constant 2.500000e-01 : f32
    %238 = vector.broadcast %cst_99 : f32 to vector<32x16xf32>
    %239 = arith.mulf %237, %238 : vector<32x16xf32>
    %240 = arith.truncf %4 : vector<32x256xf32> to vector<32x256xbf16>
    %241 = arith.truncf %227 : vector<256x8xf32> to vector<256x8xbf16>
    %cst_100 = arith.constant dense<0.000000e+00> : vector<32x8xf32>
    %242 = tpu.matmul %240, %241, %cst_100 {dimension_numbers = #tpu.dot_dimension_numbers<[1], [0], [0], [1], [0, 0, 1, 1], [], []>} : vector<32x256xbf16>, vector<256x8xbf16>, vector<32x8xf32> -> vector<32x8xf32>
    %cst_101 = arith.constant 2.500000e-01 : f32
    %243 = vector.broadcast %cst_101 : f32 to vector<32x8xf32>
    %244 = arith.mulf %242, %243 : vector<32x8xf32>
    %245 = arith.truncf %5 : vector<32x256xf32> to vector<32x256xbf16>
    %246 = arith.truncf %227 : vector<256x8xf32> to vector<256x8xbf16>
    %cst_102 = arith.constant dense<0.000000e+00> : vector<32x8xf32>
    %247 = tpu.matmul %245, %246, %cst_102 {dimension_numbers = #tpu.dot_dimension_numbers<[1], [0], [0], [1], [0, 0, 1, 1], [], []>} : vector<32x256xbf16>, vector<256x8xbf16>, vector<32x8xf32> -> vector<32x8xf32>
    %cst_103 = arith.constant 2.500000e-01 : f32
    %248 = vector.broadcast %cst_103 : f32 to vector<32x8xf32>
    %249 = arith.mulf %247, %248 : vector<32x8xf32>
    %250 = vector.extract_strided_slice %228 {offsets = [0, 0], sizes = [16, 16], strides = [1, 1]} : vector<64x16xf32> to vector<16x16xf32>
    %251 = arith.truncf %216 : vector<32x16xf32> to vector<32x16xbf16>
    %252 = arith.truncf %250 : vector<16x16xf32> to vector<16x16xbf16>
    %cst_104 = arith.constant dense<0.000000e+00> : vector<32x16xf32>
    %253 = tpu.matmul %251, %252, %cst_104 {dimension_numbers = #tpu.dot_dimension_numbers<[1], [0], [0], [1], [0, 0, 1, 1], [], []>} : vector<32x16xbf16>, vector<16x16xbf16>, vector<32x16xf32> -> vector<32x16xf32>
    %254 = vector.extract_strided_slice %228 {offsets = [16, 0], sizes = [16, 16], strides = [1, 1]} : vector<64x16xf32> to vector<16x16xf32>
    %255 = arith.truncf %234 : vector<32x16xf32> to vector<32x16xbf16>
    %256 = arith.truncf %254 : vector<16x16xf32> to vector<16x16xbf16>
    %cst_105 = arith.constant dense<0.000000e+00> : vector<32x16xf32>
    %257 = tpu.matmul %255, %256, %cst_105 {dimension_numbers = #tpu.dot_dimension_numbers<[1], [0], [0], [1], [0, 0, 1, 1], [], []>} : vector<32x16xbf16>, vector<16x16xbf16>, vector<32x16xf32> -> vector<32x16xf32>
    %258 = arith.addf %253, %257 : vector<32x16xf32>
    %259 = vector.extract_strided_slice %228 {offsets = [32, 0], sizes = [16, 16], strides = [1, 1]} : vector<64x16xf32> to vector<16x16xf32>
    %260 = arith.truncf %239 : vector<32x16xf32> to vector<32x16xbf16>
    %261 = arith.truncf %259 : vector<16x16xf32> to vector<16x16xbf16>
    %cst_106 = arith.constant dense<0.000000e+00> : vector<32x16xf32>
    %262 = tpu.matmul %260, %261, %cst_106 {dimension_numbers = #tpu.dot_dimension_numbers<[1], [0], [0], [1], [0, 0, 1, 1], [], []>} : vector<32x16xbf16>, vector<16x16xbf16>, vector<32x16xf32> -> vector<32x16xf32>
    %263 = arith.addf %258, %262 : vector<32x16xf32>
    %264 = vector.extract_strided_slice %228 {offsets = [48, 0], sizes = [8, 16], strides = [1, 1]} : vector<64x16xf32> to vector<8x16xf32>
    %265 = arith.truncf %244 : vector<32x8xf32> to vector<32x8xbf16>
    %266 = arith.truncf %264 : vector<8x16xf32> to vector<8x16xbf16>
    %cst_107 = arith.constant dense<0.000000e+00> : vector<32x16xf32>
    %267 = tpu.matmul %265, %266, %cst_107 {dimension_numbers = #tpu.dot_dimension_numbers<[1], [0], [0], [1], [0, 0, 1, 1], [], []>} : vector<32x8xbf16>, vector<8x16xbf16>, vector<32x16xf32> -> vector<32x16xf32>
    %268 = arith.addf %263, %267 : vector<32x16xf32>
    %269 = vector.extract_strided_slice %228 {offsets = [56, 0], sizes = [8, 16], strides = [1, 1]} : vector<64x16xf32> to vector<8x16xf32>
    %270 = arith.truncf %249 : vector<32x8xf32> to vector<32x8xbf16>
    %271 = arith.truncf %269 : vector<8x16xf32> to vector<8x16xbf16>
    %cst_108 = arith.constant dense<0.000000e+00> : vector<32x16xf32>
    %272 = tpu.matmul %270, %271, %cst_108 {dimension_numbers = #tpu.dot_dimension_numbers<[1], [0], [0], [1], [0, 0, 1, 1], [], []>} : vector<32x8xbf16>, vector<8x16xbf16>, vector<32x16xf32> -> vector<32x16xf32>
    %273 = arith.addf %268, %272 : vector<32x16xf32>
    %274 = vector.broadcast %229 : vector<1x16xf32> to vector<32x16xf32>
    %275 = arith.addf %273, %274 : vector<32x16xf32>
    %276 = math.tanh %275 : vector<32x16xf32>
    %c0_109 = arith.constant 0 : index
    %c0_110 = arith.constant 0 : index
    %277 = vector.load %arg18[%c0_109, %c0_110] : memref<16x16xf32, #tpu.memory_space<vmem>>, vector<16x16xf32>
    %278 = arith.truncf %276 : vector<32x16xf32> to vector<32x16xbf16>
    %279 = arith.truncf %277 : vector<16x16xf32> to vector<16x16xbf16>
    %cst_111 = arith.constant dense<0.000000e+00> : vector<32x16xf32>
    %280 = tpu.matmul %278, %279, %cst_111 {dimension_numbers = #tpu.dot_dimension_numbers<[1], [0], [0], [1], [0, 0, 1, 1], [], []>} : vector<32x16xbf16>, vector<16x16xbf16>, vector<32x16xf32> -> vector<32x16xf32>
    %c0_112 = arith.constant 0 : index
    %c0_113 = arith.constant 0 : index
    %281 = vector.load %arg19[%c0_112, %c0_113] : memref<1x16xf32, #tpu.memory_space<vmem>>, vector<1x16xf32>
    %282 = vector.broadcast %281 : vector<1x16xf32> to vector<32x16xf32>
    %283 = arith.addf %280, %282 : vector<32x16xf32>
    %284 = vector.broadcast %29 : vector<32x1xf32> to vector<32x16xf32>
    %285 = arith.mulf %283, %284 : vector<32x16xf32>
    %c0_114 = arith.constant 0 : index
    %c0_115 = arith.constant 0 : index
    %286 = vector.load %arg20[%c0_114, %c0_115] : memref<16x16xf32, #tpu.memory_space<vmem>>, vector<16x16xf32>
    %287 = arith.truncf %276 : vector<32x16xf32> to vector<32x16xbf16>
    %288 = arith.truncf %286 : vector<16x16xf32> to vector<16x16xbf16>
    %cst_116 = arith.constant dense<0.000000e+00> : vector<32x16xf32>
    %289 = tpu.matmul %287, %288, %cst_116 {dimension_numbers = #tpu.dot_dimension_numbers<[1], [0], [0], [1], [0, 0, 1, 1], [], []>} : vector<32x16xbf16>, vector<16x16xbf16>, vector<32x16xf32> -> vector<32x16xf32>
    %c0_117 = arith.constant 0 : index
    %c0_118 = arith.constant 0 : index
    %290 = vector.load %arg21[%c0_117, %c0_118] : memref<1x16xf32, #tpu.memory_space<vmem>>, vector<1x16xf32>
    %291 = vector.broadcast %290 : vector<1x16xf32> to vector<32x16xf32>
    %292 = arith.addf %289, %291 : vector<32x16xf32>
    %293 = vector.broadcast %29 : vector<32x1xf32> to vector<32x16xf32>
    %294 = arith.mulf %292, %293 : vector<32x16xf32>
    %295 = vector.shape_cast %285 : vector<32x16xf32> to vector<4x8x16xf32>
    %296 = vector.extract_strided_slice %295 {offsets = [0, 0, 0], sizes = [4, 4, 16], strides = [1, 1, 1]} : vector<4x8x16xf32> to vector<4x4x16xf32>
    %c0_119 = arith.constant 0 : index
    %c0_120 = arith.constant 0 : index
    %c0_121 = arith.constant 0 : index
    %297 = vector.load %arg22[%c0_119, %c0_120, %c0_121] : memref<4x4x16xf32, #tpu.memory_space<vmem>>, vector<4x4x16xf32>
    tpu.vector_store %arg22[%c0_119, %c0_120, %c0_121], %296 {strides = array<i32>} : memref<4x4x16xf32, #tpu.memory_space<vmem>>, vector<4x4x16xf32>,
    %298 = vector.shape_cast %294 : vector<32x16xf32> to vector<4x8x16xf32>
    %299 = vector.extract_strided_slice %298 {offsets = [0, 4, 0], sizes = [4, 4, 16], strides = [1, 1, 1]} : vector<4x8x16xf32> to vector<4x4x16xf32>
    %c0_122 = arith.constant 0 : index
    %c0_123 = arith.constant 0 : index
    %c0_124 = arith.constant 0 : index
    %300 = vector.load %arg23[%c0_122, %c0_123, %c0_124] : memref<4x4x16xf32, #tpu.memory_space<vmem>>, vector<4x4x16xf32>
    tpu.vector_store %arg23[%c0_122, %c0_123, %c0_124], %299 {strides = array<i32>} : memref<4x4x16xf32, #tpu.memory_space<vmem>>, vector<4x4x16xf32>,
    return
  }
  func.func @transform_0(%arg0: i32) -> (i32, i32, i32) {
    %c0_i32 = arith.constant 0 : i32
    %c0_i32_0 = arith.constant 0 : i32
    %c0_i32_1 = arith.constant 0 : i32
    return %arg0, %c0_i32, %c0_i32_0 : i32, i32, i32
  }
  func.func @transform_1(%arg0: i32) -> (i32, i32) {
    %c0_i32 = arith.constant 0 : i32
    %c0_i32_0 = arith.constant 0 : i32
    %c0_i32_1 = arith.constant 0 : i32
    return %c0_i32, %c0_i32_0 : i32, i32
  }
  func.func @transform_2(%arg0: i32) -> (i32, i32) {
    %c0_i32 = arith.constant 0 : i32
    %c0_i32_0 = arith.constant 0 : i32
    %c0_i32_1 = arith.constant 0 : i32
    return %c0_i32, %c0_i32_0 : i32, i32
  }
  func.func @transform_3(%arg0: i32) -> (i32, i32) {
    %c0_i32 = arith.constant 0 : i32
    %c0_i32_0 = arith.constant 0 : i32
    %c0_i32_1 = arith.constant 0 : i32
    return %c0_i32, %c0_i32_0 : i32, i32
  }
  func.func @transform_4(%arg0: i32) -> (i32, i32) {
    %c0_i32 = arith.constant 0 : i32
    %c0_i32_0 = arith.constant 0 : i32
    %c0_i32_1 = arith.constant 0 : i32
    return %c0_i32, %c0_i32_0 : i32, i32
  }
  func.func @transform_5(%arg0: i32) -> (i32, i32) {
    %c0_i32 = arith.constant 0 : i32
    %c0_i32_0 = arith.constant 0 : i32
    %c0_i32_1 = arith.constant 0 : i32
    return %c0_i32, %c0_i32_0 : i32, i32
  }
  func.func @transform_6(%arg0: i32) -> (i32, i32) {
    %c0_i32 = arith.constant 0 : i32
    %c0_i32_0 = arith.constant 0 : i32
    %c0_i32_1 = arith.constant 0 : i32
    return %c0_i32, %c0_i32_0 : i32, i32
  }
  func.func @transform_7(%arg0: i32) -> (i32, i32) {
    %c0_i32 = arith.constant 0 : i32
    %c0_i32_0 = arith.constant 0 : i32
    %c0_i32_1 = arith.constant 0 : i32
    return %c0_i32, %c0_i32_0 : i32, i32
  }
  func.func @transform_8(%arg0: i32) -> (i32, i32) {
    %c0_i32 = arith.constant 0 : i32
    %c0_i32_0 = arith.constant 0 : i32
    %c0_i32_1 = arith.constant 0 : i32
    return %c0_i32, %c0_i32_0 : i32, i32
  }
  func.func @transform_9(%arg0: i32) -> (i32, i32, i32) {
    %c0_i32 = arith.constant 0 : i32
    %c0_i32_0 = arith.constant 0 : i32
    %c0_i32_1 = arith.constant 0 : i32
    %c0_i32_2 = arith.constant 0 : i32
    return %c0_i32, %c0_i32_0, %c0_i32_1 : i32, i32, i32
  }
  func.func @transform_10(%arg0: i32) -> (i32, i32, i32) {
    %c0_i32 = arith.constant 0 : i32
    %c0_i32_0 = arith.constant 0 : i32
    %c0_i32_1 = arith.constant 0 : i32
    %c0_i32_2 = arith.constant 0 : i32
    return %c0_i32, %c0_i32_0, %c0_i32_1 : i32, i32, i32
  }
  func.func @transform_11(%arg0: i32) -> (i32, i32) {
    %c0_i32 = arith.constant 0 : i32
    %c0_i32_0 = arith.constant 0 : i32
    %c0_i32_1 = arith.constant 0 : i32
    return %c0_i32, %c0_i32_0 : i32, i32
  }
  func.func @transform_12(%arg0: i32) -> (i32, i32) {
    %c0_i32 = arith.constant 0 : i32
    %c0_i32_0 = arith.constant 0 : i32
    %c0_i32_1 = arith.constant 0 : i32
    return %c0_i32, %c0_i32_0 : i32, i32
  }
  func.func @transform_13(%arg0: i32) -> (i32, i32, i32) {
    %c0_i32 = arith.constant 0 : i32
    %c0_i32_0 = arith.constant 0 : i32
    %c0_i32_1 = arith.constant 0 : i32
    %c0_i32_2 = arith.constant 0 : i32
    return %c0_i32, %c0_i32_0, %c0_i32_1 : i32, i32, i32
  }
  func.func @transform_14(%arg0: i32) -> (i32, i32, i32) {
    %c0_i32 = arith.constant 0 : i32
    %c0_i32_0 = arith.constant 0 : i32
    %c0_i32_1 = arith.constant 0 : i32
    %c0_i32_2 = arith.constant 0 : i32
    return %c0_i32, %c0_i32_0, %c0_i32_1 : i32, i32, i32
  }
  func.func @transform_15(%arg0: i32) -> (i32, i32) {
    %c0_i32 = arith.constant 0 : i32
    %c0_i32_0 = arith.constant 0 : i32
    %c0_i32_1 = arith.constant 0 : i32
    return %c0_i32, %c0_i32_0 : i32, i32
  }
  func.func @transform_16(%arg0: i32) -> (i32, i32) {
    %c0_i32 = arith.constant 0 : i32
    %c0_i32_0 = arith.constant 0 : i32
    %c0_i32_1 = arith.constant 0 : i32
    return %c0_i32, %c0_i32_0 : i32, i32
  }
  func.func @transform_17(%arg0: i32) -> (i32, i32) {
    %c0_i32 = arith.constant 0 : i32
    %c0_i32_0 = arith.constant 0 : i32
    %c0_i32_1 = arith.constant 0 : i32
    return %c0_i32, %c0_i32_0 : i32, i32
  }
  func.func @transform_18(%arg0: i32) -> (i32, i32) {
    %c0_i32 = arith.constant 0 : i32
    %c0_i32_0 = arith.constant 0 : i32
    %c0_i32_1 = arith.constant 0 : i32
    return %c0_i32, %c0_i32_0 : i32, i32
  }
  func.func @transform_19(%arg0: i32) -> (i32, i32) {
    %c0_i32 = arith.constant 0 : i32
    %c0_i32_0 = arith.constant 0 : i32
    %c0_i32_1 = arith.constant 0 : i32
    return %c0_i32, %c0_i32_0 : i32, i32
  }
  func.func @transform_20(%arg0: i32) -> (i32, i32) {
    %c0_i32 = arith.constant 0 : i32
    %c0_i32_0 = arith.constant 0 : i32
    %c0_i32_1 = arith.constant 0 : i32
    return %c0_i32, %c0_i32_0 : i32, i32
  }
  func.func @transform_21(%arg0: i32) -> (i32, i32, i32) {
    %c0_i32 = arith.constant 0 : i32
    %c0_i32_0 = arith.constant 0 : i32
    %c0_i32_1 = arith.constant 0 : i32
    return %arg0, %c0_i32, %c0_i32_0 : i32, i32, i32
  }
  func.func @transform_22(%arg0: i32) -> (i32, i32, i32) {
    %c0_i32 = arith.constant 0 : i32
    %c0_i32_0 = arith.constant 0 : i32
    %c0_i32_1 = arith.constant 0 : i32
    return %arg0, %c0_i32, %c0_i32_0 : i32, i32, i32
  }
}

</mosaic_0001>

<llo_original>
// kernel: custom-call.9
$region0: #{custom-call.9}
  %s0 = inlined_call_operand.vmem [shape: f32[8,4,4,4], index: 0, kind: input, shape index: {}]
  %s1 = inlined_call_operand.vmem [shape: f32[8,4,4,4], index: 1, kind: output, shape index: {0}]
  %s2 = inlined_call_operand.vmem [shape: s32[8,4,4], index: 2, kind: output, shape index: {1}]
  %s3 = inlined_call_operand.hbm [shape: s32[8,4,4], index: 3, kind: output, shape index: {2}]
  %4 = xla_tuple %s1, %s2, %s3
  $region1: #{custom-call.9} parent=0
    #allocation0 [shape = 'u8[4096]{0}', space=vmem, size = 0x1000, scoped, tag = 'operand span for operand 0']
    #allocation1 [shape = 'u8[4096]{0}', space=vmem, size = 0x1000, scoped, tag = 'packed  for operand 0']
    #allocation2 [shape = 'u8[4096]{0}', space=vmem, size = 0x1000, scoped, tag = 'operand span for operand 1']
    #allocation3 [shape = 'u8[4096]{0}', space=vmem, size = 0x1000, scoped, tag = 'packed  for operand 1']
    #allocation4 [shape = 'u8[4096]{0}', space=vmem, size = 0x1000, scoped, tag = 'operand span for operand 2']
    #allocation5 [shape = 'u8[4096]{0}', space=vmem, size = 0x1000, scoped, tag = 'packed  for operand 2']
    #allocation6 [shape = 'u8[4096]{0}', space=vmem, size = 0x1000, scoped, tag = 'operand span for operand 3']
    #allocation7 [shape = 'u8[4096]{0}', space=vmem, size = 0x1000, scoped, tag = 'packed  for operand 3']
    #allocation8 [shape = 's32[2]{0}', space=sflag, size = 0x8, scoped, tag = 'scoped memory for custom-call.9']
    %5 = vsyncpa [#allocation8], 0
    %s6 = scalar_lea.sflag [#allocation8], 1
    %7 = vsyncpa %s6, 0
    loop: start=0, step=1, limit=34
    $region2: #{custom-call.9} parent=1 // loop_pre_header
      _
    $region3: #{custom-call.9} parent=1 // loop_header
      %s9 = sphi 0, %s13
      %p10 = scmp.ge.s32.totalorder %s9, 34
      %s16 = sphi 0, %s28
      %s17 = sphi 0, %s24
      %s18 = sphi 0, %s16
      %s19 = sphi 0, %s17
      %s20 = sphi 0, %s18
      %s21 = sphi 0, %s19
      %s35 = sphi 0, %s37
      %s38 = sphi 0, %s35
      %s39 = sphi 0, %s38
      %s55 = sphi 0, %s39
      %s65 = sphi 0, %s67
      %s68 = sphi 0, %s65
      %s69 = sphi 0, %s68
      %s85 = sphi 0, %s69
    $region4: #{custom-call.9} parent=1 // loop_header_branch
      %12 = sbr.rel (%p10) target = $region8
    $region5: #{custom-call.9} parent=1 // loop_body
      %s14 = ssub.s32 %s9, 1
      %s15 = ssub.s32 %s9, 2
      %s22 = sadd.s32 1, %s17
      %p23 = scmp.ge.s32.totalorder %s22, 4
      %s24 = scalar_select %p23, 0, %s22
      %s25 = sadd.s32 1, %s16
      %s26 = scalar_select %p23, %s25, %s16
      %p27 = scmp.ge.s32.totalorder %s26, 8
      %s28 = scalar_select %p27, 0, %s26
      %s29 = sshrl.u32 %s17, 3
      %s30 = sshrl.u32 %s24, 3
      %s31 = ssub.s32 %s16, %s28
      %s32 = ssub.s32 %s29, %s30
      %s33 = sor.u32 %s31, %s32
      %p34 = scmp.eq.s32.totalorder %s33, 0
      %s36 = sadd.s32 %s35, 1
      %s37 = scalar_select %p34, %s35, %s36
      %p40 = pneg %p34
      %p41 = scmp.eq.s32.totalorder %s9, 31
      %p42 = por %p40, %p41
      %p43 = scmp.ne.s32.totalorder %s35, %s38
      %p44 = scmp.eq.s32.totalorder %s9, 0
      %p45 = por %p43, %p44
      %p46 = scmp.ne.s32.totalorder %s35, %s38
      %p47 = scmp.eq.s32.totalorder %s14, 31
      %p48 = por %p46, %p47
      %p49 = scmp.ne.s32.totalorder %s38, %s39
      %p50 = scmp.eq.s32.totalorder %s14, 0
      %p51 = por %p49, %p50
      %p52 = scmp.ne.s32.totalorder %s38, %s39
      %p53 = scmp.eq.s32.totalorder %s15, 31
      %p54 = por %p52, %p53
      %p56 = scmp.ne.s32.totalorder %s39, %s55
      %p57 = scmp.eq.s32.totalorder %s15, 0
      %p58 = por %p56, %p57
      %s59 = sshrl.u32 %s17, 3
      %s60 = sshrl.u32 %s24, 3
      %s61 = ssub.s32 %s16, %s28
      %s62 = ssub.s32 %s59, %s60
      %s63 = sor.u32 %s61, %s62
      %p64 = scmp.eq.s32.totalorder %s63, 0
      %s66 = sadd.s32 %s65, 1
      %s67 = scalar_select %p64, %s65, %s66
      %p70 = pneg %p64
      %p71 = scmp.eq.s32.totalorder %s9, 31
      %p72 = por %p70, %p71
      %p73 = scmp.ne.s32.totalorder %s65, %s68
      %p74 = scmp.eq.s32.totalorder %s9, 0
      %p75 = por %p73, %p74
      %p76 = scmp.ne.s32.totalorder %s65, %s68
      %p77 = scmp.eq.s32.totalorder %s14, 31
      %p78 = por %p76, %p77
      %p79 = scmp.ne.s32.totalorder %s68, %s69
      %p80 = scmp.eq.s32.totalorder %s14, 0
      %p81 = por %p79, %p80
      %p82 = scmp.ne.s32.totalorder %s68, %s69
      %p83 = scmp.eq.s32.totalorder %s15, 31
      %p84 = por %p82, %p83
      %p86 = scmp.ne.s32.totalorder %s69, %s85
      %p87 = scmp.eq.s32.totalorder %s15, 0
      %p88 = por %p86, %p87
      %p89 = scmp.le.s32.totalorder 1, %s9
      %p90 = scmp.lt.s32.totalorder %s9, 33
      %p91 = pnand %p89, %p90
      %p92 = pneg %p91
      // Predicated region
      $region9: #{custom-call.9} parent=5 // pred_check
        _
      $region10: #{custom-call.9} parent=5 // pred_check_branch
        %94 = sbr.rel (%p91) target = $region12
      $region11: #{custom-call.9} parent=5 // pred_region
        %s95 = ssub.s32 %s9, 1
      $region12: #{custom-call.9} parent=5 // pred_fallthru
        _
      %p96 = scmp.lt.s32.totalorder %s9, 32
      // Predicated region
      $region13: #{custom-call.9} parent=5 // pred_check
        %p97 = pneg %p96
      $region14: #{custom-call.9} parent=5 // pred_check_branch
        %99 = sbr.rel (%p97) target = $region16
      $region15: #{custom-call.9} parent=5 // pred_region
        %s100 = sand.u32 %s9, 1
        %s101 = sand.u32 %s9, 1
        %s102 = smul.addr %s101, 4
        %s103 = scalar_lea.vmem [#allocation1], %s102
        %s104 = smul.addr %s16, 4
        %s105 = sadd.s32 %s17, %s104
        %s106 = smul.addr %s105, 4
        %s107 = scalar_lea.vmem %s0, %s106
        // Predicated region
        $region17: #{custom-call.9} parent=15 // pred_check
          _
        $region18: #{custom-call.9} parent=15 // pred_check_branch
          %109 = sbr.rel (0) target = $region20
        $region19: #{custom-call.9} parent=15 // pred_region
          // Predicated region
          $region21: #{custom-call.9} parent=19 // pred_check
            _
          $region22: #{custom-call.9} parent=19 // pred_check_branch
            %111 = sbr.rel target = $region24
          $region23: #{custom-call.9} parent=19 // pred_region
            // Predicated region
            $region36: #{custom-call.9} parent=23 // pred_check
              _
            $region37: #{custom-call.9} parent=23 // pred_check_branch
              %127 = sbr.rel (0) target = $region39
            $region38: #{custom-call.9} parent=23 // pred_region
              %s129 = ssub.s32 16, 1
              loop: start=0, step=1, limit=1
              $region40: #{custom-call.9} parent=38 // loop_pre_header
                _
              $region41: #{custom-call.9} parent=38 // loop_header
                %s131 = sphi 0, %s135
                %p132 = scmp.ge.s32.totalorder %s131, 1
                %s136 = sphi %s107, %s107
                %s137 = sphi %s103, %s103
              $region42: #{custom-call.9} parent=38 // loop_header_branch
                %134 = sbr.rel (%p132) target = $region46
              $region43: #{custom-call.9} parent=38 // loop_body
                %v138 = vld [vmem:[%s136] sm:%s129]
                %139 = vst [vmem:[%s137] sm:%s129] %v138
              $region44: #{custom-call.9} parent=38 // loop_footer
                %s135 = sadd.s32 1, %s131
              $region45: #{custom-call.9} parent=38 // loop_footer_branch
                %130 = sbr.rel target = $region41
              $region46: #{custom-call.9} parent=38 // loop_exit
                _
            $region39: #{custom-call.9} parent=23 // pred_fallthru
              _
          $region24: #{custom-call.9} parent=19 // pred_fallthru
            _
          // Predicated region
          $region25: #{custom-call.9} parent=19 // pred_check
            _
          $region26: #{custom-call.9} parent=19 // pred_check_branch
            %113 = sbr.rel (0) target = $region28
          $region27: #{custom-call.9} parent=19 // pred_region
            %s115 = ssub.s32 16, 1
            loop: start=0, step=1, limit=1
            $region29: #{custom-call.9} parent=27 // loop_pre_header
              _
            $region30: #{custom-call.9} parent=27 // loop_header
              %s117 = sphi 0, %s121
              %p118 = scmp.ge.s32.totalorder %s117, 1
              %s122 = sphi %s107, %s107
              %s123 = sphi %s103, %s103
            $region31: #{custom-call.9} parent=27 // loop_header_branch
              %120 = sbr.rel (%p118) target = $region35
            $region32: #{custom-call.9} parent=27 // loop_body
              %v124 = vld [vmem:[%s122] sm:%s115]
              %125 = vst [vmem:[%s123] sm:%s115] %v124
            $region33: #{custom-call.9} parent=27 // loop_footer
              %s121 = sadd.s32 1, %s117
            $region34: #{custom-call.9} parent=27 // loop_footer_branch
              %116 = sbr.rel target = $region30
            $region35: #{custom-call.9} parent=27 // loop_exit
              _
          $region28: #{custom-call.9} parent=19 // pred_fallthru
            _
        $region20: #{custom-call.9} parent=15 // pred_fallthru
          _
        %140 = vnop
      $region16: #{custom-call.9} parent=5 // pred_fallthru
        _
      %p141 = scmp.le.s32.totalorder 1, %s9
      %p142 = scmp.lt.s32.totalorder %s9, 33
      %p143 = pnand %p141, %p142
      %p144 = pneg %p143
      // Predicated region
      $region47: #{custom-call.9} parent=5 // pred_check
        _
      $region48: #{custom-call.9} parent=5 // pred_check_branch
        %146 = sbr.rel (%p143) target = $region50
      $region49: #{custom-call.9} parent=5 // pred_region
        #allocation9 [shape = 's32[4,128]{1,0}', space=vmem, size = 0x1000, scoped, tag = 'scratch for permutations']
        %s147 = ssub.s32 %s9, 1
        %s148 = sand.u32 %s14, 1
        %s149 = sand.u32 %s14, 1
        %s150 = smul.addr %s149, 4
        %s151 = scalar_lea.vmem [#allocation1], %s150
        %s152 = sand.u32 %s14, 1
        %s153 = sand.u32 %s14, 1
        %s154 = smul.addr %s153, 4
        %s155 = scalar_lea.vmem [#allocation1], %s154
        %s156 = sand.u32 %s14, 1
        %s157 = sand.u32 %s14, 1
        %s158 = smul.addr %s157, 4
        %s159 = scalar_lea.vmem [#allocation3], %s158
        %p160 = pneg %p51
        %p161 = pneg %p48
        %s162 = sand.u32 %s38, 1
        %s163 = sand.u32 %s38, 1
        %s164 = smul.addr %s163, 4
        %s165 = scalar_lea.vmem [#allocation5], %s164
        %p166 = pneg %p81
        %p167 = pneg %p78
        %s168 = sand.u32 %s68, 1
        %s169 = scalar_lea.sflag [#allocation8], %s168
        %s170 = sand.u32 %s68, 1
        %s171 = smul.addr %s170, 4
        %s172 = scalar_lea.vmem [#allocation7], %s171
        %s174 = ssub.s32 16, 1
        %v175 = vld [vmem:[%s155] sm:%s174]
        %176 = vst [vmem:[#allocation0] sm:%s174] %v175
        %s177 = sshrl.u32 %s19, 3
        %s178 = sshrl.u32 %s19, 3
        %v179 = vld [vmem:[#allocation0] sm:$0xff]
        %180 = vst [vmem:[#allocation2] sm:$0xff] %v179
        %s181 = sand.u32 %s19, 7
        %s182 = scalar_lea.vmem [#allocation4], %s181
        %s183 = sand.u32 %s19, 7
        %s184 = scalar_lea.vmem [#allocation6], %s183
        %185 = vst [vmem:[%s182] sm:$0x1] 0
        %v186 = vlaneseq
        %v187 = vshrl.u32 %v186, 7
        %v188 = vmov %v187
        %190 = vst [vmem:[#allocation9] sm:$0xff] %v188
        loop: start=0, step=1, limit=4
        $region52: #{custom-call.9} parent=49 // loop_pre_header
          _
        $region53: #{custom-call.9} parent=49 // loop_header
          %s192 = sphi 0, %s196
          %p193 = scmp.ge.s32.totalorder %s192, 4
        $region54: #{custom-call.9} parent=49 // loop_header_branch
          %195 = sbr.rel (%p193) target = $region58
        $region55: #{custom-call.9} parent=49 // loop_body
          %v197 = vstv %s192
          %v198 = vlaneseq
          %v199 = vshrl.u32 %v198, 7
          %v200 = vmov %v199
          %v201 = vld [vmem:[#allocation2] sm:$0xff]
          %v202 = vand.u32 2147483647, %v201
          %v204 = vstv %s192
          %vm205 = vcmp.ge.s32.totalorder %v200, %v204
          %vm206 = vcmp.lt.s32.totalorder %v200, 4
          %vm207 = vmand %vm205, %vm206
          %vm208 = vcmp.lt.f32.partialorder -inf, %v202
          %vm209 = vmand %vm207, %vm208
          %v210 = vsel %vm209, %v200, %v197
          %v211 = vsel %vm209, %v202, -inf
          %v212 = vrot.slane %v211, 1
          %v213 = vrot.slane %v210, 1
          %vm214 = vcmp.ge.f32.partialorder %v212, %v211
          %v215 = vsel %vm214, %v212, %v211
          %v216 = vsel %vm214, %v213, %v210
          %v217 = vrot.slane %v212, 1
          %v218 = vrot.slane %v213, 1
          %vm219 = vcmp.ge.f32.partialorder %v217, %v215
          %v220 = vsel %vm219, %v217, %v215
          %v221 = vsel %vm219, %v218, %v216
          %v222 = vrot.slane %v217, 1
          %v223 = vrot.slane %v218, 1
          %vm224 = vcmp.ge.f32.partialorder %v222, %v220
          %v225 = vsel %vm224, %v222, %v220
          %v226 = vsel %vm224, %v223, %v221
          %v227 = vrot.slane %v222, 1
          %v228 = vrot.slane %v223, 1
          %vm229 = vcmp.ge.f32.partialorder %v227, %v225
          %v230 = vsel %vm229, %v227, %v225
          %v231 = vsel %vm229, %v228, %v226
          %v232 = vrot.slane %v227, 1
          %v233 = vrot.slane %v228, 1
          %vm234 = vcmp.ge.f32.partialorder %v232, %v230
          %v235 = vsel %vm234, %v232, %v230
          %v236 = vsel %vm234, %v233, %v231
          %v237 = vrot.slane %v232, 1
          %v238 = vrot.slane %v233, 1
          %vm239 = vcmp.ge.f32.partialorder %v237, %v235
          %v240 = vsel %vm239, %v237, %v235
          %v241 = vsel %vm239, %v238, %v236
          %v242 = vrot.slane %v237, 1
          %v243 = vrot.slane %v238, 1
          %vm244 = vcmp.ge.f32.partialorder %v242, %v240
          %v245 = vsel %vm244, %v242, %v240
          %v246 = vsel %vm244, %v243, %v241
          %s247 = ssub.s32 128, %s192
          %248 = vrot.lane.b32.xlu0 %v246, %s247
          %v249 = vpop.permute.xlu0 %248
          %s250 = vtos %v249
          %v251 = vstv %s192
          %v252 = vlaneseq
          %v253 = vand.u32 %v252, 127
          %vm254 = vcmp.eq.s32.totalorder %v253, %v251
          %v255 = vstv %s250
          %v256 = vld [vmem:[%s182] ss:$0 sm:$0xff]
          %v257 = vsel %vm254, %v255, %v256
          %258 = vst [vmem:[%s182] sm:$0x1] %v257
          %s259 = scalar_lea.vmem [#allocation2], %s192
          %s260 = scalar_lea.vmem [#allocation2], %s250
          %v261 = vld [vmem:[%s259] ss:$0 sm:$0xff]
          %v262 = vld [vmem:[%s260] ss:$0 sm:$0xff]
          %263 = vst [vmem:[%s260] sm:$0x1] %v261
          %264 = vst [vmem:[%s259] sm:$0x1] %v262
          %s265 = scalar_lea.vmem [#allocation9], %s192
          %s266 = scalar_lea.vmem [#allocation9], %s250
          %v267 = vld [vmem:[%s265] ss:$0 sm:$0xff]
          %v268 = vld [vmem:[%s266] ss:$0 sm:$0xff]
          %269 = vst [vmem:[%s266] sm:$0x1] %v267
          %270 = vst [vmem:[%s265] sm:$0x1] %v268
          %vm271 = vcmp.ne.f32.partialorder %v262, 0.0
          %vm272 = vmand %vm254, %vm271
          %v273 = vsel %vm272, %v262, 1.0
          %v274 = vlaneseq
          %v275 = vand.u32 %v274, 127
          %v276 = vstv %s192
          %vm277 = vcmp.gt.s32.totalorder %v275, %v276
          %v278 = vsel %vm277, %v262, 0.0
          %v279 = vlaneseq
          %v280 = vshrl.u32 %v279, 7
          %v281 = vmov %v280
          %v282 = vld [vmem:[#allocation2] sm:$0xff]
          %v284 = vstv %s192
          %vm285 = vcmp.gt.s32.totalorder %v281, %v284
          %v286 = vsel %vm285, %v273, 1.0
          %v287 = vrcp.pop %v286
          %v288 = vmul.f32 %v286, %v287
          %v289 = vsub.f32 1.0, %v288
          %v290 = vmul.f32 %v287, %v289
          %v291 = vadd.f32 %v287, %v290
          %vm292 = vweird.f32 %v286
          %vm293 = vweird.f32 %v287
          %vm294 = vmor %vm292, %vm293
          %v295 = vsel %vm294, %v287, %v291
          %v296 = vand.u32 2147483647, %v286
          %vm297 = vcmp.eq.f32.partialorder %v296, 8.507059e+37
          %v298 = vand.u32 %v286, 2147483648
          %v299 = vor.u32 1.1754944e-38, %v298
          %v300 = vsel %vm297, %v299, %v295
          %v301 = vmul.f32 %v282, %v300
          %vm302 = vmand %vm285, %vm254
          %v303 = vsel %vm302, %v301, 0.0
          %304 = vadd.xlane.f32.xlu0 %v303
          %v305 = vpop.xlane.xlu0 %304
          %v306 = vmul.f32 %v305, %v278
          %v307 = vsub.f32 %v301, %v306
          %308 = vst [vmem:[#allocation2] sm:$0xff] %v307
        $region56: #{custom-call.9} parent=49 // loop_footer
          %s196 = sadd.s32 1, %s192
        $region57: #{custom-call.9} parent=49 // loop_footer_branch
          %191 = sbr.rel target = $region53
        $region58: #{custom-call.9} parent=49 // loop_exit
          _
        %v309 = vld [vmem:[#allocation9] sm:$0xff]
        %s310 = scalar_lea.vmem [#allocation9], 8
        %s311 = scalar_lea.vmem [#allocation9], 16
        %s312 = scalar_lea.vmem [#allocation9], 24
        %s313 = scalar_lea.vmem [#allocation9], 32
        %s314 = scalar_lea.vmem [#allocation9], 40
        %s315 = scalar_lea.vmem [#allocation9], 48
        %s316 = scalar_lea.vmem [#allocation9], 56
        %s317 = scalar_lea.vmem [#allocation9], 64
        %s318 = scalar_lea.vmem [#allocation9], 72
        %s319 = scalar_lea.vmem [#allocation9], 80
        %s320 = scalar_lea.vmem [#allocation9], 88
        %s321 = scalar_lea.vmem [#allocation9], 96
        %s322 = scalar_lea.vmem [#allocation9], 104
        %s323 = scalar_lea.vmem [#allocation9], 112
        %s324 = scalar_lea.vmem [#allocation9], 120
        %325 = vxpose.xlu0.b32.start [1/16] %v309, 128
        %326 = vxpose.xlu0.b32.cont [2/16] 0, 128
        %327 = vxpose.xlu0.b32.cont [3/16] 0, 128
        %328 = vxpose.xlu0.b32.cont [4/16] 0, 128
        %329 = vxpose.xlu0.b32.cont [5/16] 0, 128
        %330 = vxpose.xlu0.b32.cont [6/16] 0, 128
        %331 = vxpose.xlu0.b32.cont [7/16] 0, 128
        %332 = vxpose.xlu0.b32.cont [8/16] 0, 128
        %333 = vxpose.xlu0.b32.cont [9/16] 0, 128
        %334 = vxpose.xlu0.b32.cont [10/16] 0, 128
        %335 = vxpose.xlu0.b32.cont [11/16] 0, 128
        %336 = vxpose.xlu0.b32.cont [12/16] 0, 128
        %337 = vxpose.xlu0.b32.cont [13/16] 0, 128
        %338 = vxpose.xlu0.b32.cont [14/16] 0, 128
        %339 = vxpose.xlu0.b32.cont [15/16] 0, 128
        %340 = vxpose.xlu0.b32.end [16/16] 0, 128
        %v341 = vpop.trf.xlu0
        %v342 = vpop.trf.xlu0
        %v343 = vpop.trf.xlu0
        %v344 = vpop.trf.xlu0
        %v345 = vpop.trf.xlu0
        %v346 = vpop.trf.xlu0
        %v347 = vpop.trf.xlu0
        %v348 = vpop.trf.xlu0
        %v349 = vpop.trf.xlu0
        %v350 = vpop.trf.xlu0
        %v351 = vpop.trf.xlu0
        %v352 = vpop.trf.xlu0
        %v353 = vpop.trf.xlu0
        %v354 = vpop.trf.xlu0
        %v355 = vpop.trf.xlu0
        %v356 = vpop.trf.xlu0
        %357 = vst [vmem:[%s184] sm:$0x1] %v341
        %s359 = ssub.s32 16, 1
        %v360 = vld [vmem:[#allocation2] sm:%s359]
        %s362 = ssub.s32 16, 1
        %363 = vst [vmem:[%s159] sm:%s362] %v360
        %s365 = ssub.s32 16, 1
        %v366 = vld [vmem:[#allocation4] sm:%s365]
        %s368 = ssub.s32 16, 1
        %369 = vst [vmem:[%s165] sm:%s368] %v366
        %s371 = ssub.s32 16, 1
        %v372 = vld [vmem:[#allocation6] sm:%s371]
        %s374 = ssub.s32 16, 1
        %375 = vst [vmem:[%s172] sm:%s374] %v372
        %s376 = sand.u32 %s14, 1
        %s377 = sand.u32 %s14, 1
        %s378 = smul.addr %s377, 4
        %s379 = scalar_lea.vmem [#allocation3], %s378
        %s380 = sand.u32 %s38, 1
        %s381 = sand.u32 %s38, 1
        %s382 = smul.addr %s381, 4
        %s383 = scalar_lea.vmem [#allocation5], %s382
        %s384 = sand.u32 %s68, 1
        %s385 = scalar_lea.sflag [#allocation8], %s384
        %s386 = sand.u32 %s68, 1
        %s387 = smul.addr %s386, 4
        %s388 = scalar_lea.vmem [#allocation7], %s387
        %s389 = smul.addr %s18, 4
        %s390 = sadd.s32 %s19, %s389
        %s391 = smul.addr %s390, 4
        %s392 = scalar_lea.vmem %s1, %s391
        // Predicated region
        $region59: #{custom-call.9} parent=49 // pred_check
          _
        $region60: #{custom-call.9} parent=49 // pred_check_branch
          %394 = sbr.rel (0) target = $region62
        $region61: #{custom-call.9} parent=49 // pred_region
          // Predicated region
          $region63: #{custom-call.9} parent=61 // pred_check
            _
          $region64: #{custom-call.9} parent=61 // pred_check_branch
            %396 = sbr.rel target = $region66
          $region65: #{custom-call.9} parent=61 // pred_region
            // Predicated region
            $region78: #{custom-call.9} parent=65 // pred_check
              _
            $region79: #{custom-call.9} parent=65 // pred_check_branch
              %412 = sbr.rel (0) target = $region81
            $region80: #{custom-call.9} parent=65 // pred_region
              %s414 = ssub.s32 16, 1
              loop: start=0, step=1, limit=1
              $region82: #{custom-call.9} parent=80 // loop_pre_header
                _
              $region83: #{custom-call.9} parent=80 // loop_header
                %s416 = sphi 0, %s420
                %p417 = scmp.ge.s32.totalorder %s416, 1
                %s421 = sphi %s379, %s379
                %s422 = sphi %s392, %s392
              $region84: #{custom-call.9} parent=80 // loop_header_branch
                %419 = sbr.rel (%p417) target = $region88
              $region85: #{custom-call.9} parent=80 // loop_body
                %v423 = vld [vmem:[%s421] sm:%s414]
                %424 = vst [vmem:[%s422] sm:%s414] %v423
              $region86: #{custom-call.9} parent=80 // loop_footer
                %s420 = sadd.s32 1, %s416
              $region87: #{custom-call.9} parent=80 // loop_footer_branch
                %415 = sbr.rel target = $region83
              $region88: #{custom-call.9} parent=80 // loop_exit
                _
            $region81: #{custom-call.9} parent=65 // pred_fallthru
              _
          $region66: #{custom-call.9} parent=61 // pred_fallthru
            _
          // Predicated region
          $region67: #{custom-call.9} parent=61 // pred_check
            _
          $region68: #{custom-call.9} parent=61 // pred_check_branch
            %398 = sbr.rel (0) target = $region70
          $region69: #{custom-call.9} parent=61 // pred_region
            %s400 = ssub.s32 16, 1
            loop: start=0, step=1, limit=1
            $region71: #{custom-call.9} parent=69 // loop_pre_header
              _
            $region72: #{custom-call.9} parent=69 // loop_header
              %s402 = sphi 0, %s406
              %p403 = scmp.ge.s32.totalorder %s402, 1
              %s407 = sphi %s379, %s379
              %s408 = sphi %s392, %s392
            $region73: #{custom-call.9} parent=69 // loop_header_branch
              %405 = sbr.rel (%p403) target = $region77
            $region74: #{custom-call.9} parent=69 // loop_body
              %v409 = vld [vmem:[%s407] sm:%s400]
              %410 = vst [vmem:[%s408] sm:%s400] %v409
            $region75: #{custom-call.9} parent=69 // loop_footer
              %s406 = sadd.s32 1, %s402
            $region76: #{custom-call.9} parent=69 // loop_footer_branch
              %401 = sbr.rel target = $region72
            $region77: #{custom-call.9} parent=69 // loop_exit
              _
          $region70: #{custom-call.9} parent=61 // pred_fallthru
            _
        $region62: #{custom-call.9} parent=49 // pred_fallthru
          _
        %425 = vnop
        // Predicated region
        $region89: #{custom-call.9} parent=49 // pred_check
          %p426 = pneg %p48
        $region90: #{custom-call.9} parent=49 // pred_check_branch
          %428 = sbr.rel (%p426) target = $region92
        $region91: #{custom-call.9} parent=49 // pred_region
          %s429 = sshrl.u32 %s19, 3
          %s430 = sadd.s32 %s429, %s18
          %s431 = smul.addr %s430, 4
          %s432 = scalar_lea.vmem %s2, %s431
          // Predicated region
          $region93: #{custom-call.9} parent=91 // pred_check
            _
          $region94: #{custom-call.9} parent=91 // pred_check_branch
            %434 = sbr.rel (0) target = $region96
          $region95: #{custom-call.9} parent=91 // pred_region
            // Predicated region
            $region97: #{custom-call.9} parent=95 // pred_check
              _
            $region98: #{custom-call.9} parent=95 // pred_check_branch
              %436 = sbr.rel target = $region100
            $region99: #{custom-call.9} parent=95 // pred_region
              // Predicated region
              $region112: #{custom-call.9} parent=99 // pred_check
                _
              $region113: #{custom-call.9} parent=99 // pred_check_branch
                %452 = sbr.rel (0) target = $region115
              $region114: #{custom-call.9} parent=99 // pred_region
                %s454 = ssub.s32 16, 1
                loop: start=0, step=1, limit=1
                $region116: #{custom-call.9} parent=114 // loop_pre_header
                  _
                $region117: #{custom-call.9} parent=114 // loop_header
                  %s456 = sphi 0, %s460
                  %p457 = scmp.ge.s32.totalorder %s456, 1
                  %s461 = sphi %s383, %s383
                  %s462 = sphi %s432, %s432
                $region118: #{custom-call.9} parent=114 // loop_header_branch
                  %459 = sbr.rel (%p457) target = $region122
                $region119: #{custom-call.9} parent=114 // loop_body
                  %v463 = vld [vmem:[%s461] sm:%s454]
                  %464 = vst [vmem:[%s462] sm:%s454] %v463
                $region120: #{custom-call.9} parent=114 // loop_footer
                  %s460 = sadd.s32 1, %s456
                $region121: #{custom-call.9} parent=114 // loop_footer_branch
                  %455 = sbr.rel target = $region117
                $region122: #{custom-call.9} parent=114 // loop_exit
                  _
              $region115: #{custom-call.9} parent=99 // pred_fallthru
                _
            $region100: #{custom-call.9} parent=95 // pred_fallthru
              _
            // Predicated region
            $region101: #{custom-call.9} parent=95 // pred_check
              _
            $region102: #{custom-call.9} parent=95 // pred_check_branch
              %438 = sbr.rel (0) target = $region104
            $region103: #{custom-call.9} parent=95 // pred_region
              %s440 = ssub.s32 16, 1
              loop: start=0, step=1, limit=1
              $region105: #{custom-call.9} parent=103 // loop_pre_header
                _
              $region106: #{custom-call.9} parent=103 // loop_header
                %s442 = sphi 0, %s446
                %p443 = scmp.ge.s32.totalorder %s442, 1
                %s447 = sphi %s383, %s383
                %s448 = sphi %s432, %s432
              $region107: #{custom-call.9} parent=103 // loop_header_branch
                %445 = sbr.rel (%p443) target = $region111
              $region108: #{custom-call.9} parent=103 // loop_body
                %v449 = vld [vmem:[%s447] sm:%s440]
                %450 = vst [vmem:[%s448] sm:%s440] %v449
              $region109: #{custom-call.9} parent=103 // loop_footer
                %s446 = sadd.s32 1, %s442
              $region110: #{custom-call.9} parent=103 // loop_footer_branch
                %441 = sbr.rel target = $region106
              $region111: #{custom-call.9} parent=103 // loop_exit
                _
            $region104: #{custom-call.9} parent=95 // pred_fallthru
              _
          $region96: #{custom-call.9} parent=91 // pred_fallthru
            _
          %465 = vnop
        $region92: #{custom-call.9} parent=49 // pred_fallthru
          _
        // Predicated region
        $region123: #{custom-call.9} parent=49 // pred_check
          %p466 = pneg %p78
        $region124: #{custom-call.9} parent=49 // pred_check_branch
          %468 = sbr.rel (%p466) target = $region126
        $region125: #{custom-call.9} parent=49 // pred_region
          %s469 = sshrl.u32 %s19, 3
          %471 = vsyncadd %s385, 0
          %s472 = sadd.s32 %s469, %s18
          %s473 = smul.addr %s472, 4
          %s474 = scalar_lea.hbm %s3, %s473
          %s476 = sshll.u32 %s388, 4
          %s477 = int_to_ptr.vmem [resolvable:$true] %s476
          %s478 = sshll.u32 %s474, 4
          %s479 = int_to_ptr.hbm [resolvable:$true] %s478
          %481 = dma.vmem_to_hbm [thread:$0]  %s477, 64, %s479, %s385
        $region126: #{custom-call.9} parent=49 // pred_fallthru
          _
      $region50: #{custom-call.9} parent=5 // pred_fallthru
        _
      %p482 = scmp.le.s32.totalorder 2, %s9
      // Predicated region
      $region127: #{custom-call.9} parent=5 // pred_check
        %p483 = pneg %p482
      $region128: #{custom-call.9} parent=5 // pred_check_branch
        %485 = sbr.rel (%p483) target = $region130
      $region129: #{custom-call.9} parent=5 // pred_region
        %s486 = ssub.s32 %s9, 2
        %s487 = sand.u32 %s15, 1
        %s488 = sand.u32 %s15, 1
        %s489 = smul.addr %s488, 4
        %s490 = scalar_lea.vmem [#allocation3], %s489
        // Predicated region
        $region131: #{custom-call.9} parent=129 // pred_check
          %p491 = pneg %p54
        $region132: #{custom-call.9} parent=129 // pred_check_branch
          %493 = sbr.rel (%p491) target = $region134
        $region133: #{custom-call.9} parent=129 // pred_region
          %s494 = sand.u32 %s39, 1
          %s495 = sand.u32 %s39, 1
          %s496 = smul.addr %s495, 4
          %s497 = scalar_lea.vmem [#allocation5], %s496
        $region134: #{custom-call.9} parent=129 // pred_fallthru
          _
        // Predicated region
        $region135: #{custom-call.9} parent=129 // pred_check
          %p498 = pneg %p84
        $region136: #{custom-call.9} parent=129 // pred_check_branch
          %500 = sbr.rel (%p498) target = $region138
        $region137: #{custom-call.9} parent=129 // pred_region
          %s501 = sand.u32 %s69, 1
          %s502 = scalar_lea.sflag [#allocation8], %s501
          %s503 = sand.u32 %s69, 1
          %s504 = smul.addr %s503, 4
          %s505 = scalar_lea.vmem [#allocation7], %s504
          %507 = dma.done %s502, 64
        $region138: #{custom-call.9} parent=129 // pred_fallthru
          _
      $region130: #{custom-call.9} parent=5 // pred_fallthru
        _
    $region6: #{custom-call.9} parent=1 // loop_footer
      %s13 = sadd.s32 1, %s9
    $region7: #{custom-call.9} parent=1 // loop_footer_branch
      %8 = sbr.rel target = $region3
    $region8: #{custom-call.9} parent=1 // loop_exit
      _
    %508 = vsyncpa [#allocation8], 1
    %s509 = scalar_lea.sflag [#allocation8], 1
    %510 = vsyncpa %s509, 1

// kernel: ansatz_fb_forward.1
$region0: #{ansatz_fb_forward.1}
  #allocation0 [shape = 'u32[]', space=smem, size = 0x4, offset = 0x4, fixed_abs, tag = 'smem constant byte address 0x4 - core index']
  #allocation1 [shape = 'u32[72,128]{1,0:T(1,128)}', space=vmem, size = 0x9000, scoped, tag = 'internal scratch']
  %s0 = inlined_call_operand.vmem [shape: f32[8,8,3], index: 0, kind: input, shape index: {}]
  %s1 = inlined_call_operand.vmem [shape: f32[2,3], index: 1, kind: input, shape index: {}]
  %s2 = inlined_call_operand.hbm [shape: f32[256,1], index: 2, kind: input, shape index: {}]
  %s3 = inlined_call_operand.vmem [shape: f32[32,32], index: 3, kind: input, shape index: {}]
  %s4 = inlined_call_operand.vmem [shape: f32[32,32], index: 4, kind: input, shape index: {}]
  %s5 = inlined_call_operand.vmem [shape: f32[32,256], index: 5, kind: input, shape index: {}]
  %s6 = inlined_call_operand.vmem [shape: f32[32,256], index: 6, kind: input, shape index: {}]
  %s7 = inlined_call_operand.vmem [shape: f32[32,16], index: 7, kind: input, shape index: {}]
  %s8 = inlined_call_operand.vmem [shape: f32[1,16], index: 8, kind: input, shape index: {}]
  %s9 = inlined_call_operand.vmem [shape: f32[2,64,16], index: 9, kind: input, shape index: {}]
  %s10 = inlined_call_operand.vmem [shape: f32[2,1,16], index: 10, kind: input, shape index: {}]
  %s11 = inlined_call_operand.vmem [shape: f32[4,8], index: 11, kind: input, shape index: {}]
  %s12 = inlined_call_operand.vmem [shape: f32[1,8], index: 12, kind: input, shape index: {}]
  %s13 = inlined_call_operand.vmem [shape: f32[2,8,8], index: 13, kind: input, shape index: {}]
  %s14 = inlined_call_operand.vmem [shape: f32[2,1,8], index: 14, kind: input, shape index: {}]
  %s15 = inlined_call_operand.vmem [shape: f32[64,16], index: 15, kind: input, shape index: {}]
  %s16 = inlined_call_operand.vmem [shape: f32[1,16], index: 16, kind: input, shape index: {}]
  %s17 = inlined_call_operand.vmem [shape: f32[16,16], index: 17, kind: input, shape index: {}]
  %s18 = inlined_call_operand.vmem [shape: f32[1,16], index: 18, kind: input, shape index: {}]
  %s19 = inlined_call_operand.vmem [shape: f32[16,16], index: 19, kind: input, shape index: {}]
  %s20 = inlined_call_operand.vmem [shape: f32[1,16], index: 20, kind: input, shape index: {}]
  %s21 = inlined_call_operand.vmem [shape: f32[8,4,16], index: 21, kind: output, shape index: {0}]
  %s22 = inlined_call_operand.vmem [shape: f32[8,4,16], index: 22, kind: output, shape index: {1}]
  %23 = xla_tuple %s21, %s22
  %s24 = sld [smem:[#allocation0]]
  $region129: #{ansatz_fb_forward.1} parent=0
    _
  %s26 = ssub.s32 1, %s24
  %s27 = scalar_select 0, %s26, %s24
  $region1: #{ansatz_fb_forward.1} parent=0
    #allocation2 [shape = 'u8[131072]{0}', space=vmem, size = 0x20000, scoped, tag = 'input window, operand 2, single buffered']
    #allocation3 [shape = 's32[2]{0}', space=sflag, size = 0x8, scoped, tag = 'scoped memory for ansatz_fb_forward.1']
    %28 = vsyncpa [#allocation3], 0
    loop: start=0, step=1, limit=4
    $region2: #{ansatz_fb_forward.1} parent=1 // loop_pre_header
      _
    $region3: #{ansatz_fb_forward.1} parent=1 // loop_header
      %s30 = sphi 0, %s34
      %p31 = scmp.ge.s32.totalorder %s30, 4
      %s40 = sphi 0, %s42
      %s43 = sphi 0, %s40
      %s44 = sphi 0, %s43
      %s60 = sphi 0, %s44
      %s64 = sphi 0, %s64
      %s66 = sphi 0, %s64
      %s67 = sphi 0, %s66
      %s81 = sphi 0, %s67
      %s85 = sphi 0, %s85
      %s87 = sphi 0, %s85
      %s88 = sphi 0, %s87
      %s102 = sphi 0, %s88
      %s106 = sphi 0, %s106
      %s108 = sphi 0, %s106
      %s109 = sphi 0, %s108
      %s123 = sphi 0, %s109
      %s127 = sphi 0, %s127
      %s129 = sphi 0, %s127
      %s130 = sphi 0, %s129
      %s144 = sphi 0, %s130
      %s148 = sphi 0, %s148
      %s150 = sphi 0, %s148
      %s151 = sphi 0, %s150
      %s165 = sphi 0, %s151
      %s169 = sphi 0, %s169
      %s171 = sphi 0, %s169
      %s172 = sphi 0, %s171
      %s186 = sphi 0, %s172
      %s190 = sphi 0, %s190
      %s192 = sphi 0, %s190
      %s193 = sphi 0, %s192
      %s207 = sphi 0, %s193
      %s211 = sphi 0, %s211
      %s213 = sphi 0, %s211
      %s214 = sphi 0, %s213
      %s228 = sphi 0, %s214
      %s232 = sphi 0, %s232
      %s234 = sphi 0, %s232
      %s235 = sphi 0, %s234
      %s249 = sphi 0, %s235
      %s253 = sphi 0, %s253
      %s255 = sphi 0, %s253
      %s256 = sphi 0, %s255
      %s270 = sphi 0, %s256
      %s274 = sphi 0, %s274
      %s276 = sphi 0, %s274
      %s277 = sphi 0, %s276
      %s291 = sphi 0, %s277
      %s295 = sphi 0, %s295
      %s297 = sphi 0, %s295
      %s298 = sphi 0, %s297
      %s312 = sphi 0, %s298
      %s316 = sphi 0, %s316
      %s318 = sphi 0, %s316
      %s319 = sphi 0, %s318
      %s333 = sphi 0, %s319
      %s337 = sphi 0, %s337
      %s339 = sphi 0, %s337
      %s340 = sphi 0, %s339
      %s354 = sphi 0, %s340
      %s358 = sphi 0, %s358
      %s360 = sphi 0, %s358
      %s361 = sphi 0, %s360
      %s375 = sphi 0, %s361
      %s379 = sphi 0, %s379
      %s381 = sphi 0, %s379
      %s382 = sphi 0, %s381
      %s396 = sphi 0, %s382
      %s400 = sphi 0, %s400
      %s402 = sphi 0, %s400
      %s403 = sphi 0, %s402
      %s417 = sphi 0, %s403
      %s421 = sphi 0, %s421
      %s423 = sphi 0, %s421
      %s424 = sphi 0, %s423
      %s438 = sphi 0, %s424
      %s442 = sphi 0, %s442
      %s444 = sphi 0, %s442
      %s445 = sphi 0, %s444
      %s459 = sphi 0, %s445
      %s463 = sphi 0, %s463
      %s465 = sphi 0, %s463
      %s466 = sphi 0, %s465
      %s480 = sphi 0, %s466
      %s486 = sphi 0, %s488
      %s489 = sphi 0, %s486
      %s490 = sphi 0, %s489
      %s506 = sphi 0, %s490
      %s512 = sphi 0, %s514
      %s515 = sphi 0, %s512
      %s516 = sphi 0, %s515
      %s532 = sphi 0, %s516
    $region4: #{ansatz_fb_forward.1} parent=1 // loop_header_branch
      %33 = sbr.rel (%p31) target = $region8
    $region5: #{ansatz_fb_forward.1} parent=1 // loop_body
      %s35 = ssub.s32 %s30, 1
      %s36 = ssub.s32 %s30, 2
      %s37 = sadd.s32 %s30, 1
      %s38 = ssub.s32 %s30, %s37
      %p39 = scmp.eq.s32.totalorder %s38, 0
      %s41 = sadd.s32 %s40, 1
      %s42 = scalar_select %p39, %s40, %s41
      %p45 = pneg %p39
      %p46 = scmp.eq.s32.totalorder %s30, 1
      %p47 = por %p45, %p46
      %p48 = scmp.ne.s32.totalorder %s40, %s43
      %p49 = scmp.eq.s32.totalorder %s30, 0
      %p50 = por %p48, %p49
      %p51 = scmp.ne.s32.totalorder %s40, %s43
      %p52 = scmp.eq.s32.totalorder %s35, 1
      %p53 = por %p51, %p52
      %p54 = scmp.ne.s32.totalorder %s43, %s44
      %p55 = scmp.eq.s32.totalorder %s35, 0
      %p56 = por %p54, %p55
      %p57 = scmp.ne.s32.totalorder %s43, %s44
      %p58 = scmp.eq.s32.totalorder %s36, 1
      %p59 = por %p57, %p58
      %p61 = scmp.ne.s32.totalorder %s44, %s60
      %p62 = scmp.eq.s32.totalorder %s36, 0
      %p63 = por %p61, %p62
      %s65 = sadd.s32 %s64, 1
      %p68 = scmp.eq.s32.totalorder %s30, 1
      %p69 = scmp.ne.s32.totalorder %s64, %s66
      %p70 = scmp.eq.s32.totalorder %s30, 0
      %p71 = por %p69, %p70
      %p72 = scmp.ne.s32.totalorder %s64, %s66
      %p73 = scmp.eq.s32.totalorder %s35, 1
      %p74 = por %p72, %p73
      %p75 = scmp.ne.s32.totalorder %s66, %s67
      %p76 = scmp.eq.s32.totalorder %s35, 0
      %p77 = por %p75, %p76
      %p78 = scmp.ne.s32.totalorder %s66, %s67
      %p79 = scmp.eq.s32.totalorder %s36, 1
      %p80 = por %p78, %p79
      %p82 = scmp.ne.s32.totalorder %s67, %s81
      %p83 = scmp.eq.s32.totalorder %s36, 0
      %p84 = por %p82, %p83
      %s86 = sadd.s32 %s85, 1
      %p89 = scmp.eq.s32.totalorder %s30, 1
      %p90 = scmp.ne.s32.totalorder %s85, %s87
      %p91 = scmp.eq.s32.totalorder %s30, 0
      %p92 = por %p90, %p91
      %p93 = scmp.ne.s32.totalorder %s85, %s87
      %p94 = scmp.eq.s32.totalorder %s35, 1
      %p95 = por %p93, %p94
      %p96 = scmp.ne.s32.totalorder %s87, %s88
      %p97 = scmp.eq.s32.totalorder %s35, 0
      %p98 = por %p96, %p97
      %p99 = scmp.ne.s32.totalorder %s87, %s88
      %p100 = scmp.eq.s32.totalorder %s36, 1
      %p101 = por %p99, %p100
      %p103 = scmp.ne.s32.totalorder %s88, %s102
      %p104 = scmp.eq.s32.totalorder %s36, 0
      %p105 = por %p103, %p104
      %s107 = sadd.s32 %s106, 1
      %p110 = scmp.eq.s32.totalorder %s30, 1
      %p111 = scmp.ne.s32.totalorder %s106, %s108
      %p112 = scmp.eq.s32.totalorder %s30, 0
      %p113 = por %p111, %p112
      %p114 = scmp.ne.s32.totalorder %s106, %s108
      %p115 = scmp.eq.s32.totalorder %s35, 1
      %p116 = por %p114, %p115
      %p117 = scmp.ne.s32.totalorder %s108, %s109
      %p118 = scmp.eq.s32.totalorder %s35, 0
      %p119 = por %p117, %p118
      %p120 = scmp.ne.s32.totalorder %s108, %s109
      %p121 = scmp.eq.s32.totalorder %s36, 1
      %p122 = por %p120, %p121
      %p124 = scmp.ne.s32.totalorder %s109, %s123
      %p125 = scmp.eq.s32.totalorder %s36, 0
      %p126 = por %p124, %p125
      %s128 = sadd.s32 %s127, 1
      %p131 = scmp.eq.s32.totalorder %s30, 1
      %p132 = scmp.ne.s32.totalorder %s127, %s129
      %p133 = scmp.eq.s32.totalorder %s30, 0
      %p134 = por %p132, %p133
      %p135 = scmp.ne.s32.totalorder %s127, %s129
      %p136 = scmp.eq.s32.totalorder %s35, 1
      %p137 = por %p135, %p136
      %p138 = scmp.ne.s32.totalorder %s129, %s130
      %p139 = scmp.eq.s32.totalorder %s35, 0
      %p140 = por %p138, %p139
      %p141 = scmp.ne.s32.totalorder %s129, %s130
      %p142 = scmp.eq.s32.totalorder %s36, 1
      %p143 = por %p141, %p142
      %p145 = scmp.ne.s32.totalorder %s130, %s144
      %p146 = scmp.eq.s32.totalorder %s36, 0
      %p147 = por %p145, %p146
      %s149 = sadd.s32 %s148, 1
      %p152 = scmp.eq.s32.totalorder %s30, 1
      %p153 = scmp.ne.s32.totalorder %s148, %s150
      %p154 = scmp.eq.s32.totalorder %s30, 0
      %p155 = por %p153, %p154
      %p156 = scmp.ne.s32.totalorder %s148, %s150
      %p157 = scmp.eq.s32.totalorder %s35, 1
      %p158 = por %p156, %p157
      %p159 = scmp.ne.s32.totalorder %s150, %s151
      %p160 = scmp.eq.s32.totalorder %s35, 0
      %p161 = por %p159, %p160
      %p162 = scmp.ne.s32.totalorder %s150, %s151
      %p163 = scmp.eq.s32.totalorder %s36, 1
      %p164 = por %p162, %p163
      %p166 = scmp.ne.s32.totalorder %s151, %s165
      %p167 = scmp.eq.s32.totalorder %s36, 0
      %p168 = por %p166, %p167
      %s170 = sadd.s32 %s169, 1
      %p173 = scmp.eq.s32.totalorder %s30, 1
      %p174 = scmp.ne.s32.totalorder %s169, %s171
      %p175 = scmp.eq.s32.totalorder %s30, 0
      %p176 = por %p174, %p175
      %p177 = scmp.ne.s32.totalorder %s169, %s171
      %p178 = scmp.eq.s32.totalorder %s35, 1
      %p179 = por %p177, %p178
      %p180 = scmp.ne.s32.totalorder %s171, %s172
      %p181 = scmp.eq.s32.totalorder %s35, 0
      %p182 = por %p180, %p181
      %p183 = scmp.ne.s32.totalorder %s171, %s172
      %p184 = scmp.eq.s32.totalorder %s36, 1
      %p185 = por %p183, %p184
      %p187 = scmp.ne.s32.totalorder %s172, %s186
      %p188 = scmp.eq.s32.totalorder %s36, 0
      %p189 = por %p187, %p188
      %s191 = sadd.s32 %s190, 1
      %p194 = scmp.eq.s32.totalorder %s30, 1
      %p195 = scmp.ne.s32.totalorder %s190, %s192
      %p196 = scmp.eq.s32.totalorder %s30, 0
      %p197 = por %p195, %p196
      %p198 = scmp.ne.s32.totalorder %s190, %s192
      %p199 = scmp.eq.s32.totalorder %s35, 1
      %p200 = por %p198, %p199
      %p201 = scmp.ne.s32.totalorder %s192, %s193
      %p202 = scmp.eq.s32.totalorder %s35, 0
      %p203 = por %p201, %p202
      %p204 = scmp.ne.s32.totalorder %s192, %s193
      %p205 = scmp.eq.s32.totalorder %s36, 1
      %p206 = por %p204, %p205
      %p208 = scmp.ne.s32.totalorder %s193, %s207
      %p209 = scmp.eq.s32.totalorder %s36, 0
      %p210 = por %p208, %p209
      %s212 = sadd.s32 %s211, 1
      %p215 = scmp.eq.s32.totalorder %s30, 1
      %p216 = scmp.ne.s32.totalorder %s211, %s213
      %p217 = scmp.eq.s32.totalorder %s30, 0
      %p218 = por %p216, %p217
      %p219 = scmp.ne.s32.totalorder %s211, %s213
      %p220 = scmp.eq.s32.totalorder %s35, 1
      %p221 = por %p219, %p220
      %p222 = scmp.ne.s32.totalorder %s213, %s214
      %p223 = scmp.eq.s32.totalorder %s35, 0
      %p224 = por %p222, %p223
      %p225 = scmp.ne.s32.totalorder %s213, %s214
      %p226 = scmp.eq.s32.totalorder %s36, 1
      %p227 = por %p225, %p226
      %p229 = scmp.ne.s32.totalorder %s214, %s228
      %p230 = scmp.eq.s32.totalorder %s36, 0
      %p231 = por %p229, %p230
      %s233 = sadd.s32 %s232, 1
      %p236 = scmp.eq.s32.totalorder %s30, 1
      %p237 = scmp.ne.s32.totalorder %s232, %s234
      %p238 = scmp.eq.s32.totalorder %s30, 0
      %p239 = por %p237, %p238
      %p240 = scmp.ne.s32.totalorder %s232, %s234
      %p241 = scmp.eq.s32.totalorder %s35, 1
      %p242 = por %p240, %p241
      %p243 = scmp.ne.s32.totalorder %s234, %s235
      %p244 = scmp.eq.s32.totalorder %s35, 0
      %p245 = por %p243, %p244
      %p246 = scmp.ne.s32.totalorder %s234, %s235
      %p247 = scmp.eq.s32.totalorder %s36, 1
      %p248 = por %p246, %p247
      %p250 = scmp.ne.s32.totalorder %s235, %s249
      %p251 = scmp.eq.s32.totalorder %s36, 0
      %p252 = por %p250, %p251
      %s254 = sadd.s32 %s253, 1
      %p257 = scmp.eq.s32.totalorder %s30, 1
      %p258 = scmp.ne.s32.totalorder %s253, %s255
      %p259 = scmp.eq.s32.totalorder %s30, 0
      %p260 = por %p258, %p259
      %p261 = scmp.ne.s32.totalorder %s253, %s255
      %p262 = scmp.eq.s32.totalorder %s35, 1
      %p263 = por %p261, %p262
      %p264 = scmp.ne.s32.totalorder %s255, %s256
      %p265 = scmp.eq.s32.totalorder %s35, 0
      %p266 = por %p264, %p265
      %p267 = scmp.ne.s32.totalorder %s255, %s256
      %p268 = scmp.eq.s32.totalorder %s36, 1
      %p269 = por %p267, %p268
      %p271 = scmp.ne.s32.totalorder %s256, %s270
      %p272 = scmp.eq.s32.totalorder %s36, 0
      %p273 = por %p271, %p272
      %s275 = sadd.s32 %s274, 1
      %p278 = scmp.eq.s32.totalorder %s30, 1
      %p279 = scmp.ne.s32.totalorder %s274, %s276
      %p280 = scmp.eq.s32.totalorder %s30, 0
      %p281 = por %p279, %p280
      %p282 = scmp.ne.s32.totalorder %s274, %s276
      %p283 = scmp.eq.s32.totalorder %s35, 1
      %p284 = por %p282, %p283
      %p285 = scmp.ne.s32.totalorder %s276, %s277
      %p286 = scmp.eq.s32.totalorder %s35, 0
      %p287 = por %p285, %p286
      %p288 = scmp.ne.s32.totalorder %s276, %s277
      %p289 = scmp.eq.s32.totalorder %s36, 1
      %p290 = por %p288, %p289
      %p292 = scmp.ne.s32.totalorder %s277, %s291
      %p293 = scmp.eq.s32.totalorder %s36, 0
      %p294 = por %p292, %p293
      %s296 = sadd.s32 %s295, 1
      %p299 = scmp.eq.s32.totalorder %s30, 1
      %p300 = scmp.ne.s32.totalorder %s295, %s297
      %p301 = scmp.eq.s32.totalorder %s30, 0
      %p302 = por %p300, %p301
      %p303 = scmp.ne.s32.totalorder %s295, %s297
      %p304 = scmp.eq.s32.totalorder %s35, 1
      %p305 = por %p303, %p304
      %p306 = scmp.ne.s32.totalorder %s297, %s298
      %p307 = scmp.eq.s32.totalorder %s35, 0
      %p308 = por %p306, %p307
      %p309 = scmp.ne.s32.totalorder %s297, %s298
      %p310 = scmp.eq.s32.totalorder %s36, 1
      %p311 = por %p309, %p310
      %p313 = scmp.ne.s32.totalorder %s298, %s312
      %p314 = scmp.eq.s32.totalorder %s36, 0
      %p315 = por %p313, %p314
      %s317 = sadd.s32 %s316, 1
      %p320 = scmp.eq.s32.totalorder %s30, 1
      %p321 = scmp.ne.s32.totalorder %s316, %s318
      %p322 = scmp.eq.s32.totalorder %s30, 0
      %p323 = por %p321, %p322
      %p324 = scmp.ne.s32.totalorder %s316, %s318
      %p325 = scmp.eq.s32.totalorder %s35, 1
      %p326 = por %p324, %p325
      %p327 = scmp.ne.s32.totalorder %s318, %s319
      %p328 = scmp.eq.s32.totalorder %s35, 0
      %p329 = por %p327, %p328
      %p330 = scmp.ne.s32.totalorder %s318, %s319
      %p331 = scmp.eq.s32.totalorder %s36, 1
      %p332 = por %p330, %p331
      %p334 = scmp.ne.s32.totalorder %s319, %s333
      %p335 = scmp.eq.s32.totalorder %s36, 0
      %p336 = por %p334, %p335
      %s338 = sadd.s32 %s337, 1
      %p341 = scmp.eq.s32.totalorder %s30, 1
      %p342 = scmp.ne.s32.totalorder %s337, %s339
      %p343 = scmp.eq.s32.totalorder %s30, 0
      %p344 = por %p342, %p343
      %p345 = scmp.ne.s32.totalorder %s337, %s339
      %p346 = scmp.eq.s32.totalorder %s35, 1
      %p347 = por %p345, %p346
      %p348 = scmp.ne.s32.totalorder %s339, %s340
      %p349 = scmp.eq.s32.totalorder %s35, 0
      %p350 = por %p348, %p349
      %p351 = scmp.ne.s32.totalorder %s339, %s340
      %p352 = scmp.eq.s32.totalorder %s36, 1
      %p353 = por %p351, %p352
      %p355 = scmp.ne.s32.totalorder %s340, %s354
      %p356 = scmp.eq.s32.totalorder %s36, 0
      %p357 = por %p355, %p356
      %s359 = sadd.s32 %s358, 1
      %p362 = scmp.eq.s32.totalorder %s30, 1
      %p363 = scmp.ne.s32.totalorder %s358, %s360
      %p364 = scmp.eq.s32.totalorder %s30, 0
      %p365 = por %p363, %p364
      %p366 = scmp.ne.s32.totalorder %s358, %s360
      %p367 = scmp.eq.s32.totalorder %s35, 1
      %p368 = por %p366, %p367
      %p369 = scmp.ne.s32.totalorder %s360, %s361
      %p370 = scmp.eq.s32.totalorder %s35, 0
      %p371 = por %p369, %p370
      %p372 = scmp.ne.s32.totalorder %s360, %s361
      %p373 = scmp.eq.s32.totalorder %s36, 1
      %p374 = por %p372, %p373
      %p376 = scmp.ne.s32.totalorder %s361, %s375
      %p377 = scmp.eq.s32.totalorder %s36, 0
      %p378 = por %p376, %p377
      %s380 = sadd.s32 %s379, 1
      %p383 = scmp.eq.s32.totalorder %s30, 1
      %p384 = scmp.ne.s32.totalorder %s379, %s381
      %p385 = scmp.eq.s32.totalorder %s30, 0
      %p386 = por %p384, %p385
      %p387 = scmp.ne.s32.totalorder %s379, %s381
      %p388 = scmp.eq.s32.totalorder %s35, 1
      %p389 = por %p387, %p388
      %p390 = scmp.ne.s32.totalorder %s381, %s382
      %p391 = scmp.eq.s32.totalorder %s35, 0
      %p392 = por %p390, %p391
      %p393 = scmp.ne.s32.totalorder %s381, %s382
      %p394 = scmp.eq.s32.totalorder %s36, 1
      %p395 = por %p393, %p394
      %p397 = scmp.ne.s32.totalorder %s382, %s396
      %p398 = scmp.eq.s32.totalorder %s36, 0
      %p399 = por %p397, %p398
      %s401 = sadd.s32 %s400, 1
      %p404 = scmp.eq.s32.totalorder %s30, 1
      %p405 = scmp.ne.s32.totalorder %s400, %s402
      %p406 = scmp.eq.s32.totalorder %s30, 0
      %p407 = por %p405, %p406
      %p408 = scmp.ne.s32.totalorder %s400, %s402
      %p409 = scmp.eq.s32.totalorder %s35, 1
      %p410 = por %p408, %p409
      %p411 = scmp.ne.s32.totalorder %s402, %s403
      %p412 = scmp.eq.s32.totalorder %s35, 0
      %p413 = por %p411, %p412
      %p414 = scmp.ne.s32.totalorder %s402, %s403
      %p415 = scmp.eq.s32.totalorder %s36, 1
      %p416 = por %p414, %p415
      %p418 = scmp.ne.s32.totalorder %s403, %s417
      %p419 = scmp.eq.s32.totalorder %s36, 0
      %p420 = por %p418, %p419
      %s422 = sadd.s32 %s421, 1
      %p425 = scmp.eq.s32.totalorder %s30, 1
      %p426 = scmp.ne.s32.totalorder %s421, %s423
      %p427 = scmp.eq.s32.totalorder %s30, 0
      %p428 = por %p426, %p427
      %p429 = scmp.ne.s32.totalorder %s421, %s423
      %p430 = scmp.eq.s32.totalorder %s35, 1
      %p431 = por %p429, %p430
      %p432 = scmp.ne.s32.totalorder %s423, %s424
      %p433 = scmp.eq.s32.totalorder %s35, 0
      %p434 = por %p432, %p433
      %p435 = scmp.ne.s32.totalorder %s423, %s424
      %p436 = scmp.eq.s32.totalorder %s36, 1
      %p437 = por %p435, %p436
      %p439 = scmp.ne.s32.totalorder %s424, %s438
      %p440 = scmp.eq.s32.totalorder %s36, 0
      %p441 = por %p439, %p440
      %s443 = sadd.s32 %s442, 1
      %p446 = scmp.eq.s32.totalorder %s30, 1
      %p447 = scmp.ne.s32.totalorder %s442, %s444
      %p448 = scmp.eq.s32.totalorder %s30, 0
      %p449 = por %p447, %p448
      %p450 = scmp.ne.s32.totalorder %s442, %s444
      %p451 = scmp.eq.s32.totalorder %s35, 1
      %p452 = por %p450, %p451
      %p453 = scmp.ne.s32.totalorder %s444, %s445
      %p454 = scmp.eq.s32.totalorder %s35, 0
      %p455 = por %p453, %p454
      %p456 = scmp.ne.s32.totalorder %s444, %s445
      %p457 = scmp.eq.s32.totalorder %s36, 1
      %p458 = por %p456, %p457
      %p460 = scmp.ne.s32.totalorder %s445, %s459
      %p461 = scmp.eq.s32.totalorder %s36, 0
      %p462 = por %p460, %p461
      %s464 = sadd.s32 %s463, 1
      %p467 = scmp.eq.s32.totalorder %s30, 1
      %p468 = scmp.ne.s32.totalorder %s463, %s465
      %p469 = scmp.eq.s32.totalorder %s30, 0
      %p470 = por %p468, %p469
      %p471 = scmp.ne.s32.totalorder %s463, %s465
      %p472 = scmp.eq.s32.totalorder %s35, 1
      %p473 = por %p471, %p472
      %p474 = scmp.ne.s32.totalorder %s465, %s466
      %p475 = scmp.eq.s32.totalorder %s35, 0
      %p476 = por %p474, %p475
      %p477 = scmp.ne.s32.totalorder %s465, %s466
      %p478 = scmp.eq.s32.totalorder %s36, 1
      %p479 = por %p477, %p478
      %p481 = scmp.ne.s32.totalorder %s466, %s480
      %p482 = scmp.eq.s32.totalorder %s36, 0
      %p483 = por %p481, %p482
      %s484 = ssub.s32 %s30, %s37
      %p485 = scmp.eq.s32.totalorder %s484, 0
      %s487 = sadd.s32 %s486, 1
      %s488 = scalar_select %p485, %s486, %s487
      %p491 = pneg %p485
      %p492 = scmp.eq.s32.totalorder %s30, 1
      %p493 = por %p491, %p492
      %p494 = scmp.ne.s32.totalorder %s486, %s489
      %p495 = scmp.eq.s32.totalorder %s30, 0
      %p496 = por %p494, %p495
      %p497 = scmp.ne.s32.totalorder %s486, %s489
      %p498 = scmp.eq.s32.totalorder %s35, 1
      %p499 = por %p497, %p498
      %p500 = scmp.ne.s32.totalorder %s489, %s490
      %p501 = scmp.eq.s32.totalorder %s35, 0
      %p502 = por %p500, %p501
      %p503 = scmp.ne.s32.totalorder %s489, %s490
      %p504 = scmp.eq.s32.totalorder %s36, 1
      %p505 = por %p503, %p504
      %p507 = scmp.ne.s32.totalorder %s490, %s506
      %p508 = scmp.eq.s32.totalorder %s36, 0
      %p509 = por %p507, %p508
      %s510 = ssub.s32 %s30, %s37
      %p511 = scmp.eq.s32.totalorder %s510, 0
      %s513 = sadd.s32 %s512, 1
      %s514 = scalar_select %p511, %s512, %s513
      %p517 = pneg %p511
      %p518 = scmp.eq.s32.totalorder %s30, 1
      %p519 = por %p517, %p518
      %p520 = scmp.ne.s32.totalorder %s512, %s515
      %p521 = scmp.eq.s32.totalorder %s30, 0
      %p522 = por %p520, %p521
      %p523 = scmp.ne.s32.totalorder %s512, %s515
      %p524 = scmp.eq.s32.totalorder %s35, 1
      %p525 = por %p523, %p524
      %p526 = scmp.ne.s32.totalorder %s515, %s516
      %p527 = scmp.eq.s32.totalorder %s35, 0
      %p528 = por %p526, %p527
      %p529 = scmp.ne.s32.totalorder %s515, %s516
      %p530 = scmp.eq.s32.totalorder %s36, 1
      %p531 = por %p529, %p530
      %p533 = scmp.ne.s32.totalorder %s516, %s532
      %p534 = scmp.eq.s32.totalorder %s36, 0
      %p535 = por %p533, %p534
      %p536 = scmp.le.s32.totalorder 1, %s30
      %p537 = scmp.lt.s32.totalorder %s30, 3
      %p538 = pnand %p536, %p537
      %p539 = pneg %p538
      // Predicated region
      $region9: #{ansatz_fb_forward.1} parent=5 // pred_check
        _
      $region10: #{ansatz_fb_forward.1} parent=5 // pred_check_branch
        %541 = sbr.rel (%p538) target = $region12
      $region11: #{ansatz_fb_forward.1} parent=5 // pred_region
        %s542 = ssub.s32 %s30, 1
        // Predicated region
        $region13: #{ansatz_fb_forward.1} parent=11 // pred_check
          %p543 = pneg %p77
        $region14: #{ansatz_fb_forward.1} parent=11 // pred_check_branch
          %545 = sbr.rel (%p543) target = $region16
        $region15: #{ansatz_fb_forward.1} parent=11 // pred_region
          _
        $region16: #{ansatz_fb_forward.1} parent=11 // pred_fallthru
          _
        // Predicated region
        $region17: #{ansatz_fb_forward.1} parent=11 // pred_check
          %p546 = pneg %p98
        $region18: #{ansatz_fb_forward.1} parent=11 // pred_check_branch
          %548 = sbr.rel (%p546) target = $region20
        $region19: #{ansatz_fb_forward.1} parent=11 // pred_region
          %550 = vsyncadd [#allocation3], 0
          %s551 = sshll.u32 %s2, 4
          %s552 = int_to_ptr.hbm [resolvable:$true] %s551
          %s553 = sshll.u32 [#allocation2], 4
          %s554 = int_to_ptr.vmem [resolvable:$true] %s553
          %559 = dma.hbm_to_vmem [thread:$0]  %s552, 4096, %s554, [#allocation3], 128, 128, 8
        $region20: #{ansatz_fb_forward.1} parent=11 // pred_fallthru
          _
        // Predicated region
        $region21: #{ansatz_fb_forward.1} parent=11 // pred_check
          %p560 = pneg %p119
        $region22: #{ansatz_fb_forward.1} parent=11 // pred_check_branch
          %562 = sbr.rel (%p560) target = $region24
        $region23: #{ansatz_fb_forward.1} parent=11 // pred_region
          _
        $region24: #{ansatz_fb_forward.1} parent=11 // pred_fallthru
          _
        // Predicated region
        $region25: #{ansatz_fb_forward.1} parent=11 // pred_check
          %p563 = pneg %p140
        $region26: #{ansatz_fb_forward.1} parent=11 // pred_check_branch
          %565 = sbr.rel (%p563) target = $region28
        $region27: #{ansatz_fb_forward.1} parent=11 // pred_region
          _
        $region28: #{ansatz_fb_forward.1} parent=11 // pred_fallthru
          _
        // Predicated region
        $region29: #{ansatz_fb_forward.1} parent=11 // pred_check
          %p566 = pneg %p161
        $region30: #{ansatz_fb_forward.1} parent=11 // pred_check_branch
          %568 = sbr.rel (%p566) target = $region32
        $region31: #{ansatz_fb_forward.1} parent=11 // pred_region
          _
        $region32: #{ansatz_fb_forward.1} parent=11 // pred_fallthru
          _
        // Predicated region
        $region33: #{ansatz_fb_forward.1} parent=11 // pred_check
          %p569 = pneg %p182
        $region34: #{ansatz_fb_forward.1} parent=11 // pred_check_branch
          %571 = sbr.rel (%p569) target = $region36
        $region35: #{ansatz_fb_forward.1} parent=11 // pred_region
          _
        $region36: #{ansatz_fb_forward.1} parent=11 // pred_fallthru
          _
        // Predicated region
        $region37: #{ansatz_fb_forward.1} parent=11 // pred_check
          %p572 = pneg %p203
        $region38: #{ansatz_fb_forward.1} parent=11 // pred_check_branch
          %574 = sbr.rel (%p572) target = $region40
        $region39: #{ansatz_fb_forward.1} parent=11 // pred_region
          _
        $region40: #{ansatz_fb_forward.1} parent=11 // pred_fallthru
          _
        // Predicated region
        $region41: #{ansatz_fb_forward.1} parent=11 // pred_check
          %p575 = pneg %p224
        $region42: #{ansatz_fb_forward.1} parent=11 // pred_check_branch
          %577 = sbr.rel (%p575) target = $region44
        $region43: #{ansatz_fb_forward.1} parent=11 // pred_region
          _
        $region44: #{ansatz_fb_forward.1} parent=11 // pred_fallthru
          _
        // Predicated region
        $region45: #{ansatz_fb_forward.1} parent=11 // pred_check
          %p578 = pneg %p245
        $region46: #{ansatz_fb_forward.1} parent=11 // pred_check_branch
          %580 = sbr.rel (%p578) target = $region48
        $region47: #{ansatz_fb_forward.1} parent=11 // pred_region
          _
        $region48: #{ansatz_fb_forward.1} parent=11 // pred_fallthru
          _
        // Predicated region
        $region49: #{ansatz_fb_forward.1} parent=11 // pred_check
          %p581 = pneg %p266
        $region50: #{ansatz_fb_forward.1} parent=11 // pred_check_branch
          %583 = sbr.rel (%p581) target = $region52
        $region51: #{ansatz_fb_forward.1} parent=11 // pred_region
          _
        $region52: #{ansatz_fb_forward.1} parent=11 // pred_fallthru
          _
        // Predicated region
        $region53: #{ansatz_fb_forward.1} parent=11 // pred_check
          %p584 = pneg %p287
        $region54: #{ansatz_fb_forward.1} parent=11 // pred_check_branch
          %586 = sbr.rel (%p584) target = $region56
        $region55: #{ansatz_fb_forward.1} parent=11 // pred_region
          _
        $region56: #{ansatz_fb_forward.1} parent=11 // pred_fallthru
          _
        // Predicated region
        $region57: #{ansatz_fb_forward.1} parent=11 // pred_check
          %p587 = pneg %p308
        $region58: #{ansatz_fb_forward.1} parent=11 // pred_check_branch
          %589 = sbr.rel (%p587) target = $region60
        $region59: #{ansatz_fb_forward.1} parent=11 // pred_region
          _
        $region60: #{ansatz_fb_forward.1} parent=11 // pred_fallthru
          _
        // Predicated region
        $region61: #{ansatz_fb_forward.1} parent=11 // pred_check
          %p590 = pneg %p329
        $region62: #{ansatz_fb_forward.1} parent=11 // pred_check_branch
          %592 = sbr.rel (%p590) target = $region64
        $region63: #{ansatz_fb_forward.1} parent=11 // pred_region
          _
        $region64: #{ansatz_fb_forward.1} parent=11 // pred_fallthru
          _
        // Predicated region
        $region65: #{ansatz_fb_forward.1} parent=11 // pred_check
          %p593 = pneg %p350
        $region66: #{ansatz_fb_forward.1} parent=11 // pred_check_branch
          %595 = sbr.rel (%p593) target = $region68
        $region67: #{ansatz_fb_forward.1} parent=11 // pred_region
          _
        $region68: #{ansatz_fb_forward.1} parent=11 // pred_fallthru
          _
        // Predicated region
        $region69: #{ansatz_fb_forward.1} parent=11 // pred_check
          %p596 = pneg %p371
        $region70: #{ansatz_fb_forward.1} parent=11 // pred_check_branch
          %598 = sbr.rel (%p596) target = $region72
        $region71: #{ansatz_fb_forward.1} parent=11 // pred_region
          _
        $region72: #{ansatz_fb_forward.1} parent=11 // pred_fallthru
          _
        // Predicated region
        $region73: #{ansatz_fb_forward.1} parent=11 // pred_check
          %p599 = pneg %p392
        $region74: #{ansatz_fb_forward.1} parent=11 // pred_check_branch
          %601 = sbr.rel (%p599) target = $region76
        $region75: #{ansatz_fb_forward.1} parent=11 // pred_region
          _
        $region76: #{ansatz_fb_forward.1} parent=11 // pred_fallthru
          _
        // Predicated region
        $region77: #{ansatz_fb_forward.1} parent=11 // pred_check
          %p602 = pneg %p413
        $region78: #{ansatz_fb_forward.1} parent=11 // pred_check_branch
          %604 = sbr.rel (%p602) target = $region80
        $region79: #{ansatz_fb_forward.1} parent=11 // pred_region
          _
        $region80: #{ansatz_fb_forward.1} parent=11 // pred_fallthru
          _
        // Predicated region
        $region81: #{ansatz_fb_forward.1} parent=11 // pred_check
          %p605 = pneg %p434
        $region82: #{ansatz_fb_forward.1} parent=11 // pred_check_branch
          %607 = sbr.rel (%p605) target = $region84
        $region83: #{ansatz_fb_forward.1} parent=11 // pred_region
          _
        $region84: #{ansatz_fb_forward.1} parent=11 // pred_fallthru
          _
        // Predicated region
        $region85: #{ansatz_fb_forward.1} parent=11 // pred_check
          %p608 = pneg %p455
        $region86: #{ansatz_fb_forward.1} parent=11 // pred_check_branch
          %610 = sbr.rel (%p608) target = $region88
        $region87: #{ansatz_fb_forward.1} parent=11 // pred_region
          _
        $region88: #{ansatz_fb_forward.1} parent=11 // pred_fallthru
          _
        // Predicated region
        $region89: #{ansatz_fb_forward.1} parent=11 // pred_check
          %p611 = pneg %p476
        $region90: #{ansatz_fb_forward.1} parent=11 // pred_check_branch
          %613 = sbr.rel (%p611) target = $region92
        $region91: #{ansatz_fb_forward.1} parent=11 // pred_region
          _
        $region92: #{ansatz_fb_forward.1} parent=11 // pred_fallthru
          _
      $region12: #{ansatz_fb_forward.1} parent=5 // pred_fallthru
        _
      %p614 = scmp.lt.s32.totalorder %s30, 2
      // Predicated region
      $region93: #{ansatz_fb_forward.1} parent=5 // pred_check
        %p615 = pneg %p614
      $region94: #{ansatz_fb_forward.1} parent=5 // pred_check_branch
        %617 = sbr.rel (%p615) target = $region96
      $region95: #{ansatz_fb_forward.1} parent=5 // pred_region
        // Predicated region
        $region97: #{ansatz_fb_forward.1} parent=95 // pred_check
          %p618 = pneg %p50
        $region98: #{ansatz_fb_forward.1} parent=95 // pred_check_branch
          %620 = sbr.rel (%p618) target = $region100
        $region99: #{ansatz_fb_forward.1} parent=95 // pred_region
          %s621 = smul.u32 4, %s30
          %p622 = scmp.lt.s32.totalorder %s621, 7
          %s623 = scalar_select %p622, %s621, 7
          %s624 = smul.addr %s623, 8
          %s625 = scalar_lea.vmem %s0, %s624
          %s626 = smul.u32 4, %s30
        $region100: #{ansatz_fb_forward.1} parent=95 // pred_fallthru
          _
      $region96: #{ansatz_fb_forward.1} parent=5 // pred_fallthru
        _
      %p627 = scmp.le.s32.totalorder 1, %s30
      %p628 = scmp.lt.s32.totalorder %s30, 3
      %p629 = pnand %p627, %p628
      %p630 = pneg %p629
      // Predicated region
      $region101: #{ansatz_fb_forward.1} parent=5 // pred_check
        _
      $region102: #{ansatz_fb_forward.1} parent=5 // pred_check_branch
        %632 = sbr.rel (%p629) target = $region104
      $region103: #{ansatz_fb_forward.1} parent=5 // pred_region
        %s633 = ssub.s32 %s30, 1
        // Predicated region
        $region105: #{ansatz_fb_forward.1} parent=103 // pred_check
          %p634 = pneg %p98
        $region106: #{ansatz_fb_forward.1} parent=103 // pred_check_branch
          %636 = sbr.rel (%p634) target = $region108
        $region107: #{ansatz_fb_forward.1} parent=103 // pred_region
          %638 = dma.done [#allocation3], 4096
        $region108: #{ansatz_fb_forward.1} parent=103 // pred_fallthru
          _
        %s639 = smul.u32 4, %s35
        %p640 = scmp.lt.s32.totalorder %s639, 7
        %s641 = scalar_select %p640, %s639, 7
        %s642 = smul.addr %s641, 8
        %s643 = scalar_lea.vmem %s0, %s642
        %p644 = pneg %p56
        %p645 = pneg %p53
        %p646 = pneg %p77
        %p647 = pneg %p74
        %p648 = pneg %p98
        %p649 = pneg %p95
        %p650 = pneg %p119
        %p651 = pneg %p116
        %p652 = pneg %p140
        %p653 = pneg %p137
        %p654 = pneg %p161
        %p655 = pneg %p158
        %p656 = pneg %p182
        %p657 = pneg %p179
        %p658 = pneg %p203
        %p659 = pneg %p200
        %p660 = pneg %p224
        %p661 = pneg %p221
        %p662 = pneg %p245
        %p663 = pneg %p242
        %p664 = pneg %p266
        %p665 = pneg %p263
        %p666 = pneg %p287
        %p667 = pneg %p284
        %p668 = pneg %p308
        %p669 = pneg %p305
        %p670 = pneg %p329
        %p671 = pneg %p326
        %p672 = pneg %p350
        %p673 = pneg %p347
        %p674 = pneg %p371
        %p675 = pneg %p368
        %p676 = pneg %p392
        %p677 = pneg %p389
        %p678 = pneg %p413
        %p679 = pneg %p410
        %p680 = pneg %p434
        %p681 = pneg %p431
        %p682 = pneg %p455
        %p683 = pneg %p452
        %p684 = pneg %p476
        %p685 = pneg %p473
        %p686 = pneg %p502
        %p687 = pneg %p499
        %s688 = smul.u32 4, %s35
        %p689 = scmp.lt.s32.totalorder %s688, 7
        %s690 = scalar_select %p689, %s688, 7
        %s691 = smul.addr %s690, 4
        %s692 = scalar_lea.vmem %s21, %s691
        %p693 = pneg %p528
        %p694 = pneg %p525
        %s695 = smul.u32 4, %s35
        %p696 = scmp.lt.s32.totalorder %s695, 7
        %s697 = scalar_select %p696, %s695, 7
        %s698 = smul.addr %s697, 4
        %s699 = scalar_lea.vmem %s22, %s698
        %s700 = smul.u32 4, %s35
        %p701 = scmp.lt.s32.totalorder %s700, 7
        %s702 = scalar_select %p701, %s700, 7
        %s703 = smul.addr %s702, 8
        %s704 = scalar_lea.vmem %s0, %s703
        %s705 = smul.u32 4, %s35
        %s706 = smul.u32 4, %s35
        %p707 = scmp.lt.s32.totalorder %s706, 7
        %s708 = scalar_select %p707, %s706, 7
        %s709 = smul.addr %s708, 4
        %s710 = scalar_lea.vmem %s21, %s709
        %s711 = smul.u32 4, %s35
        %s712 = smul.u32 4, %s35
        %p713 = scmp.lt.s32.totalorder %s712, 7
        %s714 = scalar_select %p713, %s712, 7
        %s715 = smul.addr %s714, 4
        %s716 = scalar_lea.vmem %s22, %s715
        %s717 = smul.u32 4, %s35
        %v719 = vld [vmem:[%s704] sm:$0xff]
        %v720 = vld [vmem:[%s704 + $0x8] sm:$0xff]
        %v721 = vld [vmem:[%s704 + $0x10] sm:$0xff]
        %v722 = vld [vmem:[%s704 + $0x18] sm:$0xff]
        %v723 = vld [vmem:[%s1] sm:$0x3]
        %v724 = vld [vmem:[%s3] sm:$0xff]
        %v725 = vld [vmem:[%s3 + $0x8] sm:$0xff]
        %v726 = vld [vmem:[%s3 + $0x10] sm:$0xff]
        %v727 = vld [vmem:[%s3 + $0x18] sm:$0xff]
        %v728 = vld [vmem:[%s4] sm:$0xff]
        %v729 = vld [vmem:[%s4 + $0x8] sm:$0xff]
        %v730 = vld [vmem:[%s4 + $0x10] sm:$0xff]
        %v731 = vld [vmem:[%s4 + $0x18] sm:$0xff]
        %v732 = vld [vmem:[%s5] sm:$0xff]
        %v733 = vld [vmem:[%s5 + $0x8] sm:$0xff]
        %v734 = vld [vmem:[%s5 + $0x10] sm:$0xff]
        %v735 = vld [vmem:[%s5 + $0x18] sm:$0xff]
        %v736 = vld [vmem:[%s5 + $0x20] sm:$0xff]
        %v737 = vld [vmem:[%s5 + $0x28] sm:$0xff]
        %v738 = vld [vmem:[%s5 + $0x30] sm:$0xff]
        %v739 = vld [vmem:[%s5 + $0x38] sm:$0xff]
        %v740 = vld [vmem:[%s6] sm:$0xff]
        %v741 = vld [vmem:[%s6 + $0x8] sm:$0xff]
        %v742 = vld [vmem:[%s6 + $0x10] sm:$0xff]
        %v743 = vld [vmem:[%s6 + $0x18] sm:$0xff]
        %v744 = vld [vmem:[%s6 + $0x20] sm:$0xff]
        %v745 = vld [vmem:[%s6 + $0x28] sm:$0xff]
        %v746 = vld [vmem:[%s6 + $0x30] sm:$0xff]
        %v747 = vld [vmem:[%s6 + $0x38] sm:$0xff]
        %v748 = vperm.slane %v723, 0
        %v749 = vsub.f32 %v719, %v748
        %v750 = vsub.f32 %v720, %v748
        %v751 = vsub.f32 %v721, %v748
        %v752 = vsub.f32 %v722, %v748
        %v753 = vmul.f32 %v749, %v749
        %v754 = vmul.f32 %v750, %v750
        %v755 = vmul.f32 %v751, %v751
        %v756 = vmul.f32 %v752, %v752
        %vm757 = vcmask 23552
        %v758 = vsel %vm757, %v753, 0.0
        %759 = vadd.xlane.f32.xlu0 %v758
        %v760 = vpop.xlane.xlu0 %759
        %v761 = vsel %vm757, %v754, 0.0
        %762 = vadd.xlane.f32.xlu0 %v761
        %v763 = vpop.xlane.xlu0 %762
        %v764 = vsel %vm757, %v755, 0.0
        %765 = vadd.xlane.f32.xlu0 %v764
        %v766 = vpop.xlane.xlu0 %765
        %v767 = vsel %vm757, %v756, 0.0
        %768 = vadd.xlane.f32.xlu0 %v767
        %v769 = vpop.xlane.xlu0 %768
        %v770 = vrsqrt.pop %v760
        %v771 = vmul.f32 %v770, %v760
        %v772 = vmul.f32 %v771, %v770
        %v773 = vmul.f32 0.5, %v772
        %v774 = vsub.f32 1.5, %v773
        %v775 = vmul.f32 %v770, %v774
        %v776 = vmul.f32 %v760, %v775
        %vm777 = vcmp.eq.f32.partialorder %v760, inf
        %v778 = vsel %vm777, %v760, %v776
        %vm779 = vcmp.eq.f32.partialorder %v760, 0.0
        %v780 = vand.u32 %v760, 2147483648
        %v781 = vsel %vm779, %v780, %v778
        %v782 = vrsqrt.pop %v763
        %v783 = vmul.f32 %v782, %v763
        %v784 = vmul.f32 %v783, %v782
        %v785 = vmul.f32 0.5, %v784
        %v786 = vsub.f32 1.5, %v785
        %v787 = vmul.f32 %v782, %v786
        %v788 = vmul.f32 %v763, %v787
        %vm789 = vcmp.eq.f32.partialorder %v763, inf
        %v790 = vsel %vm789, %v763, %v788
        %vm791 = vcmp.eq.f32.partialorder %v763, 0.0
        %v792 = vand.u32 %v763, 2147483648
        %v793 = vsel %vm791, %v792, %v790
        %v794 = vrsqrt.pop %v766
        %v795 = vmul.f32 %v794, %v766
        %v796 = vmul.f32 %v795, %v794
        %v797 = vmul.f32 0.5, %v796
        %v798 = vsub.f32 1.5, %v797
        %v799 = vmul.f32 %v794, %v798
        %v800 = vmul.f32 %v766, %v799
        %vm801 = vcmp.eq.f32.partialorder %v766, inf
        %v802 = vsel %vm801, %v766, %v800
        %vm803 = vcmp.eq.f32.partialorder %v766, 0.0
        %v804 = vand.u32 %v766, 2147483648
        %v805 = vsel %vm803, %v804, %v802
        %v806 = vrsqrt.pop %v769
        %v807 = vmul.f32 %v806, %v769
        %v808 = vmul.f32 %v807, %v806
        %v809 = vmul.f32 0.5, %v808
        %v810 = vsub.f32 1.5, %v809
        %v811 = vmul.f32 %v806, %v810
        %v812 = vmul.f32 %v769, %v811
        %vm813 = vcmp.eq.f32.partialorder %v769, inf
        %v814 = vsel %vm813, %v769, %v812
        %vm815 = vcmp.eq.f32.partialorder %v769, 0.0
        %v816 = vand.u32 %v769, 2147483648
        %v817 = vsel %vm815, %v816, %v814
        %v818 = vsub.f32 0.0, %v781
        %v819 = vsub.f32 0.0, %v793
        %v820 = vsub.f32 0.0, %v805
        %v821 = vsub.f32 0.0, %v817
        %v822 = vmul.f32 %v818, 1.442695
        %v823 = vpow.pop %v822
        %v824 = vmul.f32 %v819, 1.442695
        %v825 = vpow.pop %v824
        %v826 = vmul.f32 %v820, 1.442695
        %v827 = vpow.pop %v826
        %v828 = vmul.f32 %v821, 1.442695
        %v829 = vpow.pop %v828
        %v830 = vadd.f32 %v823, 0.0
        %v831 = vadd.f32 %v825, 0.0
        %v832 = vadd.f32 %v827, 0.0
        %v833 = vadd.f32 %v829, 0.0
        %v834 = vperm.slane %v723, 1
        %v835 = vsub.f32 %v719, %v834
        %v836 = vsub.f32 %v720, %v834
        %v837 = vsub.f32 %v721, %v834
        %v838 = vsub.f32 %v722, %v834
        %v839 = vmul.f32 %v835, %v835
        %v840 = vmul.f32 %v836, %v836
        %v841 = vmul.f32 %v837, %v837
        %v842 = vmul.f32 %v838, %v838
        %v843 = vsel %vm757, %v839, 0.0
        %844 = vadd.xlane.f32.xlu0 %v843
        %v845 = vpop.xlane.xlu0 %844
        %v846 = vsel %vm757, %v840, 0.0
        %847 = vadd.xlane.f32.xlu0 %v846
        %v848 = vpop.xlane.xlu0 %847
        %v849 = vsel %vm757, %v841, 0.0
        %850 = vadd.xlane.f32.xlu0 %v849
        %v851 = vpop.xlane.xlu0 %850
        %v852 = vsel %vm757, %v842, 0.0
        %853 = vadd.xlane.f32.xlu0 %v852
        %v854 = vpop.xlane.xlu0 %853
        %v855 = vrsqrt.pop %v845
        %v856 = vmul.f32 %v855, %v845
        %v857 = vmul.f32 %v856, %v855
        %v858 = vmul.f32 0.5, %v857
        %v859 = vsub.f32 1.5, %v858
        %v860 = vmul.f32 %v855, %v859
        %v861 = vmul.f32 %v845, %v860
        %vm862 = vcmp.eq.f32.partialorder %v845, inf
        %v863 = vsel %vm862, %v845, %v861
        %vm864 = vcmp.eq.f32.partialorder %v845, 0.0
        %v865 = vand.u32 %v845, 2147483648
        %v866 = vsel %vm864, %v865, %v863
        %v867 = vrsqrt.pop %v848
        %v868 = vmul.f32 %v867, %v848
        %v869 = vmul.f32 %v868, %v867
        %v870 = vmul.f32 0.5, %v869
        %v871 = vsub.f32 1.5, %v870
        %v872 = vmul.f32 %v867, %v871
        %v873 = vmul.f32 %v848, %v872
        %vm874 = vcmp.eq.f32.partialorder %v848, inf
        %v875 = vsel %vm874, %v848, %v873
        %vm876 = vcmp.eq.f32.partialorder %v848, 0.0
        %v877 = vand.u32 %v848, 2147483648
        %v878 = vsel %vm876, %v877, %v875
        %v879 = vrsqrt.pop %v851
        %v880 = vmul.f32 %v879, %v851
        %v881 = vmul.f32 %v880, %v879
        %v882 = vmul.f32 0.5, %v881
        %v883 = vsub.f32 1.5, %v882
        %v884 = vmul.f32 %v879, %v883
        %v885 = vmul.f32 %v851, %v884
        %vm886 = vcmp.eq.f32.partialorder %v851, inf
        %v887 = vsel %vm886, %v851, %v885
        %vm888 = vcmp.eq.f32.partialorder %v851, 0.0
        %v889 = vand.u32 %v851, 2147483648
        %v890 = vsel %vm888, %v889, %v887
        %v891 = vrsqrt.pop %v854
        %v892 = vmul.f32 %v891, %v854
        %v893 = vmul.f32 %v892, %v891
        %v894 = vmul.f32 0.5, %v893
        %v895 = vsub.f32 1.5, %v894
        %v896 = vmul.f32 %v891, %v895
        %v897 = vmul.f32 %v854, %v896
        %vm898 = vcmp.eq.f32.partialorder %v854, inf
        %v899 = vsel %vm898, %v854, %v897
        %vm900 = vcmp.eq.f32.partialorder %v854, 0.0
        %v901 = vand.u32 %v854, 2147483648
        %v902 = vsel %vm900, %v901, %v899
        %v903 = vsub.f32 0.0, %v866
        %v904 = vsub.f32 0.0, %v878
        %v905 = vsub.f32 0.0, %v890
        %v906 = vsub.f32 0.0, %v902
        %v907 = vmul.f32 %v903, 1.442695
        %v908 = vpow.pop %v907
        %v909 = vmul.f32 %v904, 1.442695
        %v910 = vpow.pop %v909
        %v911 = vmul.f32 %v905, 1.442695
        %v912 = vpow.pop %v911
        %v913 = vmul.f32 %v906, 1.442695
        %v914 = vpow.pop %v913
        %v915 = vadd.f32 %v830, %v908
        %v916 = vadd.f32 %v831, %v910
        %v917 = vadd.f32 %v832, %v912
        %v918 = vadd.f32 %v833, %v914
        %923 = vrot.lane.b32.xlu0 %v835, 4
        %v924 = vpop.permute.xlu0 %923
        %925 = vrot.lane.b32.xlu0 %v836, 4
        %v926 = vpop.permute.xlu0 %925
        %927 = vrot.lane.b32.xlu0 %v837, 4
        %v928 = vpop.permute.xlu0 %927
        %929 = vrot.lane.b32.xlu0 %v838, 4
        %v930 = vpop.permute.xlu0 %929
        %v935 = vsel %vm757, %v749, %v781
        %v936 = vsel %vm757, %v750, %v793
        %v937 = vsel %vm757, %v751, %v805
        %v938 = vsel %vm757, %v752, %v817
        %vm939 = vcmask 31744
        %v940 = vsel %vm939, %v935, %v924
        %v941 = vsel %vm939, %v936, %v926
        %v942 = vsel %vm939, %v937, %v928
        %v943 = vsel %vm939, %v938, %v930
        %vm944 = vcmask 56320
        %v945 = vsel %vm944, %v940, %v866
        %v946 = vsel %vm944, %v941, %v878
        %v947 = vsel %vm944, %v942, %v890
        %v948 = vsel %vm944, %v943, %v902
        %v953 = vrot.slane %v719, 1
        %v954 = vrot.slane %v719, 2
        %v955 = vrot.slane %v719, 3
        %v956 = vrot.slane %v719, 4
        %v957 = vrot.slane %v719, 5
        %v958 = vrot.slane %v719, 6
        %v959 = vrot.slane %v719, 7
        %v960 = vrot.slane %v720, 1
        %v961 = vrot.slane %v720, 2
        %v962 = vrot.slane %v720, 3
        %v963 = vrot.slane %v720, 4
        %v964 = vrot.slane %v720, 5
        %v965 = vrot.slane %v720, 6
        %v966 = vrot.slane %v720, 7
        %v967 = vrot.slane %v721, 1
        %v968 = vrot.slane %v721, 2
        %v969 = vrot.slane %v721, 3
        %v970 = vrot.slane %v721, 4
        %v971 = vrot.slane %v721, 5
        %v972 = vrot.slane %v721, 6
        %v973 = vrot.slane %v721, 7
        %v974 = vrot.slane %v722, 1
        %v975 = vrot.slane %v722, 2
        %v976 = vrot.slane %v722, 3
        %v977 = vrot.slane %v722, 4
        %v978 = vrot.slane %v722, 5
        %v979 = vrot.slane %v722, 6
        %v980 = vrot.slane %v722, 7
        %v981 = vperm.slane %v719, 0
        %v982 = vperm.slane %v953, 0
        %v983 = vperm.slane %v954, 0
        %v984 = vperm.slane %v955, 0
        %v985 = vperm.slane %v956, 0
        %v986 = vperm.slane %v957, 0
        %v987 = vperm.slane %v958, 0
        %v988 = vperm.slane %v959, 0
        %v989 = vperm.slane %v720, 0
        %v990 = vperm.slane %v960, 0
        %v991 = vperm.slane %v961, 0
        %v992 = vperm.slane %v962, 0
        %v993 = vperm.slane %v963, 0
        %v994 = vperm.slane %v964, 0
        %v995 = vperm.slane %v965, 0
        %v996 = vperm.slane %v966, 0
        %v997 = vperm.slane %v721, 0
        %v998 = vperm.slane %v967, 0
        %v999 = vperm.slane %v968, 0
        %v1000 = vperm.slane %v969, 0
        %v1001 = vperm.slane %v970, 0
        %v1002 = vperm.slane %v971, 0
        %v1003 = vperm.slane %v972, 0
        %v1004 = vperm.slane %v973, 0
        %v1005 = vperm.slane %v722, 0
        %v1006 = vperm.slane %v974, 0
        %v1007 = vperm.slane %v975, 0
        %v1008 = vperm.slane %v976, 0
        %v1009 = vperm.slane %v977, 0
        %v1010 = vperm.slane %v978, 0
        %v1011 = vperm.slane %v979, 0
        %v1012 = vperm.slane %v980, 0
        %v1045 = vsub.f32 %v719, %v981
        %v1046 = vsub.f32 %v719, %v982
        %v1047 = vsub.f32 %v719, %v983
        %v1048 = vsub.f32 %v719, %v984
        %v1049 = vsub.f32 %v719, %v985
        %v1050 = vsub.f32 %v719, %v986
        %v1051 = vsub.f32 %v719, %v987
        %v1052 = vsub.f32 %v719, %v988
        %v1053 = vsub.f32 %v720, %v989
        %v1054 = vsub.f32 %v720, %v990
        %v1055 = vsub.f32 %v720, %v991
        %v1056 = vsub.f32 %v720, %v992
        %v1057 = vsub.f32 %v720, %v993
        %v1058 = vsub.f32 %v720, %v994
        %v1059 = vsub.f32 %v720, %v995
        %v1060 = vsub.f32 %v720, %v996
        %v1061 = vsub.f32 %v721, %v997
        %v1062 = vsub.f32 %v721, %v998
        %v1063 = vsub.f32 %v721, %v999
        %v1064 = vsub.f32 %v721, %v1000
        %v1065 = vsub.f32 %v721, %v1001
        %v1066 = vsub.f32 %v721, %v1002
        %v1067 = vsub.f32 %v721, %v1003
        %v1068 = vsub.f32 %v721, %v1004
        %v1069 = vsub.f32 %v722, %v1005
        %v1070 = vsub.f32 %v722, %v1006
        %v1071 = vsub.f32 %v722, %v1007
        %v1072 = vsub.f32 %v722, %v1008
        %v1073 = vsub.f32 %v722, %v1009
        %v1074 = vsub.f32 %v722, %v1010
        %v1075 = vsub.f32 %v722, %v1011
        %v1076 = vsub.f32 %v722, %v1012
        %v1077 = vld [vmem:[#allocation2] sm:$0xff]
        %v1078 = vld [vmem:[#allocation2 + $0x8] sm:$0xff]
        %v1079 = vld [vmem:[#allocation2 + $0x10] sm:$0xff]
        %v1080 = vld [vmem:[#allocation2 + $0x18] sm:$0xff]
        %v1081 = vld [vmem:[#allocation2 + $0x20] sm:$0xff]
        %v1082 = vld [vmem:[#allocation2 + $0x28] sm:$0xff]
        %v1083 = vld [vmem:[#allocation2 + $0x30] sm:$0xff]
        %v1084 = vld [vmem:[#allocation2 + $0x38] sm:$0xff]
        %v1085 = vld [vmem:[#allocation2 + $0x40] sm:$0xff]
        %v1086 = vld [vmem:[#allocation2 + $0x48] sm:$0xff]
        %v1087 = vld [vmem:[#allocation2 + $0x50] sm:$0xff]
        %v1088 = vld [vmem:[#allocation2 + $0x58] sm:$0xff]
        %v1089 = vld [vmem:[#allocation2 + $0x60] sm:$0xff]
        %v1090 = vld [vmem:[#allocation2 + $0x68] sm:$0xff]
        %v1091 = vld [vmem:[#allocation2 + $0x70] sm:$0xff]
        %v1092 = vld [vmem:[#allocation2 + $0x78] sm:$0xff]
        %v1093 = vld [vmem:[#allocation2 + $0x80] sm:$0xff]
        %v1094 = vld [vmem:[#allocation2 + $0x88] sm:$0xff]
        %v1095 = vld [vmem:[#allocation2 + $0x90] sm:$0xff]
        %v1096 = vld [vmem:[#allocation2 + $0x98] sm:$0xff]
        %v1097 = vld [vmem:[#allocation2 + $0xa0] sm:$0xff]
        %v1098 = vld [vmem:[#allocation2 + $0xa8] sm:$0xff]
        %v1099 = vld [vmem:[#allocation2 + $0xb0] sm:$0xff]
        %v1100 = vld [vmem:[#allocation2 + $0xb8] sm:$0xff]
        %v1101 = vld [vmem:[#allocation2 + $0xc0] sm:$0xff]
        %v1102 = vld [vmem:[#allocation2 + $0xc8] sm:$0xff]
        %v1103 = vld [vmem:[#allocation2 + $0xd0] sm:$0xff]
        %v1104 = vld [vmem:[#allocation2 + $0xd8] sm:$0xff]
        %v1105 = vld [vmem:[#allocation2 + $0xe0] sm:$0xff]
        %v1106 = vld [vmem:[#allocation2 + $0xe8] sm:$0xff]
        %v1107 = vld [vmem:[#allocation2 + $0xf0] sm:$0xff]
        %v1108 = vld [vmem:[#allocation2 + $0xf8] sm:$0xff]
        %1110 = vset.pattern.permute.xlu0 0
        %1111 = vperm.xlu0 %1110, %v1077
        %v1112 = vpop.permute.xlu0 %1111
        %1115 = vset.pattern.permute.xlu0 0
        %1116 = vperm.xlu0 %1115, %v1078
        %v1117 = vpop.permute.xlu0 %1116
        %1120 = vset.pattern.permute.xlu0 0
        %1121 = vperm.xlu0 %1120, %v1079
        %v1122 = vpop.permute.xlu0 %1121
        %1125 = vset.pattern.permute.xlu0 0
        %1126 = vperm.xlu0 %1125, %v1080
        %v1127 = vpop.permute.xlu0 %1126
        %1130 = vset.pattern.permute.xlu0 0
        %1131 = vperm.xlu0 %1130, %v1081
        %v1132 = vpop.permute.xlu0 %1131
        %1135 = vset.pattern.permute.xlu0 0
        %1136 = vperm.xlu0 %1135, %v1082
        %v1137 = vpop.permute.xlu0 %1136
        %1140 = vset.pattern.permute.xlu0 0
        %1141 = vperm.xlu0 %1140, %v1083
        %v1142 = vpop.permute.xlu0 %1141
        %1145 = vset.pattern.permute.xlu0 0
        %1146 = vperm.xlu0 %1145, %v1084
        %v1147 = vpop.permute.xlu0 %1146
        %1150 = vset.pattern.permute.xlu0 0
        %1151 = vperm.xlu0 %1150, %v1085
        %v1152 = vpop.permute.xlu0 %1151
        %1155 = vset.pattern.permute.xlu0 0
        %1156 = vperm.xlu0 %1155, %v1086
        %v1157 = vpop.permute.xlu0 %1156
        %1160 = vset.pattern.permute.xlu0 0
        %1161 = vperm.xlu0 %1160, %v1087
        %v1162 = vpop.permute.xlu0 %1161
        %1165 = vset.pattern.permute.xlu0 0
        %1166 = vperm.xlu0 %1165, %v1088
        %v1167 = vpop.permute.xlu0 %1166
        %1170 = vset.pattern.permute.xlu0 0
        %1171 = vperm.xlu0 %1170, %v1089
        %v1172 = vpop.permute.xlu0 %1171
        %1175 = vset.pattern.permute.xlu0 0
        %1176 = vperm.xlu0 %1175, %v1090
        %v1177 = vpop.permute.xlu0 %1176
        %1180 = vset.pattern.permute.xlu0 0
        %1181 = vperm.xlu0 %1180, %v1091
        %v1182 = vpop.permute.xlu0 %1181
        %1185 = vset.pattern.permute.xlu0 0
        %1186 = vperm.xlu0 %1185, %v1092
        %v1187 = vpop.permute.xlu0 %1186
        %1190 = vset.pattern.permute.xlu0 0
        %1191 = vperm.xlu0 %1190, %v1093
        %v1192 = vpop.permute.xlu0 %1191
        %1195 = vset.pattern.permute.xlu0 0
        %1196 = vperm.xlu0 %1195, %v1094
        %v1197 = vpop.permute.xlu0 %1196
        %1200 = vset.pattern.permute.xlu0 0
        %1201 = vperm.xlu0 %1200, %v1095
        %v1202 = vpop.permute.xlu0 %1201
        %1205 = vset.pattern.permute.xlu0 0
        %1206 = vperm.xlu0 %1205, %v1096
        %v1207 = vpop.permute.xlu0 %1206
        %1210 = vset.pattern.permute.xlu0 0
        %1211 = vperm.xlu0 %1210, %v1097
        %v1212 = vpop.permute.xlu0 %1211
        %1215 = vset.pattern.permute.xlu0 0
        %1216 = vperm.xlu0 %1215, %v1098
        %v1217 = vpop.permute.xlu0 %1216
        %1220 = vset.pattern.permute.xlu0 0
        %1221 = vperm.xlu0 %1220, %v1099
        %v1222 = vpop.permute.xlu0 %1221
        %1225 = vset.pattern.permute.xlu0 0
        %1226 = vperm.xlu0 %1225, %v1100
        %v1227 = vpop.permute.xlu0 %1226
        %1230 = vset.pattern.permute.xlu0 0
        %1231 = vperm.xlu0 %1230, %v1101
        %v1232 = vpop.permute.xlu0 %1231
        %1235 = vset.pattern.permute.xlu0 0
        %1236 = vperm.xlu0 %1235, %v1102
        %v1237 = vpop.permute.xlu0 %1236
        %1240 = vset.pattern.permute.xlu0 0
        %1241 = vperm.xlu0 %1240, %v1103
        %v1242 = vpop.permute.xlu0 %1241
        %1245 = vset.pattern.permute.xlu0 0
        %1246 = vperm.xlu0 %1245, %v1104
        %v1247 = vpop.permute.xlu0 %1246
        %1250 = vset.pattern.permute.xlu0 0
        %1251 = vperm.xlu0 %1250, %v1105
        %v1252 = vpop.permute.xlu0 %1251
        %1255 = vset.pattern.permute.xlu0 0
        %1256 = vperm.xlu0 %1255, %v1106
        %v1257 = vpop.permute.xlu0 %1256
        %1260 = vset.pattern.permute.xlu0 0
        %1261 = vperm.xlu0 %1260, %v1107
        %v1262 = vpop.permute.xlu0 %1261
        %1265 = vset.pattern.permute.xlu0 0
        %1266 = vperm.xlu0 %1265, %v1108
        %v1267 = vpop.permute.xlu0 %1266
        %v1269 = vadd.f32 %v1045, %v1112
        %v1270 = vadd.f32 %v1046, %v1117
        %v1271 = vadd.f32 %v1047, %v1122
        %v1272 = vadd.f32 %v1048, %v1127
        %v1273 = vadd.f32 %v1049, %v1132
        %v1274 = vadd.f32 %v1050, %v1137
        %v1275 = vadd.f32 %v1051, %v1142
        %v1276 = vadd.f32 %v1052, %v1147
        %v1277 = vadd.f32 %v1053, %v1152
        %v1278 = vadd.f32 %v1054, %v1157
        %v1279 = vadd.f32 %v1055, %v1162
        %v1280 = vadd.f32 %v1056, %v1167
        %v1281 = vadd.f32 %v1057, %v1172
        %v1282 = vadd.f32 %v1058, %v1177
        %v1283 = vadd.f32 %v1059, %v1182
        %v1284 = vadd.f32 %v1060, %v1187
        %v1285 = vadd.f32 %v1061, %v1192
        %v1286 = vadd.f32 %v1062, %v1197
        %v1287 = vadd.f32 %v1063, %v1202
        %v1288 = vadd.f32 %v1064, %v1207
        %v1289 = vadd.f32 %v1065, %v1212
        %v1290 = vadd.f32 %v1066, %v1217
        %v1291 = vadd.f32 %v1067, %v1222
        %v1292 = vadd.f32 %v1068, %v1227
        %v1293 = vadd.f32 %v1069, %v1232
        %v1294 = vadd.f32 %v1070, %v1237
        %v1295 = vadd.f32 %v1071, %v1242
        %v1296 = vadd.f32 %v1072, %v1247
        %v1297 = vadd.f32 %v1073, %v1252
        %v1298 = vadd.f32 %v1074, %v1257
        %v1299 = vadd.f32 %v1075, %v1262
        %v1300 = vadd.f32 %v1076, %v1267
        %v1301 = vmul.f32 %v1269, %v1269
        %v1302 = vmul.f32 %v1270, %v1270
        %v1303 = vmul.f32 %v1271, %v1271
        %v1304 = vmul.f32 %v1272, %v1272
        %v1305 = vmul.f32 %v1273, %v1273
        %v1306 = vmul.f32 %v1274, %v1274
        %v1307 = vmul.f32 %v1275, %v1275
        %v1308 = vmul.f32 %v1276, %v1276
        %v1309 = vmul.f32 %v1277, %v1277
        %v1310 = vmul.f32 %v1278, %v1278
        %v1311 = vmul.f32 %v1279, %v1279
        %v1312 = vmul.f32 %v1280, %v1280
        %v1313 = vmul.f32 %v1281, %v1281
        %v1314 = vmul.f32 %v1282, %v1282
        %v1315 = vmul.f32 %v1283, %v1283
        %v1316 = vmul.f32 %v1284, %v1284
        %v1317 = vmul.f32 %v1285, %v1285
        %v1318 = vmul.f32 %v1286, %v1286
        %v1319 = vmul.f32 %v1287, %v1287
        %v1320 = vmul.f32 %v1288, %v1288
        %v1321 = vmul.f32 %v1289, %v1289
        %v1322 = vmul.f32 %v1290, %v1290
        %v1323 = vmul.f32 %v1291, %v1291
        %v1324 = vmul.f32 %v1292, %v1292
        %v1325 = vmul.f32 %v1293, %v1293
        %v1326 = vmul.f32 %v1294, %v1294
        %v1327 = vmul.f32 %v1295, %v1295
        %v1328 = vmul.f32 %v1296, %v1296
        %v1329 = vmul.f32 %v1297, %v1297
        %v1330 = vmul.f32 %v1298, %v1298
        %v1331 = vmul.f32 %v1299, %v1299
        %v1332 = vmul.f32 %v1300, %v1300
        %v1333 = vsel %vm757, %v1301, 0.0
        %1334 = vadd.xlane.f32.xlu0 %v1333
        %v1335 = vpop.xlane.xlu0 %1334
        %v1336 = vsel %vm757, %v1302, 0.0
        %1337 = vadd.xlane.f32.xlu0 %v1336
        %v1338 = vpop.xlane.xlu0 %1337
        %v1339 = vsel %vm757, %v1303, 0.0
        %1340 = vadd.xlane.f32.xlu0 %v1339
        %v1341 = vpop.xlane.xlu0 %1340
        %v1342 = vsel %vm757, %v1304, 0.0
        %1343 = vadd.xlane.f32.xlu0 %v1342
        %v1344 = vpop.xlane.xlu0 %1343
        %v1345 = vsel %vm757, %v1305, 0.0
        %1346 = vadd.xlane.f32.xlu0 %v1345
        %v1347 = vpop.xlane.xlu0 %1346
        %v1348 = vsel %vm757, %v1306, 0.0
        %1349 = vadd.xlane.f32.xlu0 %v1348
        %v1350 = vpop.xlane.xlu0 %1349
        %v1351 = vsel %vm757, %v1307, 0.0
        %1352 = vadd.xlane.f32.xlu0 %v1351
        %v1353 = vpop.xlane.xlu0 %1352
        %v1354 = vsel %vm757, %v1308, 0.0
        %1355 = vadd.xlane.f32.xlu0 %v1354
        %v1356 = vpop.xlane.xlu0 %1355
        %v1357 = vsel %vm757, %v1309, 0.0
        %1358 = vadd.xlane.f32.xlu0 %v1357
        %v1359 = vpop.xlane.xlu0 %1358
        %v1360 = vsel %vm757, %v1310, 0.0
        %1361 = vadd.xlane.f32.xlu0 %v1360
        %v1362 = vpop.xlane.xlu0 %1361
        %v1363 = vsel %vm757, %v1311, 0.0
        %1364 = vadd.xlane.f32.xlu0 %v1363
        %v1365 = vpop.xlane.xlu0 %1364
        %v1366 = vsel %vm757, %v1312, 0.0
        %1367 = vadd.xlane.f32.xlu0 %v1366
        %v1368 = vpop.xlane.xlu0 %1367
        %v1369 = vsel %vm757, %v1313, 0.0
        %1370 = vadd.xlane.f32.xlu0 %v1369
        %v1371 = vpop.xlane.xlu0 %1370
        %v1372 = vsel %vm757, %v1314, 0.0
        %1373 = vadd.xlane.f32.xlu0 %v1372
        %v1374 = vpop.xlane.xlu0 %1373
        %v1375 = vsel %vm757, %v1315, 0.0
        %1376 = vadd.xlane.f32.xlu0 %v1375
        %v1377 = vpop.xlane.xlu0 %1376
        %v1378 = vsel %vm757, %v1316, 0.0
        %1379 = vadd.xlane.f32.xlu0 %v1378
        %v1380 = vpop.xlane.xlu0 %1379
        %v1381 = vsel %vm757, %v1317, 0.0
        %1382 = vadd.xlane.f32.xlu0 %v1381
        %v1383 = vpop.xlane.xlu0 %1382
        %v1384 = vsel %vm757, %v1318, 0.0
        %1385 = vadd.xlane.f32.xlu0 %v1384
        %v1386 = vpop.xlane.xlu0 %1385
        %v1387 = vsel %vm757, %v1319, 0.0
        %1388 = vadd.xlane.f32.xlu0 %v1387
        %v1389 = vpop.xlane.xlu0 %1388
        %v1390 = vsel %vm757, %v1320, 0.0
        %1391 = vadd.xlane.f32.xlu0 %v1390
        %v1392 = vpop.xlane.xlu0 %1391
        %v1393 = vsel %vm757, %v1321, 0.0
        %1394 = vadd.xlane.f32.xlu0 %v1393
        %v1395 = vpop.xlane.xlu0 %1394
        %v1396 = vsel %vm757, %v1322, 0.0
        %1397 = vadd.xlane.f32.xlu0 %v1396
        %v1398 = vpop.xlane.xlu0 %1397
        %v1399 = vsel %vm757, %v1323, 0.0
        %1400 = vadd.xlane.f32.xlu0 %v1399
        %v1401 = vpop.xlane.xlu0 %1400
        %v1402 = vsel %vm757, %v1324, 0.0
        %1403 = vadd.xlane.f32.xlu0 %v1402
        %v1404 = vpop.xlane.xlu0 %1403
        %v1405 = vsel %vm757, %v1325, 0.0
        %1406 = vadd.xlane.f32.xlu0 %v1405
        %v1407 = vpop.xlane.xlu0 %1406
        %v1408 = vsel %vm757, %v1326, 0.0
        %1409 = vadd.xlane.f32.xlu0 %v1408
        %v1410 = vpop.xlane.xlu0 %1409
        %v1411 = vsel %vm757, %v1327, 0.0
        %1412 = vadd.xlane.f32.xlu0 %v1411
        %v1413 = vpop.xlane.xlu0 %1412
        %v1414 = vsel %vm757, %v1328, 0.0
        %1415 = vadd.xlane.f32.xlu0 %v1414
        %v1416 = vpop.xlane.xlu0 %1415
        %v1417 = vsel %vm757, %v1329, 0.0
        %1418 = vadd.xlane.f32.xlu0 %v1417
        %v1419 = vpop.xlane.xlu0 %1418
        %v1420 = vsel %vm757, %v1330, 0.0
        %1421 = vadd.xlane.f32.xlu0 %v1420
        %v1422 = vpop.xlane.xlu0 %1421
        %v1423 = vsel %vm757, %v1331, 0.0
        %1424 = vadd.xlane.f32.xlu0 %v1423
        %v1425 = vpop.xlane.xlu0 %1424
        %v1426 = vsel %vm757, %v1332, 0.0
        %1427 = vadd.xlane.f32.xlu0 %v1426
        %v1428 = vpop.xlane.xlu0 %1427
        %v1429 = vrsqrt.pop %v1335
        %v1430 = vmul.f32 %v1429, %v1335
        %v1431 = vmul.f32 %v1430, %v1429
        %v1432 = vmul.f32 0.5, %v1431
        %v1433 = vsub.f32 1.5, %v1432
        %v1434 = vmul.f32 %v1429, %v1433
        %v1435 = vmul.f32 %v1335, %v1434
        %vm1436 = vcmp.eq.f32.partialorder %v1335, inf
        %v1437 = vsel %vm1436, %v1335, %v1435
        %vm1438 = vcmp.eq.f32.partialorder %v1335, 0.0
        %v1439 = vand.u32 %v1335, 2147483648
        %v1440 = vsel %vm1438, %v1439, %v1437
        %v1441 = vrsqrt.pop %v1338
        %v1442 = vmul.f32 %v1441, %v1338
        %v1443 = vmul.f32 %v1442, %v1441
        %v1444 = vmul.f32 0.5, %v1443
        %v1445 = vsub.f32 1.5, %v1444
        %v1446 = vmul.f32 %v1441, %v1445
        %v1447 = vmul.f32 %v1338, %v1446
        %vm1448 = vcmp.eq.f32.partialorder %v1338, inf
        %v1449 = vsel %vm1448, %v1338, %v1447
        %vm1450 = vcmp.eq.f32.partialorder %v1338, 0.0
        %v1451 = vand.u32 %v1338, 2147483648
        %v1452 = vsel %vm1450, %v1451, %v1449
        %v1453 = vrsqrt.pop %v1341
        %v1454 = vmul.f32 %v1453, %v1341
        %v1455 = vmul.f32 %v1454, %v1453
        %v1456 = vmul.f32 0.5, %v1455
        %v1457 = vsub.f32 1.5, %v1456
        %v1458 = vmul.f32 %v1453, %v1457
        %v1459 = vmul.f32 %v1341, %v1458
        %vm1460 = vcmp.eq.f32.partialorder %v1341, inf
        %v1461 = vsel %vm1460, %v1341, %v1459
        %vm1462 = vcmp.eq.f32.partialorder %v1341, 0.0
        %v1463 = vand.u32 %v1341, 2147483648
        %v1464 = vsel %vm1462, %v1463, %v1461
        %v1465 = vrsqrt.pop %v1344
        %v1466 = vmul.f32 %v1465, %v1344
        %v1467 = vmul.f32 %v1466, %v1465
        %v1468 = vmul.f32 0.5, %v1467
        %v1469 = vsub.f32 1.5, %v1468
        %v1470 = vmul.f32 %v1465, %v1469
        %v1471 = vmul.f32 %v1344, %v1470
        %vm1472 = vcmp.eq.f32.partialorder %v1344, inf
        %v1473 = vsel %vm1472, %v1344, %v1471
        %vm1474 = vcmp.eq.f32.partialorder %v1344, 0.0
        %v1475 = vand.u32 %v1344, 2147483648
        %v1476 = vsel %vm1474, %v1475, %v1473
        %v1477 = vrsqrt.pop %v1347
        %v1478 = vmul.f32 %v1477, %v1347
        %v1479 = vmul.f32 %v1478, %v1477
        %v1480 = vmul.f32 0.5, %v1479
        %v1481 = vsub.f32 1.5, %v1480
        %v1482 = vmul.f32 %v1477, %v1481
        %v1483 = vmul.f32 %v1347, %v1482
        %vm1484 = vcmp.eq.f32.partialorder %v1347, inf
        %v1485 = vsel %vm1484, %v1347, %v1483
        %vm1486 = vcmp.eq.f32.partialorder %v1347, 0.0
        %v1487 = vand.u32 %v1347, 2147483648
        %v1488 = vsel %vm1486, %v1487, %v1485
        %v1489 = vrsqrt.pop %v1350
        %v1490 = vmul.f32 %v1489, %v1350
        %v1491 = vmul.f32 %v1490, %v1489
        %v1492 = vmul.f32 0.5, %v1491
        %v1493 = vsub.f32 1.5, %v1492
        %v1494 = vmul.f32 %v1489, %v1493
        %v1495 = vmul.f32 %v1350, %v1494
        %vm1496 = vcmp.eq.f32.partialorder %v1350, inf
        %v1497 = vsel %vm1496, %v1350, %v1495
        %vm1498 = vcmp.eq.f32.partialorder %v1350, 0.0
        %v1499 = vand.u32 %v1350, 2147483648
        %v1500 = vsel %vm1498, %v1499, %v1497
        %v1501 = vrsqrt.pop %v1353
        %v1502 = vmul.f32 %v1501, %v1353
        %v1503 = vmul.f32 %v1502, %v1501
        %v1504 = vmul.f32 0.5, %v1503
        %v1505 = vsub.f32 1.5, %v1504
        %v1506 = vmul.f32 %v1501, %v1505
        %v1507 = vmul.f32 %v1353, %v1506
        %vm1508 = vcmp.eq.f32.partialorder %v1353, inf
        %v1509 = vsel %vm1508, %v1353, %v1507
        %vm1510 = vcmp.eq.f32.partialorder %v1353, 0.0
        %v1511 = vand.u32 %v1353, 2147483648
        %v1512 = vsel %vm1510, %v1511, %v1509
        %v1513 = vrsqrt.pop %v1356
        %v1514 = vmul.f32 %v1513, %v1356
        %v1515 = vmul.f32 %v1514, %v1513
        %v1516 = vmul.f32 0.5, %v1515
        %v1517 = vsub.f32 1.5, %v1516
        %v1518 = vmul.f32 %v1513, %v1517
        %v1519 = vmul.f32 %v1356, %v1518
        %vm1520 = vcmp.eq.f32.partialorder %v1356, inf
        %v1521 = vsel %vm1520, %v1356, %v1519
        %vm1522 = vcmp.eq.f32.partialorder %v1356, 0.0
        %v1523 = vand.u32 %v1356, 2147483648
        %v1524 = vsel %vm1522, %v1523, %v1521
        %v1525 = vrsqrt.pop %v1359
        %v1526 = vmul.f32 %v1525, %v1359
        %v1527 = vmul.f32 %v1526, %v1525
        %v1528 = vmul.f32 0.5, %v1527
        %v1529 = vsub.f32 1.5, %v1528
        %v1530 = vmul.f32 %v1525, %v1529
        %v1531 = vmul.f32 %v1359, %v1530
        %vm1532 = vcmp.eq.f32.partialorder %v1359, inf
        %v1533 = vsel %vm1532, %v1359, %v1531
        %vm1534 = vcmp.eq.f32.partialorder %v1359, 0.0
        %v1535 = vand.u32 %v1359, 2147483648
        %v1536 = vsel %vm1534, %v1535, %v1533
        %v1537 = vrsqrt.pop %v1362
        %v1538 = vmul.f32 %v1537, %v1362
        %v1539 = vmul.f32 %v1538, %v1537
        %v1540 = vmul.f32 0.5, %v1539
        %v1541 = vsub.f32 1.5, %v1540
        %v1542 = vmul.f32 %v1537, %v1541
        %v1543 = vmul.f32 %v1362, %v1542
        %vm1544 = vcmp.eq.f32.partialorder %v1362, inf
        %v1545 = vsel %vm1544, %v1362, %v1543
        %vm1546 = vcmp.eq.f32.partialorder %v1362, 0.0
        %v1547 = vand.u32 %v1362, 2147483648
        %v1548 = vsel %vm1546, %v1547, %v1545
        %v1549 = vrsqrt.pop %v1365
        %v1550 = vmul.f32 %v1549, %v1365
        %v1551 = vmul.f32 %v1550, %v1549
        %v1552 = vmul.f32 0.5, %v1551
        %v1553 = vsub.f32 1.5, %v1552
        %v1554 = vmul.f32 %v1549, %v1553
        %v1555 = vmul.f32 %v1365, %v1554
        %vm1556 = vcmp.eq.f32.partialorder %v1365, inf
        %v1557 = vsel %vm1556, %v1365, %v1555
        %vm1558 = vcmp.eq.f32.partialorder %v1365, 0.0
        %v1559 = vand.u32 %v1365, 2147483648
        %v1560 = vsel %vm1558, %v1559, %v1557
        %v1561 = vrsqrt.pop %v1368
        %v1562 = vmul.f32 %v1561, %v1368
        %v1563 = vmul.f32 %v1562, %v1561
        %v1564 = vmul.f32 0.5, %v1563
        %v1565 = vsub.f32 1.5, %v1564
        %v1566 = vmul.f32 %v1561, %v1565
        %v1567 = vmul.f32 %v1368, %v1566
        %vm1568 = vcmp.eq.f32.partialorder %v1368, inf
        %v1569 = vsel %vm1568, %v1368, %v1567
        %vm1570 = vcmp.eq.f32.partialorder %v1368, 0.0
        %v1571 = vand.u32 %v1368, 2147483648
        %v1572 = vsel %vm1570, %v1571, %v1569
        %v1573 = vrsqrt.pop %v1371
        %v1574 = vmul.f32 %v1573, %v1371
        %v1575 = vmul.f32 %v1574, %v1573
        %v1576 = vmul.f32 0.5, %v1575
        %v1577 = vsub.f32 1.5, %v1576
        %v1578 = vmul.f32 %v1573, %v1577
        %v1579 = vmul.f32 %v1371, %v1578
        %vm1580 = vcmp.eq.f32.partialorder %v1371, inf
        %v1581 = vsel %vm1580, %v1371, %v1579
        %vm1582 = vcmp.eq.f32.partialorder %v1371, 0.0
        %v1583 = vand.u32 %v1371, 2147483648
        %v1584 = vsel %vm1582, %v1583, %v1581
        %v1585 = vrsqrt.pop %v1374
        %v1586 = vmul.f32 %v1585, %v1374
        %v1587 = vmul.f32 %v1586, %v1585
        %v1588 = vmul.f32 0.5, %v1587
        %v1589 = vsub.f32 1.5, %v1588
        %v1590 = vmul.f32 %v1585, %v1589
        %v1591 = vmul.f32 %v1374, %v1590
        %vm1592 = vcmp.eq.f32.partialorder %v1374, inf
        %v1593 = vsel %vm1592, %v1374, %v1591
        %vm1594 = vcmp.eq.f32.partialorder %v1374, 0.0
        %v1595 = vand.u32 %v1374, 2147483648
        %v1596 = vsel %vm1594, %v1595, %v1593
        %v1597 = vrsqrt.pop %v1377
        %v1598 = vmul.f32 %v1597, %v1377
        %v1599 = vmul.f32 %v1598, %v1597
        %v1600 = vmul.f32 0.5, %v1599
        %v1601 = vsub.f32 1.5, %v1600
        %v1602 = vmul.f32 %v1597, %v1601
        %v1603 = vmul.f32 %v1377, %v1602
        %vm1604 = vcmp.eq.f32.partialorder %v1377, inf
        %v1605 = vsel %vm1604, %v1377, %v1603
        %vm1606 = vcmp.eq.f32.partialorder %v1377, 0.0
        %v1607 = vand.u32 %v1377, 2147483648
        %v1608 = vsel %vm1606, %v1607, %v1605
        %v1609 = vrsqrt.pop %v1380
        %v1610 = vmul.f32 %v1609, %v1380
        %v1611 = vmul.f32 %v1610, %v1609
        %v1612 = vmul.f32 0.5, %v1611
        %v1613 = vsub.f32 1.5, %v1612
        %v1614 = vmul.f32 %v1609, %v1613
        %v1615 = vmul.f32 %v1380, %v1614
        %vm1616 = vcmp.eq.f32.partialorder %v1380, inf
        %v1617 = vsel %vm1616, %v1380, %v1615
        %vm1618 = vcmp.eq.f32.partialorder %v1380, 0.0
        %v1619 = vand.u32 %v1380, 2147483648
        %v1620 = vsel %vm1618, %v1619, %v1617
        %v1621 = vrsqrt.pop %v1383
        %v1622 = vmul.f32 %v1621, %v1383
        %v1623 = vmul.f32 %v1622, %v1621
        %v1624 = vmul.f32 0.5, %v1623
        %v1625 = vsub.f32 1.5, %v1624
        %v1626 = vmul.f32 %v1621, %v1625
        %v1627 = vmul.f32 %v1383, %v1626
        %vm1628 = vcmp.eq.f32.partialorder %v1383, inf
        %v1629 = vsel %vm1628, %v1383, %v1627
        %vm1630 = vcmp.eq.f32.partialorder %v1383, 0.0
        %v1631 = vand.u32 %v1383, 2147483648
        %v1632 = vsel %vm1630, %v1631, %v1629
        %v1633 = vrsqrt.pop %v1386
        %v1634 = vmul.f32 %v1633, %v1386
        %v1635 = vmul.f32 %v1634, %v1633
        %v1636 = vmul.f32 0.5, %v1635
        %v1637 = vsub.f32 1.5, %v1636
        %v1638 = vmul.f32 %v1633, %v1637
        %v1639 = vmul.f32 %v1386, %v1638
        %vm1640 = vcmp.eq.f32.partialorder %v1386, inf
        %v1641 = vsel %vm1640, %v1386, %v1639
        %vm1642 = vcmp.eq.f32.partialorder %v1386, 0.0
        %v1643 = vand.u32 %v1386, 2147483648
        %v1644 = vsel %vm1642, %v1643, %v1641
        %v1645 = vrsqrt.pop %v1389
        %v1646 = vmul.f32 %v1645, %v1389
        %v1647 = vmul.f32 %v1646, %v1645
        %v1648 = vmul.f32 0.5, %v1647
        %v1649 = vsub.f32 1.5, %v1648
        %v1650 = vmul.f32 %v1645, %v1649
        %v1651 = vmul.f32 %v1389, %v1650
        %vm1652 = vcmp.eq.f32.partialorder %v1389, inf
        %v1653 = vsel %vm1652, %v1389, %v1651
        %vm1654 = vcmp.eq.f32.partialorder %v1389, 0.0
        %v1655 = vand.u32 %v1389, 2147483648
        %v1656 = vsel %vm1654, %v1655, %v1653
        %v1657 = vrsqrt.pop %v1392
        %v1658 = vmul.f32 %v1657, %v1392
        %v1659 = vmul.f32 %v1658, %v1657
        %v1660 = vmul.f32 0.5, %v1659
        %v1661 = vsub.f32 1.5, %v1660
        %v1662 = vmul.f32 %v1657, %v1661
        %v1663 = vmul.f32 %v1392, %v1662
        %vm1664 = vcmp.eq.f32.partialorder %v1392, inf
        %v1665 = vsel %vm1664, %v1392, %v1663
        %vm1666 = vcmp.eq.f32.partialorder %v1392, 0.0
        %v1667 = vand.u32 %v1392, 2147483648
        %v1668 = vsel %vm1666, %v1667, %v1665
        %v1669 = vrsqrt.pop %v1395
        %v1670 = vmul.f32 %v1669, %v1395
        %v1671 = vmul.f32 %v1670, %v1669
        %v1672 = vmul.f32 0.5, %v1671
        %v1673 = vsub.f32 1.5, %v1672
        %v1674 = vmul.f32 %v1669, %v1673
        %v1675 = vmul.f32 %v1395, %v1674
        %vm1676 = vcmp.eq.f32.partialorder %v1395, inf
        %v1677 = vsel %vm1676, %v1395, %v1675
        %vm1678 = vcmp.eq.f32.partialorder %v1395, 0.0
        %v1679 = vand.u32 %v1395, 2147483648
        %v1680 = vsel %vm1678, %v1679, %v1677
        %v1681 = vrsqrt.pop %v1398
        %v1682 = vmul.f32 %v1681, %v1398
        %v1683 = vmul.f32 %v1682, %v1681
        %v1684 = vmul.f32 0.5, %v1683
        %v1685 = vsub.f32 1.5, %v1684
        %v1686 = vmul.f32 %v1681, %v1685
        %v1687 = vmul.f32 %v1398, %v1686
        %vm1688 = vcmp.eq.f32.partialorder %v1398, inf
        %v1689 = vsel %vm1688, %v1398, %v1687
        %vm1690 = vcmp.eq.f32.partialorder %v1398, 0.0
        %v1691 = vand.u32 %v1398, 2147483648
        %v1692 = vsel %vm1690, %v1691, %v1689
        %v1693 = vrsqrt.pop %v1401
        %v1694 = vmul.f32 %v1693, %v1401
        %v1695 = vmul.f32 %v1694, %v1693
        %v1696 = vmul.f32 0.5, %v1695
        %v1697 = vsub.f32 1.5, %v1696
        %v1698 = vmul.f32 %v1693, %v1697
        %v1699 = vmul.f32 %v1401, %v1698
        %vm1700 = vcmp.eq.f32.partialorder %v1401, inf
        %v1701 = vsel %vm1700, %v1401, %v1699
        %vm1702 = vcmp.eq.f32.partialorder %v1401, 0.0
        %v1703 = vand.u32 %v1401, 2147483648
        %v1704 = vsel %vm1702, %v1703, %v1701
        %v1705 = vrsqrt.pop %v1404
        %v1706 = vmul.f32 %v1705, %v1404
        %v1707 = vmul.f32 %v1706, %v1705
        %v1708 = vmul.f32 0.5, %v1707
        %v1709 = vsub.f32 1.5, %v1708
        %v1710 = vmul.f32 %v1705, %v1709
        %v1711 = vmul.f32 %v1404, %v1710
        %vm1712 = vcmp.eq.f32.partialorder %v1404, inf
        %v1713 = vsel %vm1712, %v1404, %v1711
        %vm1714 = vcmp.eq.f32.partialorder %v1404, 0.0
        %v1715 = vand.u32 %v1404, 2147483648
        %v1716 = vsel %vm1714, %v1715, %v1713
        %v1717 = vrsqrt.pop %v1407
        %v1718 = vmul.f32 %v1717, %v1407
        %v1719 = vmul.f32 %v1718, %v1717
        %v1720 = vmul.f32 0.5, %v1719
        %v1721 = vsub.f32 1.5, %v1720
        %v1722 = vmul.f32 %v1717, %v1721
        %v1723 = vmul.f32 %v1407, %v1722
        %vm1724 = vcmp.eq.f32.partialorder %v1407, inf
        %v1725 = vsel %vm1724, %v1407, %v1723
        %vm1726 = vcmp.eq.f32.partialorder %v1407, 0.0
        %v1727 = vand.u32 %v1407, 2147483648
        %v1728 = vsel %vm1726, %v1727, %v1725
        %v1729 = vrsqrt.pop %v1410
        %v1730 = vmul.f32 %v1729, %v1410
        %v1731 = vmul.f32 %v1730, %v1729
        %v1732 = vmul.f32 0.5, %v1731
        %v1733 = vsub.f32 1.5, %v1732
        %v1734 = vmul.f32 %v1729, %v1733
        %v1735 = vmul.f32 %v1410, %v1734
        %vm1736 = vcmp.eq.f32.partialorder %v1410, inf
        %v1737 = vsel %vm1736, %v1410, %v1735
        %vm1738 = vcmp.eq.f32.partialorder %v1410, 0.0
        %v1739 = vand.u32 %v1410, 2147483648
        %v1740 = vsel %vm1738, %v1739, %v1737
        %v1741 = vrsqrt.pop %v1413
        %v1742 = vmul.f32 %v1741, %v1413
        %v1743 = vmul.f32 %v1742, %v1741
        %v1744 = vmul.f32 0.5, %v1743
        %v1745 = vsub.f32 1.5, %v1744
        %v1746 = vmul.f32 %v1741, %v1745
        %v1747 = vmul.f32 %v1413, %v1746
        %vm1748 = vcmp.eq.f32.partialorder %v1413, inf
        %v1749 = vsel %vm1748, %v1413, %v1747
        %vm1750 = vcmp.eq.f32.partialorder %v1413, 0.0
        %v1751 = vand.u32 %v1413, 2147483648
        %v1752 = vsel %vm1750, %v1751, %v1749
        %v1753 = vrsqrt.pop %v1416
        %v1754 = vmul.f32 %v1753, %v1416
        %v1755 = vmul.f32 %v1754, %v1753
        %v1756 = vmul.f32 0.5, %v1755
        %v1757 = vsub.f32 1.5, %v1756
        %v1758 = vmul.f32 %v1753, %v1757
        %v1759 = vmul.f32 %v1416, %v1758
        %vm1760 = vcmp.eq.f32.partialorder %v1416, inf
        %v1761 = vsel %vm1760, %v1416, %v1759
        %vm1762 = vcmp.eq.f32.partialorder %v1416, 0.0
        %v1763 = vand.u32 %v1416, 2147483648
        %v1764 = vsel %vm1762, %v1763, %v1761
        %v1765 = vrsqrt.pop %v1419
        %v1766 = vmul.f32 %v1765, %v1419
        %v1767 = vmul.f32 %v1766, %v1765
        %v1768 = vmul.f32 0.5, %v1767
        %v1769 = vsub.f32 1.5, %v1768
        %v1770 = vmul.f32 %v1765, %v1769
        %v1771 = vmul.f32 %v1419, %v1770
        %vm1772 = vcmp.eq.f32.partialorder %v1419, inf
        %v1773 = vsel %vm1772, %v1419, %v1771
        %vm1774 = vcmp.eq.f32.partialorder %v1419, 0.0
        %v1775 = vand.u32 %v1419, 2147483648
        %v1776 = vsel %vm1774, %v1775, %v1773
        %v1777 = vrsqrt.pop %v1422
        %v1778 = vmul.f32 %v1777, %v1422
        %v1779 = vmul.f32 %v1778, %v1777
        %v1780 = vmul.f32 0.5, %v1779
        %v1781 = vsub.f32 1.5, %v1780
        %v1782 = vmul.f32 %v1777, %v1781
        %v1783 = vmul.f32 %v1422, %v1782
        %vm1784 = vcmp.eq.f32.partialorder %v1422, inf
        %v1785 = vsel %vm1784, %v1422, %v1783
        %vm1786 = vcmp.eq.f32.partialorder %v1422, 0.0
        %v1787 = vand.u32 %v1422, 2147483648
        %v1788 = vsel %vm1786, %v1787, %v1785
        %v1789 = vrsqrt.pop %v1425
        %v1790 = vmul.f32 %v1789, %v1425
        %v1791 = vmul.f32 %v1790, %v1789
        %v1792 = vmul.f32 0.5, %v1791
        %v1793 = vsub.f32 1.5, %v1792
        %v1794 = vmul.f32 %v1789, %v1793
        %v1795 = vmul.f32 %v1425, %v1794
        %vm1796 = vcmp.eq.f32.partialorder %v1425, inf
        %v1797 = vsel %vm1796, %v1425, %v1795
        %vm1798 = vcmp.eq.f32.partialorder %v1425, 0.0
        %v1799 = vand.u32 %v1425, 2147483648
        %v1800 = vsel %vm1798, %v1799, %v1797
        %v1801 = vrsqrt.pop %v1428
        %v1802 = vmul.f32 %v1801, %v1428
        %v1803 = vmul.f32 %v1802, %v1801
        %v1804 = vmul.f32 0.5, %v1803
        %v1805 = vsub.f32 1.5, %v1804
        %v1806 = vmul.f32 %v1801, %v1805
        %v1807 = vmul.f32 %v1428, %v1806
        %vm1808 = vcmp.eq.f32.partialorder %v1428, inf
        %v1809 = vsel %vm1808, %v1428, %v1807
        %vm1810 = vcmp.eq.f32.partialorder %v1428, 0.0
        %v1811 = vand.u32 %v1428, 2147483648
        %v1812 = vsel %vm1810, %v1811, %v1809
        %v1813 = vsel %vm757, %v1045, %v1440
        %v1814 = vsel %vm757, %v1046, %v1452
        %v1815 = vsel %vm757, %v1047, %v1464
        %v1816 = vsel %vm757, %v1048, %v1476
        %v1817 = vsel %vm757, %v1049, %v1488
        %v1818 = vsel %vm757, %v1050, %v1500
        %v1819 = vsel %vm757, %v1051, %v1512
        %v1820 = vsel %vm757, %v1052, %v1524
        %v1821 = vsel %vm757, %v1053, %v1536
        %v1822 = vsel %vm757, %v1054, %v1548
        %v1823 = vsel %vm757, %v1055, %v1560
        %v1824 = vsel %vm757, %v1056, %v1572
        %v1825 = vsel %vm757, %v1057, %v1584
        %v1826 = vsel %vm757, %v1058, %v1596
        %v1827 = vsel %vm757, %v1059, %v1608
        %v1828 = vsel %vm757, %v1060, %v1620
        %v1829 = vsel %vm757, %v1061, %v1632
        %v1830 = vsel %vm757, %v1062, %v1644
        %v1831 = vsel %vm757, %v1063, %v1656
        %v1832 = vsel %vm757, %v1064, %v1668
        %v1833 = vsel %vm757, %v1065, %v1680
        %v1834 = vsel %vm757, %v1066, %v1692
        %v1835 = vsel %vm757, %v1067, %v1704
        %v1836 = vsel %vm757, %v1068, %v1716
        %v1837 = vsel %vm757, %v1069, %v1728
        %v1838 = vsel %vm757, %v1070, %v1740
        %v1839 = vsel %vm757, %v1071, %v1752
        %v1840 = vsel %vm757, %v1072, %v1764
        %v1841 = vsel %vm757, %v1073, %v1776
        %v1842 = vsel %vm757, %v1074, %v1788
        %v1843 = vsel %vm757, %v1075, %v1800
        %v1844 = vsel %vm757, %v1076, %v1812
        %v1845 = vld [vmem:[%s7] sm:$0xff]
        %v1846 = vld [vmem:[%s7 + $0x8] sm:$0xff]
        %v1847 = vld [vmem:[%s7 + $0x10] sm:$0xff]
        %v1848 = vld [vmem:[%s7 + $0x18] sm:$0xff]
        %v1849 = vld [vmem:[%s8] sm:$0x1]
        %v1850 = vpack.c.bf16 %v725, %v724
        %v1851 = vpack.c.bf16 %v727, %v726
        %v1852 = vpack.c.bf16 %v946, %v945
        %v1853 = vpack.c.bf16 %v948, %v947
        %vm1854 = vcmask 261120
        %v1856 = vsel %vm1854, %v1850, 0
        %v1859 = vsel %vm1854, %v1851, 0
        %1861 = vmatpush.bf16.msra.mxu0 0
        %1862 = vmatpush.bf16.msra.mxu0 0
        %1863 = vmatpush.bf16.msra.mxu0 0
        %1864 = vmatpush.bf16.msra.mxu0 0
        %1865 = vmatpush.bf16.msra.mxu0 0
        %1866 = vmatpush.bf16.msra.mxu0 0
        %1867 = vmatpush.bf16.msra.mxu0 %v1853
        %1868 = vmatpush.bf16.msra.mxu0 %v1852
        %1869 = vmatmul.bf16.gmra.mxu0 %v1856
        %v1870 = vpop.f32.mrf.mxu0
        %v1871 = vadd.f32 0.0, %v1870
        %v1872 = vpop.f32.mrf.mxu0
        %v1873 = vadd.f32 0.0, %v1872
        %1874 = vmatmul.bf16.gmra.mxu0 %v1859
        %v1875 = vpop.f32.mrf.mxu0
        %v1876 = vadd.f32 0.0, %v1875
        %v1877 = vpop.f32.mrf.mxu0
        %v1878 = vadd.f32 0.0, %v1877
        %1879 = vdwg.mxu0
        %v1880 = vmul.f32 %v1871, 0.25
        %v1881 = vmul.f32 %v1873, 0.25
        %v1882 = vmul.f32 %v1876, 0.25
        %v1883 = vmul.f32 %v1878, 0.25
        %v1884 = vpack.c.bf16 %v729, %v728
        %v1885 = vpack.c.bf16 %v731, %v730
        %v1887 = vsel %vm1854, %v1884, 0
        %v1890 = vsel %vm1854, %v1885, 0
        %1892 = vmatpush.bf16.msra.mxu0 0
        %1893 = vmatpush.bf16.msra.mxu0 0
        %1894 = vmatpush.bf16.msra.mxu0 0
        %1895 = vmatpush.bf16.msra.mxu0 0
        %1896 = vmatpush.bf16.msra.mxu0 0
        %1897 = vmatpush.bf16.msra.mxu0 0
        %1898 = vmatpush.bf16.msra.mxu0 %v1853
        %1899 = vmatpush.bf16.msra.mxu0 %v1852
        %1900 = vmatmul.bf16.gmra.mxu0 %v1887
        %v1901 = vpop.f32.mrf.mxu0
        %v1902 = vadd.f32 0.0, %v1901
        %v1903 = vpop.f32.mrf.mxu0
        %v1904 = vadd.f32 0.0, %v1903
        %1905 = vmatmul.bf16.gmra.mxu0 %v1890
        %v1906 = vpop.f32.mrf.mxu0
        %v1907 = vadd.f32 0.0, %v1906
        %v1908 = vpop.f32.mrf.mxu0
        %v1909 = vadd.f32 0.0, %v1908
        %1910 = vdwg.mxu0
        %v1911 = vmul.f32 %v1902, 0.25
        %v1912 = vmul.f32 %v1904, 0.25
        %v1913 = vmul.f32 %v1907, 0.25
        %v1914 = vmul.f32 %v1909, 0.25
        %v1915 = vpack.c.bf16 %v734, %v732
        %v1916 = vpack.c.bf16 %v735, %v733
        %v1917 = vpack.c.bf16 %v738, %v736
        %v1918 = vpack.c.bf16 %v739, %v737
        %v1919 = vpack.c.bf16 %v1814, %v1813
        %v1920 = vpack.c.bf16 %v1816, %v1815
        %v1921 = vpack.c.bf16 %v1818, %v1817
        %v1922 = vpack.c.bf16 %v1820, %v1819
        %v1923 = vpack.c.bf16 %v1822, %v1821
        %v1924 = vpack.c.bf16 %v1824, %v1823
        %v1925 = vpack.c.bf16 %v1826, %v1825
        %v1926 = vpack.c.bf16 %v1828, %v1827
        %v1927 = vpack.c.bf16 %v1830, %v1829
        %v1928 = vpack.c.bf16 %v1832, %v1831
        %v1929 = vpack.c.bf16 %v1834, %v1833
        %v1930 = vpack.c.bf16 %v1836, %v1835
        %v1931 = vpack.c.bf16 %v1838, %v1837
        %v1932 = vpack.c.bf16 %v1840, %v1839
        %v1933 = vpack.c.bf16 %v1842, %v1841
        %v1934 = vpack.c.bf16 %v1844, %v1843
        %1935 = vmatpush.bf16.msra.mxu0 %v1926
        %1936 = vmatpush.bf16.msra.mxu0 %v1925
        %1937 = vmatpush.bf16.msra.mxu0 %v1924
        %1938 = vmatpush.bf16.msra.mxu0 %v1923
        %1939 = vmatpush.bf16.msra.mxu0 %v1922
        %1940 = vmatpush.bf16.msra.mxu0 %v1921
        %1941 = vmatpush.bf16.msra.mxu0 %v1920
        %1942 = vmatpush.bf16.msra.mxu0 %v1919
        %1943 = vmatmul.bf16.gmra.mxu0 %v1915
        %v1944 = vpop.f32.mrf.mxu0
        %v1945 = vadd.f32 0.0, %v1944
        %v1946 = vpop.f32.mrf.mxu0
        %v1947 = vadd.f32 0.0, %v1946
        %1948 = vmatmul.bf16.gmra.mxu0 %v1917
        %v1949 = vpop.f32.mrf.mxu0
        %v1950 = vadd.f32 0.0, %v1949
        %v1951 = vpop.f32.mrf.mxu0
        %v1952 = vadd.f32 0.0, %v1951
        %1953 = vdwg.mxu0
        %1954 = vmatpush.bf16.msra.mxu0 %v1934
        %1955 = vmatpush.bf16.msra.mxu0 %v1933
        %1956 = vmatpush.bf16.msra.mxu0 %v1932
        %1957 = vmatpush.bf16.msra.mxu0 %v1931
        %1958 = vmatpush.bf16.msra.mxu0 %v1930
        %1959 = vmatpush.bf16.msra.mxu0 %v1929
        %1960 = vmatpush.bf16.msra.mxu0 %v1928
        %1961 = vmatpush.bf16.msra.mxu0 %v1927
        %1962 = vmatmul.bf16.gmra.mxu0 %v1916
        %v1963 = vpop.f32.mrf.mxu0
        %v1964 = vadd.f32 %v1945, %v1963
        %v1965 = vpop.f32.mrf.mxu0
        %v1966 = vadd.f32 %v1947, %v1965
        %1967 = vmatmul.bf16.gmra.mxu0 %v1918
        %v1968 = vpop.f32.mrf.mxu0
        %v1969 = vadd.f32 %v1950, %v1968
        %v1970 = vpop.f32.mrf.mxu0
        %v1971 = vadd.f32 %v1952, %v1970
        %1972 = vdwg.mxu0
        %v1973 = vmul.f32 %v1964, 0.25
        %v1974 = vmul.f32 %v1966, 0.25
        %v1975 = vmul.f32 %v1969, 0.25
        %v1976 = vmul.f32 %v1971, 0.25
        %v1977 = vpack.c.bf16 %v742, %v740
        %v1978 = vpack.c.bf16 %v743, %v741
        %v1979 = vpack.c.bf16 %v746, %v744
        %v1980 = vpack.c.bf16 %v747, %v745
        %1981 = vmatpush.bf16.msra.mxu0 %v1926
        %1982 = vmatpush.bf16.msra.mxu0 %v1925
        %1983 = vmatpush.bf16.msra.mxu0 %v1924
        %1984 = vmatpush.bf16.msra.mxu0 %v1923
        %1985 = vmatpush.bf16.msra.mxu0 %v1922
        %1986 = vmatpush.bf16.msra.mxu0 %v1921
        %1987 = vmatpush.bf16.msra.mxu0 %v1920
        %1988 = vmatpush.bf16.msra.mxu0 %v1919
        %1989 = vmatmul.bf16.gmra.mxu0 %v1977
        %v1990 = vpop.f32.mrf.mxu0
        %v1991 = vadd.f32 0.0, %v1990
        %v1992 = vpop.f32.mrf.mxu0
        %v1993 = vadd.f32 0.0, %v1992
        %1994 = vmatmul.bf16.gmra.mxu0 %v1979
        %v1995 = vpop.f32.mrf.mxu0
        %v1996 = vadd.f32 0.0, %v1995
        %v1997 = vpop.f32.mrf.mxu0
        %v1998 = vadd.f32 0.0, %v1997
        %1999 = vdwg.mxu0
        %2000 = vmatpush.bf16.msra.mxu0 %v1934
        %2001 = vmatpush.bf16.msra.mxu0 %v1933
        %2002 = vmatpush.bf16.msra.mxu0 %v1932
        %2003 = vmatpush.bf16.msra.mxu0 %v1931
        %2004 = vmatpush.bf16.msra.mxu0 %v1930
        %2005 = vmatpush.bf16.msra.mxu0 %v1929
        %2006 = vmatpush.bf16.msra.mxu0 %v1928
        %2007 = vmatpush.bf16.msra.mxu0 %v1927
        %2008 = vmatmul.bf16.gmra.mxu0 %v1978
        %v2009 = vpop.f32.mrf.mxu0
        %v2010 = vadd.f32 %v1991, %v2009
        %v2011 = vpop.f32.mrf.mxu0
        %v2012 = vadd.f32 %v1993, %v2011
        %2013 = vmatmul.bf16.gmra.mxu0 %v1980
        %v2014 = vpop.f32.mrf.mxu0
        %v2015 = vadd.f32 %v1996, %v2014
        %v2016 = vpop.f32.mrf.mxu0
        %v2017 = vadd.f32 %v1998, %v2016
        %2018 = vdwg.mxu0
        %v2019 = vmul.f32 %v2010, 0.25
        %v2020 = vmul.f32 %v2012, 0.25
        %v2021 = vmul.f32 %v2015, 0.25
        %v2022 = vmul.f32 %v2017, 0.25
        %v2023 = vpack.c.bf16 %v1845, %v1845
        %v2024 = vpack.c.bf16 %v1881, %v1880
        %v2025 = vpack.c.bf16 %v1883, %v1882
        %v2026 = vpack.c.bf16 %v1846, %v1846
        %vm2027 = vcmask 64512
        %v2029 = vsel %vm2027, %v2024, 0
        %v2032 = vsel %vm2027, %v2025, 0
        %vm2034 = vcmask 1043456
        %v2036 = vsel %vm2034, %v2026, 0
        %2038 = vmatpush.bf16.msra.mxu0 0
        %2039 = vmatpush.bf16.msra.mxu0 0
        %2040 = vmatpush.bf16.msra.mxu0 0
        %2041 = vmatpush.bf16.msra.mxu0 0
        %2042 = vmatpush.bf16.msra.mxu0 0
        %2043 = vmatpush.bf16.msra.mxu0 0
        %2044 = vmatpush.bf16.msra.mxu0 0
        %2045 = vmatpush.bf16.msra.mxu0 %v2036
        %2046 = vmatmul.bf16.gmra.mxu0 %v2029
        %v2047 = vpop.f32.mrf.mxu0
        %v2048 = vadd.f32 0.0, %v2047
        %v2049 = vpop.f32.mrf.mxu0
        %v2050 = vadd.f32 0.0, %v2049
        %2051 = vmatmul.bf16.gmra.mxu0 %v2032
        %v2052 = vpop.f32.mrf.mxu0
        %v2053 = vadd.f32 0.0, %v2052
        %v2054 = vpop.f32.mrf.mxu0
        %v2055 = vadd.f32 0.0, %v2054
        %2056 = vdwg.mxu0
        %v2058 = vsel %vm2027, %v1852, 0
        %v2061 = vsel %vm2027, %v1853, 0
        %v2064 = vsel %vm2034, %v2023, 0
        %2066 = vmatpush.bf16.msra.mxu0 0
        %2067 = vmatpush.bf16.msra.mxu0 0
        %2068 = vmatpush.bf16.msra.mxu0 0
        %2069 = vmatpush.bf16.msra.mxu0 0
        %2070 = vmatpush.bf16.msra.mxu0 0
        %2071 = vmatpush.bf16.msra.mxu0 0
        %2072 = vmatpush.bf16.msra.mxu0 0
        %2073 = vmatpush.bf16.msra.mxu0 %v2064
        %2074 = vmatmul.bf16.gmra.mxu0 %v2058
        %v2075 = vpop.f32.mrf.mxu0
        %v2076 = vadd.f32 %v2048, %v2075
        %v2077 = vpop.f32.mrf.mxu0
        %v2078 = vadd.f32 %v2050, %v2077
        %2079 = vmatmul.bf16.gmra.mxu0 %v2061
        %v2080 = vpop.f32.mrf.mxu0
        %v2081 = vadd.f32 %v2053, %v2080
        %v2082 = vpop.f32.mrf.mxu0
        %v2083 = vadd.f32 %v2055, %v2082
        %2084 = vdwg.mxu0
        %v2085 = vpack.c.bf16 %v1912, %v1911
        %v2086 = vpack.c.bf16 %v1914, %v1913
        %v2087 = vpack.c.bf16 %v1847, %v1847
        %v2089 = vsel %vm2027, %v2085, 0
        %v2092 = vsel %vm2027, %v2086, 0
        %v2095 = vsel %vm2034, %v2087, 0
        %2097 = vmatpush.bf16.msra.mxu0 0
        %2098 = vmatpush.bf16.msra.mxu0 0
        %2099 = vmatpush.bf16.msra.mxu0 0
        %2100 = vmatpush.bf16.msra.mxu0 0
        %2101 = vmatpush.bf16.msra.mxu0 0
        %2102 = vmatpush.bf16.msra.mxu0 0
        %2103 = vmatpush.bf16.msra.mxu0 0
        %2104 = vmatpush.bf16.msra.mxu0 %v2095
        %2105 = vmatmul.bf16.gmra.mxu0 %v2089
        %v2106 = vpop.f32.mrf.mxu0
        %v2107 = vadd.f32 0.0, %v2106
        %v2108 = vpop.f32.mrf.mxu0
        %v2109 = vadd.f32 0.0, %v2108
        %2110 = vmatmul.bf16.gmra.mxu0 %v2092
        %v2111 = vpop.f32.mrf.mxu0
        %v2112 = vadd.f32 0.0, %v2111
        %v2113 = vpop.f32.mrf.mxu0
        %v2114 = vadd.f32 0.0, %v2113
        %2115 = vdwg.mxu0
        %v2116 = vadd.f32 %v2076, %v2107
        %v2117 = vadd.f32 %v2078, %v2109
        %v2118 = vadd.f32 %v2081, %v2112
        %v2119 = vadd.f32 %v2083, %v2114
        %v2120 = vpack.c.bf16 %v1974, %v1973
        %v2121 = vpack.c.bf16 %v1976, %v1975
        %v2122 = vpack.c.bf16 %v1848, %v1848
        %v2124 = vsel %vm939, %v2120, 0
        %v2127 = vsel %vm939, %v2121, 0
        %vm2129 = vcmask 1041408
        %v2131 = vsel %vm2129, %v2122, 0
        %2133 = vmatpush.bf16.msra.mxu0 0
        %2134 = vmatpush.bf16.msra.mxu0 0
        %2135 = vmatpush.bf16.msra.mxu0 0
        %2136 = vmatpush.bf16.msra.mxu0 0
        %2137 = vmatpush.bf16.msra.mxu0 0
        %2138 = vmatpush.bf16.msra.mxu0 0
        %2139 = vmatpush.bf16.msra.mxu0 0
        %2140 = vmatpush.bf16.msra.mxu0 %v2131
        %2141 = vmatmul.bf16.gmra.mxu0 %v2124
        %v2142 = vpop.f32.mrf.mxu0
        %v2143 = vadd.f32 0.0, %v2142
        %v2144 = vpop.f32.mrf.mxu0
        %v2145 = vadd.f32 0.0, %v2144
        %2146 = vmatmul.bf16.gmra.mxu0 %v2127
        %v2147 = vpop.f32.mrf.mxu0
        %v2148 = vadd.f32 0.0, %v2147
        %v2149 = vpop.f32.mrf.mxu0
        %v2150 = vadd.f32 0.0, %v2149
        %2151 = vdwg.mxu0
        %v2152 = vadd.f32 %v2116, %v2143
        %v2153 = vadd.f32 %v2117, %v2145
        %v2154 = vadd.f32 %v2118, %v2148
        %v2155 = vadd.f32 %v2119, %v2150
        %v2156 = vpack.c.bf16 %v2020, %v2019
        %v2157 = vpack.c.bf16 %v2022, %v2021
        %v2159 = vrot.slane %v2122, 2
        %v2161 = vsel %vm939, %v2156, 0
        %v2164 = vsel %vm939, %v2157, 0
        %v2167 = vsel %vm2129, %v2159, 0
        %2169 = vmatpush.bf16.msra.mxu0 0
        %2170 = vmatpush.bf16.msra.mxu0 0
        %2171 = vmatpush.bf16.msra.mxu0 0
        %2172 = vmatpush.bf16.msra.mxu0 0
        %2173 = vmatpush.bf16.msra.mxu0 0
        %2174 = vmatpush.bf16.msra.mxu0 0
        %2175 = vmatpush.bf16.msra.mxu0 0
        %2176 = vmatpush.bf16.msra.mxu0 %v2167
        %2177 = vmatmul.bf16.gmra.mxu0 %v2161
        %v2178 = vpop.f32.mrf.mxu0
        %v2179 = vadd.f32 0.0, %v2178
        %v2180 = vpop.f32.mrf.mxu0
        %v2181 = vadd.f32 0.0, %v2180
        %2182 = vmatmul.bf16.gmra.mxu0 %v2164
        %v2183 = vpop.f32.mrf.mxu0
        %v2184 = vadd.f32 0.0, %v2183
        %v2185 = vpop.f32.mrf.mxu0
        %v2186 = vadd.f32 0.0, %v2185
        %2187 = vdwg.mxu0
        %v2188 = vadd.f32 %v2152, %v2179
        %v2189 = vadd.f32 %v2153, %v2181
        %v2190 = vadd.f32 %v2154, %v2184
        %v2191 = vadd.f32 %v2155, %v2186
        %v2193 = vperm.slane %v1849, 0
        %v2195 = vadd.f32 %v2188, %v2193
        %v2196 = vadd.f32 %v2189, %v2193
        %v2197 = vadd.f32 %v2190, %v2193
        %v2198 = vadd.f32 %v2191, %v2193
        %v2199 = vtanh.pop %v2195
        %v2200 = vtanh.pop %v2196
        %v2201 = vtanh.pop %v2197
        %v2202 = vtanh.pop %v2198
        %v2203 = vld [vmem:[%s11] sm:$0xf]
        %v2204 = vpack.c.bf16 %v2203, %v2203
        %v2205 = vld [vmem:[%s12] sm:$0x1]
        %v2207 = vperm.slane %v2205, 0
        %v2210 = vsel %vm939, %v1919, 0
        %v2213 = vsel %vm939, %v1920, 0
        %v2216 = vsel %vm939, %v1921, 0
        %v2219 = vsel %vm939, %v1922, 0
        %v2222 = vsel %vm939, %v1923, 0
        %v2225 = vsel %vm939, %v1924, 0
        %v2228 = vsel %vm939, %v1925, 0
        %v2231 = vsel %vm939, %v1926, 0
        %v2234 = vsel %vm939, %v1927, 0
        %v2237 = vsel %vm939, %v1928, 0
        %v2240 = vsel %vm939, %v1929, 0
        %v2243 = vsel %vm939, %v1930, 0
        %v2246 = vsel %vm939, %v1931, 0
        %v2249 = vsel %vm939, %v1932, 0
        %v2252 = vsel %vm939, %v1933, 0
        %v2255 = vsel %vm939, %v1934, 0
        %v2258 = vsel %vm2129, %v2204, 0
        %2260 = vmatpush.bf16.msra.mxu0 0
        %2261 = vmatpush.bf16.msra.mxu0 0
        %2262 = vmatpush.bf16.msra.mxu0 0
        %2263 = vmatpush.bf16.msra.mxu0 0
        %2264 = vmatpush.bf16.msra.mxu0 0
        %2265 = vmatpush.bf16.msra.mxu0 0
        %2266 = vmatpush.bf16.msra.mxu0 0
        %2267 = vmatpush.bf16.msra.mxu0 %v2258
        %2268 = vmatmul.bf16.gmra.mxu0 %v2210
        %v2269 = vpop.f32.mrf.mxu0
        %v2270 = vadd.f32 %v2207, %v2269
        %v2271 = vpop.f32.mrf.mxu0
        %v2272 = vadd.f32 %v2207, %v2271
        %2273 = vmatmul.bf16.gmra.mxu0 %v2213
        %v2274 = vpop.f32.mrf.mxu0
        %v2275 = vadd.f32 %v2207, %v2274
        %v2276 = vpop.f32.mrf.mxu0
        %v2277 = vadd.f32 %v2207, %v2276
        %2278 = vmatmul.bf16.gmra.mxu0 %v2216
        %v2279 = vpop.f32.mrf.mxu0
        %v2280 = vadd.f32 %v2207, %v2279
        %v2281 = vpop.f32.mrf.mxu0
        %v2282 = vadd.f32 %v2207, %v2281
        %2283 = vmatmul.bf16.gmra.mxu0 %v2219
        %v2284 = vpop.f32.mrf.mxu0
        %v2285 = vadd.f32 %v2207, %v2284
        %v2286 = vpop.f32.mrf.mxu0
        %v2287 = vadd.f32 %v2207, %v2286
        %2288 = vmatmul.bf16.gmra.mxu0 %v2222
        %v2289 = vpop.f32.mrf.mxu0
        %v2290 = vadd.f32 %v2207, %v2289
        %v2291 = vpop.f32.mrf.mxu0
        %v2292 = vadd.f32 %v2207, %v2291
        %2293 = vmatmul.bf16.gmra.mxu0 %v2225
        %v2294 = vpop.f32.mrf.mxu0
        %v2295 = vadd.f32 %v2207, %v2294
        %v2296 = vpop.f32.mrf.mxu0
        %v2297 = vadd.f32 %v2207, %v2296
        %2298 = vmatmul.bf16.gmra.mxu0 %v2228
        %v2299 = vpop.f32.mrf.mxu0
        %v2300 = vadd.f32 %v2207, %v2299
        %v2301 = vpop.f32.mrf.mxu0
        %v2302 = vadd.f32 %v2207, %v2301
        %2303 = vmatmul.bf16.gmra.mxu0 %v2231
        %v2304 = vpop.f32.mrf.mxu0
        %v2305 = vadd.f32 %v2207, %v2304
        %v2306 = vpop.f32.mrf.mxu0
        %v2307 = vadd.f32 %v2207, %v2306
        %2308 = vmatmul.bf16.gmra.mxu0 %v2234
        %v2309 = vpop.f32.mrf.mxu0
        %v2310 = vadd.f32 %v2207, %v2309
        %v2311 = vpop.f32.mrf.mxu0
        %v2312 = vadd.f32 %v2207, %v2311
        %2313 = vmatmul.bf16.gmra.mxu0 %v2237
        %v2314 = vpop.f32.mrf.mxu0
        %v2315 = vadd.f32 %v2207, %v2314
        %v2316 = vpop.f32.mrf.mxu0
        %v2317 = vadd.f32 %v2207, %v2316
        %2318 = vmatmul.bf16.gmra.mxu0 %v2240
        %v2319 = vpop.f32.mrf.mxu0
        %v2320 = vadd.f32 %v2207, %v2319
        %v2321 = vpop.f32.mrf.mxu0
        %v2322 = vadd.f32 %v2207, %v2321
        %2323 = vmatmul.bf16.gmra.mxu0 %v2243
        %v2324 = vpop.f32.mrf.mxu0
        %v2325 = vadd.f32 %v2207, %v2324
        %v2326 = vpop.f32.mrf.mxu0
        %v2327 = vadd.f32 %v2207, %v2326
        %2328 = vmatmul.bf16.gmra.mxu0 %v2246
        %v2329 = vpop.f32.mrf.mxu0
        %v2330 = vadd.f32 %v2207, %v2329
        %v2331 = vpop.f32.mrf.mxu0
        %v2332 = vadd.f32 %v2207, %v2331
        %2333 = vmatmul.bf16.gmra.mxu0 %v2249
        %v2334 = vpop.f32.mrf.mxu0
        %v2335 = vadd.f32 %v2207, %v2334
        %v2336 = vpop.f32.mrf.mxu0
        %v2337 = vadd.f32 %v2207, %v2336
        %2338 = vmatmul.bf16.gmra.mxu0 %v2252
        %v2339 = vpop.f32.mrf.mxu0
        %v2340 = vadd.f32 %v2207, %v2339
        %v2341 = vpop.f32.mrf.mxu0
        %v2342 = vadd.f32 %v2207, %v2341
        %2343 = vmatmul.bf16.gmra.mxu0 %v2255
        %v2344 = vpop.f32.mrf.mxu0
        %v2345 = vadd.f32 %v2207, %v2344
        %v2346 = vpop.f32.mrf.mxu0
        %v2347 = vadd.f32 %v2207, %v2346
        %2348 = vdwg.mxu0
        %v2349 = vtanh.pop %v2270
        %v2350 = vtanh.pop %v2272
        %v2351 = vtanh.pop %v2275
        %v2352 = vtanh.pop %v2277
        %v2353 = vtanh.pop %v2280
        %v2354 = vtanh.pop %v2282
        %v2355 = vtanh.pop %v2285
        %v2356 = vtanh.pop %v2287
        %v2357 = vtanh.pop %v2290
        %v2358 = vtanh.pop %v2292
        %v2359 = vtanh.pop %v2295
        %v2360 = vtanh.pop %v2297
        %v2361 = vtanh.pop %v2300
        %v2362 = vtanh.pop %v2302
        %v2363 = vtanh.pop %v2305
        %v2364 = vtanh.pop %v2307
        %v2365 = vtanh.pop %v2310
        %v2366 = vtanh.pop %v2312
        %v2367 = vtanh.pop %v2315
        %v2368 = vtanh.pop %v2317
        %v2369 = vtanh.pop %v2320
        %v2370 = vtanh.pop %v2322
        %v2371 = vtanh.pop %v2325
        %v2372 = vtanh.pop %v2327
        %v2373 = vtanh.pop %v2330
        %v2374 = vtanh.pop %v2332
        %v2375 = vtanh.pop %v2335
        %v2376 = vtanh.pop %v2337
        %v2377 = vtanh.pop %v2340
        %v2378 = vtanh.pop %v2342
        %v2379 = vtanh.pop %v2345
        %v2380 = vtanh.pop %v2347
        %v2381 = vld [vmem:[%s9] sm:$0xff]
        %v2382 = vld [vmem:[%s9 + $0x8] sm:$0xff]
        %v2383 = vld [vmem:[%s9 + $0x10] sm:$0xff]
        %v2384 = vld [vmem:[%s9 + $0x18] sm:$0xff]
        %v2385 = vld [vmem:[%s9 + $0x20] sm:$0xff]
        %v2386 = vld [vmem:[%s9 + $0x28] sm:$0xff]
        %v2387 = vld [vmem:[%s9 + $0x30] sm:$0xff]
        %v2388 = vld [vmem:[%s9 + $0x38] sm:$0xff]
        %v2389 = vld [vmem:[%s10] sm:$0x1]
        %v2390 = vpack.c.bf16 %v2200, %v2199
        %v2391 = vpack.c.bf16 %v2202, %v2201
        %2392 = vmatpush.bf16.msra.mxu0 0
        %2393 = vmatpush.bf16.msra.mxu0 0
        %2394 = vmatpush.bf16.msra.mxu0 0
        %2395 = vmatpush.bf16.msra.mxu0 0
        %2396 = vmatpush.bf16.msra.mxu0 0
        %2397 = vmatpush.bf16.msra.mxu0 0
        %2398 = vmatpush.bf16.msra.mxu0 %v2391
        %2399 = vmatpush.bf16.msra.mxu0 %v2390
        %2400 = vmatmul.bf16.gmra.mxu0 %v1856
        %v2401 = vpop.f32.mrf.mxu0
        %v2402 = vadd.f32 0.0, %v2401
        %v2403 = vpop.f32.mrf.mxu0
        %v2404 = vadd.f32 0.0, %v2403
        %2405 = vmatmul.bf16.gmra.mxu0 %v1859
        %v2406 = vpop.f32.mrf.mxu0
        %v2407 = vadd.f32 0.0, %v2406
        %v2408 = vpop.f32.mrf.mxu0
        %v2409 = vadd.f32 0.0, %v2408
        %2410 = vdwg.mxu0
        %v2411 = vmul.f32 %v2402, 0.25
        %v2412 = vmul.f32 %v2404, 0.25
        %v2413 = vmul.f32 %v2407, 0.25
        %v2414 = vmul.f32 %v2409, 0.25
        %2415 = vmatpush.bf16.msra.mxu0 0
        %2416 = vmatpush.bf16.msra.mxu0 0
        %2417 = vmatpush.bf16.msra.mxu0 0
        %2418 = vmatpush.bf16.msra.mxu0 0
        %2419 = vmatpush.bf16.msra.mxu0 0
        %2420 = vmatpush.bf16.msra.mxu0 0
        %2421 = vmatpush.bf16.msra.mxu0 %v2391
        %2422 = vmatpush.bf16.msra.mxu0 %v2390
        %2423 = vmatmul.bf16.gmra.mxu0 %v1887
        %v2424 = vpop.f32.mrf.mxu0
        %v2425 = vadd.f32 0.0, %v2424
        %v2426 = vpop.f32.mrf.mxu0
        %v2427 = vadd.f32 0.0, %v2426
        %2428 = vmatmul.bf16.gmra.mxu0 %v1890
        %v2429 = vpop.f32.mrf.mxu0
        %v2430 = vadd.f32 0.0, %v2429
        %v2431 = vpop.f32.mrf.mxu0
        %v2432 = vadd.f32 0.0, %v2431
        %2433 = vdwg.mxu0
        %v2434 = vmul.f32 %v2425, 0.25
        %v2435 = vmul.f32 %v2427, 0.25
        %v2436 = vmul.f32 %v2430, 0.25
        %v2437 = vmul.f32 %v2432, 0.25
        %v2438 = vpack.c.bf16 %v2350, %v2349
        %v2439 = vpack.c.bf16 %v2352, %v2351
        %v2440 = vpack.c.bf16 %v2354, %v2353
        %v2441 = vpack.c.bf16 %v2356, %v2355
        %v2442 = vpack.c.bf16 %v2358, %v2357
        %v2443 = vpack.c.bf16 %v2360, %v2359
        %v2444 = vpack.c.bf16 %v2362, %v2361
        %v2445 = vpack.c.bf16 %v2364, %v2363
        %v2446 = vpack.c.bf16 %v2366, %v2365
        %v2447 = vpack.c.bf16 %v2368, %v2367
        %v2448 = vpack.c.bf16 %v2370, %v2369
        %v2449 = vpack.c.bf16 %v2372, %v2371
        %v2450 = vpack.c.bf16 %v2374, %v2373
        %v2451 = vpack.c.bf16 %v2376, %v2375
        %v2452 = vpack.c.bf16 %v2378, %v2377
        %v2453 = vpack.c.bf16 %v2380, %v2379
        %2454 = vmatpush.bf16.msra.mxu0 %v2445
        %2455 = vmatpush.bf16.msra.mxu0 %v2444
        %2456 = vmatpush.bf16.msra.mxu0 %v2443
        %2457 = vmatpush.bf16.msra.mxu0 %v2442
        %2458 = vmatpush.bf16.msra.mxu0 %v2441
        %2459 = vmatpush.bf16.msra.mxu0 %v2440
        %2460 = vmatpush.bf16.msra.mxu0 %v2439
        %2461 = vmatpush.bf16.msra.mxu0 %v2438
        %2462 = vmatmul.bf16.gmra.mxu0 %v1915
        %v2463 = vpop.f32.mrf.mxu0
        %v2464 = vadd.f32 0.0, %v2463
        %v2465 = vpop.f32.mrf.mxu0
        %v2466 = vadd.f32 0.0, %v2465
        %2467 = vmatmul.bf16.gmra.mxu0 %v1917
        %v2468 = vpop.f32.mrf.mxu0
        %v2469 = vadd.f32 0.0, %v2468
        %v2470 = vpop.f32.mrf.mxu0
        %v2471 = vadd.f32 0.0, %v2470
        %2472 = vdwg.mxu0
        %2473 = vmatpush.bf16.msra.mxu0 %v2453
        %2474 = vmatpush.bf16.msra.mxu0 %v2452
        %2475 = vmatpush.bf16.msra.mxu0 %v2451
        %2476 = vmatpush.bf16.msra.mxu0 %v2450
        %2477 = vmatpush.bf16.msra.mxu0 %v2449
        %2478 = vmatpush.bf16.msra.mxu0 %v2448
        %2479 = vmatpush.bf16.msra.mxu0 %v2447
        %2480 = vmatpush.bf16.msra.mxu0 %v2446
        %2481 = vmatmul.bf16.gmra.mxu0 %v1916
        %v2482 = vpop.f32.mrf.mxu0
        %v2483 = vadd.f32 %v2464, %v2482
        %v2484 = vpop.f32.mrf.mxu0
        %v2485 = vadd.f32 %v2466, %v2484
        %2486 = vmatmul.bf16.gmra.mxu0 %v1918
        %v2487 = vpop.f32.mrf.mxu0
        %v2488 = vadd.f32 %v2469, %v2487
        %v2489 = vpop.f32.mrf.mxu0
        %v2490 = vadd.f32 %v2471, %v2489
        %2491 = vdwg.mxu0
        %v2492 = vmul.f32 %v2483, 0.25
        %v2493 = vmul.f32 %v2485, 0.25
        %v2494 = vmul.f32 %v2488, 0.25
        %v2495 = vmul.f32 %v2490, 0.25
        %2496 = vmatpush.bf16.msra.mxu0 %v2445
        %2497 = vmatpush.bf16.msra.mxu0 %v2444
        %2498 = vmatpush.bf16.msra.mxu0 %v2443
        %2499 = vmatpush.bf16.msra.mxu0 %v2442
        %2500 = vmatpush.bf16.msra.mxu0 %v2441
        %2501 = vmatpush.bf16.msra.mxu0 %v2440
        %2502 = vmatpush.bf16.msra.mxu0 %v2439
        %2503 = vmatpush.bf16.msra.mxu0 %v2438
        %2504 = vmatmul.bf16.gmra.mxu0 %v1977
        %v2505 = vpop.f32.mrf.mxu0
        %v2506 = vadd.f32 0.0, %v2505
        %v2507 = vpop.f32.mrf.mxu0
        %v2508 = vadd.f32 0.0, %v2507
        %2509 = vmatmul.bf16.gmra.mxu0 %v1979
        %v2510 = vpop.f32.mrf.mxu0
        %v2511 = vadd.f32 0.0, %v2510
        %v2512 = vpop.f32.mrf.mxu0
        %v2513 = vadd.f32 0.0, %v2512
        %2514 = vdwg.mxu0
        %2515 = vmatpush.bf16.msra.mxu0 %v2453
        %2516 = vmatpush.bf16.msra.mxu0 %v2452
        %2517 = vmatpush.bf16.msra.mxu0 %v2451
        %2518 = vmatpush.bf16.msra.mxu0 %v2450
        %2519 = vmatpush.bf16.msra.mxu0 %v2449
        %2520 = vmatpush.bf16.msra.mxu0 %v2448
        %2521 = vmatpush.bf16.msra.mxu0 %v2447
        %2522 = vmatpush.bf16.msra.mxu0 %v2446
        %2523 = vmatmul.bf16.gmra.mxu0 %v1978
        %v2524 = vpop.f32.mrf.mxu0
        %v2525 = vadd.f32 %v2506, %v2524
        %v2526 = vpop.f32.mrf.mxu0
        %v2527 = vadd.f32 %v2508, %v2526
        %2528 = vmatmul.bf16.gmra.mxu0 %v1980
        %v2529 = vpop.f32.mrf.mxu0
        %v2530 = vadd.f32 %v2511, %v2529
        %v2531 = vpop.f32.mrf.mxu0
        %v2532 = vadd.f32 %v2513, %v2531
        %2533 = vdwg.mxu0
        %v2534 = vmul.f32 %v2525, 0.25
        %v2535 = vmul.f32 %v2527, 0.25
        %v2536 = vmul.f32 %v2530, 0.25
        %v2537 = vmul.f32 %v2532, 0.25
        %v2538 = vpack.c.bf16 %v2382, %v2381
        %v2539 = vpack.c.bf16 %v2412, %v2411
        %v2540 = vpack.c.bf16 %v2414, %v2413
        %v2541 = vpack.c.bf16 %v2384, %v2383
        %vm2542 = vcmask 130048
        %v2544 = vsel %vm2542, %v2539, 0
        %v2547 = vsel %vm2542, %v2540, 0
        %2549 = vmatpush.bf16.msra.mxu0 0
        %2550 = vmatpush.bf16.msra.mxu0 0
        %2551 = vmatpush.bf16.msra.mxu0 0
        %2552 = vmatpush.bf16.msra.mxu0 0
        %2553 = vmatpush.bf16.msra.mxu0 0
        %2554 = vmatpush.bf16.msra.mxu0 0
        %2555 = vmatpush.bf16.msra.mxu0 0
        %2556 = vmatpush.bf16.msra.mxu0 %v2541
        %2557 = vmatmul.bf16.gmra.mxu0 %v2544
        %v2558 = vpop.f32.mrf.mxu0
        %v2559 = vadd.f32 0.0, %v2558
        %v2560 = vpop.f32.mrf.mxu0
        %v2561 = vadd.f32 0.0, %v2560
        %2562 = vmatmul.bf16.gmra.mxu0 %v2547
        %v2563 = vpop.f32.mrf.mxu0
        %v2564 = vadd.f32 0.0, %v2563
        %v2565 = vpop.f32.mrf.mxu0
        %v2566 = vadd.f32 0.0, %v2565
        %2567 = vdwg.mxu0
        %v2569 = vsel %vm2542, %v2390, 0
        %v2572 = vsel %vm2542, %v2391, 0
        %2574 = vmatpush.bf16.msra.mxu0 0
        %2575 = vmatpush.bf16.msra.mxu0 0
        %2576 = vmatpush.bf16.msra.mxu0 0
        %2577 = vmatpush.bf16.msra.mxu0 0
        %2578 = vmatpush.bf16.msra.mxu0 0
        %2579 = vmatpush.bf16.msra.mxu0 0
        %2580 = vmatpush.bf16.msra.mxu0 0
        %2581 = vmatpush.bf16.msra.mxu0 %v2538
        %2582 = vmatmul.bf16.gmra.mxu0 %v2569
        %v2583 = vpop.f32.mrf.mxu0
        %v2584 = vadd.f32 %v2559, %v2583
        %v2585 = vpop.f32.mrf.mxu0
        %v2586 = vadd.f32 %v2561, %v2585
        %2587 = vmatmul.bf16.gmra.mxu0 %v2572
        %v2588 = vpop.f32.mrf.mxu0
        %v2589 = vadd.f32 %v2564, %v2588
        %v2590 = vpop.f32.mrf.mxu0
        %v2591 = vadd.f32 %v2566, %v2590
        %2592 = vdwg.mxu0
        %v2593 = vpack.c.bf16 %v2435, %v2434
        %v2594 = vpack.c.bf16 %v2437, %v2436
        %v2595 = vpack.c.bf16 %v2386, %v2385
        %v2597 = vsel %vm2542, %v2593, 0
        %v2600 = vsel %vm2542, %v2594, 0
        %2602 = vmatpush.bf16.msra.mxu0 0
        %2603 = vmatpush.bf16.msra.mxu0 0
        %2604 = vmatpush.bf16.msra.mxu0 0
        %2605 = vmatpush.bf16.msra.mxu0 0
        %2606 = vmatpush.bf16.msra.mxu0 0
        %2607 = vmatpush.bf16.msra.mxu0 0
        %2608 = vmatpush.bf16.msra.mxu0 0
        %2609 = vmatpush.bf16.msra.mxu0 %v2595
        %2610 = vmatmul.bf16.gmra.mxu0 %v2597
        %v2611 = vpop.f32.mrf.mxu0
        %v2612 = vadd.f32 0.0, %v2611
        %v2613 = vpop.f32.mrf.mxu0
        %v2614 = vadd.f32 0.0, %v2613
        %2615 = vmatmul.bf16.gmra.mxu0 %v2600
        %v2616 = vpop.f32.mrf.mxu0
        %v2617 = vadd.f32 0.0, %v2616
        %v2618 = vpop.f32.mrf.mxu0
        %v2619 = vadd.f32 0.0, %v2618
        %2620 = vdwg.mxu0
        %v2621 = vadd.f32 %v2584, %v2612
        %v2622 = vadd.f32 %v2586, %v2614
        %v2623 = vadd.f32 %v2589, %v2617
        %v2624 = vadd.f32 %v2591, %v2619
        %v2625 = vpack.c.bf16 %v2493, %v2492
        %v2626 = vpack.c.bf16 %v2495, %v2494
        %v2627 = vpack.c.bf16 %v2387, %v2387
        %v2629 = vsel %vm2027, %v2625, 0
        %v2632 = vsel %vm2027, %v2626, 0
        %v2635 = vsel %vm2034, %v2627, 0
        %2637 = vmatpush.bf16.msra.mxu0 0
        %2638 = vmatpush.bf16.msra.mxu0 0
        %2639 = vmatpush.bf16.msra.mxu0 0
        %2640 = vmatpush.bf16.msra.mxu0 0
        %2641 = vmatpush.bf16.msra.mxu0 0
        %2642 = vmatpush.bf16.msra.mxu0 0
        %2643 = vmatpush.bf16.msra.mxu0 0
        %2644 = vmatpush.bf16.msra.mxu0 %v2635
        %2645 = vmatmul.bf16.gmra.mxu0 %v2629
        %v2646 = vpop.f32.mrf.mxu0
        %v2647 = vadd.f32 0.0, %v2646
        %v2648 = vpop.f32.mrf.mxu0
        %v2649 = vadd.f32 0.0, %v2648
        %2650 = vmatmul.bf16.gmra.mxu0 %v2632
        %v2651 = vpop.f32.mrf.mxu0
        %v2652 = vadd.f32 0.0, %v2651
        %v2653 = vpop.f32.mrf.mxu0
        %v2654 = vadd.f32 0.0, %v2653
        %2655 = vdwg.mxu0
        %v2656 = vadd.f32 %v2621, %v2647
        %v2657 = vadd.f32 %v2622, %v2649
        %v2658 = vadd.f32 %v2623, %v2652
        %v2659 = vadd.f32 %v2624, %v2654
        %v2660 = vpack.c.bf16 %v2535, %v2534
        %v2661 = vpack.c.bf16 %v2537, %v2536
        %v2662 = vpack.c.bf16 %v2388, %v2388
        %v2664 = vsel %vm2027, %v2660, 0
        %v2667 = vsel %vm2027, %v2661, 0
        %v2670 = vsel %vm2034, %v2662, 0
        %2672 = vmatpush.bf16.msra.mxu0 0
        %2673 = vmatpush.bf16.msra.mxu0 0
        %2674 = vmatpush.bf16.msra.mxu0 0
        %2675 = vmatpush.bf16.msra.mxu0 0
        %2676 = vmatpush.bf16.msra.mxu0 0
        %2677 = vmatpush.bf16.msra.mxu0 0
        %2678 = vmatpush.bf16.msra.mxu0 0
        %2679 = vmatpush.bf16.msra.mxu0 %v2670
        %2680 = vmatmul.bf16.gmra.mxu0 %v2664
        %v2681 = vpop.f32.mrf.mxu0
        %v2682 = vadd.f32 0.0, %v2681
        %v2683 = vpop.f32.mrf.mxu0
        %v2684 = vadd.f32 0.0, %v2683
        %2685 = vmatmul.bf16.gmra.mxu0 %v2667
        %v2686 = vpop.f32.mrf.mxu0
        %v2687 = vadd.f32 0.0, %v2686
        %v2688 = vpop.f32.mrf.mxu0
        %v2689 = vadd.f32 0.0, %v2688
        %2690 = vdwg.mxu0
        %v2691 = vadd.f32 %v2656, %v2682
        %v2692 = vadd.f32 %v2657, %v2684
        %v2693 = vadd.f32 %v2658, %v2687
        %v2694 = vadd.f32 %v2659, %v2689
        %v2696 = vperm.slane %v2389, 0
        %v2698 = vadd.f32 %v2691, %v2696
        %v2699 = vadd.f32 %v2692, %v2696
        %v2700 = vadd.f32 %v2693, %v2696
        %v2701 = vadd.f32 %v2694, %v2696
        %v2702 = vtanh.pop %v2698
        %v2703 = vtanh.pop %v2699
        %v2704 = vtanh.pop %v2700
        %v2705 = vtanh.pop %v2701
        %v2706 = vadd.f32 %v2702, %v2199
        %v2707 = vadd.f32 %v2703, %v2200
        %v2708 = vadd.f32 %v2704, %v2201
        %v2709 = vadd.f32 %v2705, %v2202
        %v2710 = vld [vmem:[%s13] sm:$0xff]
        %v2711 = vpack.c.bf16 %v2710, %v2710
        %v2712 = vld [vmem:[%s14] sm:$0x1]
        %v2714 = vperm.slane %v2712, 0
        %v2717 = vsel %vm2027, %v2438, 0
        %v2720 = vsel %vm2027, %v2439, 0
        %v2723 = vsel %vm2027, %v2440, 0
        %v2726 = vsel %vm2027, %v2441, 0
        %v2729 = vsel %vm2027, %v2442, 0
        %v2732 = vsel %vm2027, %v2443, 0
        %v2735 = vsel %vm2027, %v2444, 0
        %v2738 = vsel %vm2027, %v2445, 0
        %v2741 = vsel %vm2027, %v2446, 0
        %v2744 = vsel %vm2027, %v2447, 0
        %v2747 = vsel %vm2027, %v2448, 0
        %v2750 = vsel %vm2027, %v2449, 0
        %v2753 = vsel %vm2027, %v2450, 0
        %v2756 = vsel %vm2027, %v2451, 0
        %v2759 = vsel %vm2027, %v2452, 0
        %v2762 = vsel %vm2027, %v2453, 0
        %v2765 = vsel %vm2034, %v2711, 0
        %2767 = vmatpush.bf16.msra.mxu0 0
        %2768 = vmatpush.bf16.msra.mxu0 0
        %2769 = vmatpush.bf16.msra.mxu0 0
        %2770 = vmatpush.bf16.msra.mxu0 0
        %2771 = vmatpush.bf16.msra.mxu0 0
        %2772 = vmatpush.bf16.msra.mxu0 0
        %2773 = vmatpush.bf16.msra.mxu0 0
        %2774 = vmatpush.bf16.msra.mxu0 %v2765
        %2775 = vmatmul.bf16.gmra.mxu0 %v2717
        %v2776 = vpop.f32.mrf.mxu0
        %v2777 = vadd.f32 %v2714, %v2776
        %v2778 = vpop.f32.mrf.mxu0
        %v2779 = vadd.f32 %v2714, %v2778
        %2780 = vmatmul.bf16.gmra.mxu0 %v2720
        %v2781 = vpop.f32.mrf.mxu0
        %v2782 = vadd.f32 %v2714, %v2781
        %v2783 = vpop.f32.mrf.mxu0
        %v2784 = vadd.f32 %v2714, %v2783
        %2785 = vmatmul.bf16.gmra.mxu0 %v2723
        %v2786 = vpop.f32.mrf.mxu0
        %v2787 = vadd.f32 %v2714, %v2786
        %v2788 = vpop.f32.mrf.mxu0
        %v2789 = vadd.f32 %v2714, %v2788
        %2790 = vmatmul.bf16.gmra.mxu0 %v2726
        %v2791 = vpop.f32.mrf.mxu0
        %v2792 = vadd.f32 %v2714, %v2791
        %v2793 = vpop.f32.mrf.mxu0
        %v2794 = vadd.f32 %v2714, %v2793
        %2795 = vmatmul.bf16.gmra.mxu0 %v2729
        %v2796 = vpop.f32.mrf.mxu0
        %v2797 = vadd.f32 %v2714, %v2796
        %v2798 = vpop.f32.mrf.mxu0
        %v2799 = vadd.f32 %v2714, %v2798
        %2800 = vmatmul.bf16.gmra.mxu0 %v2732
        %v2801 = vpop.f32.mrf.mxu0
        %v2802 = vadd.f32 %v2714, %v2801
        %v2803 = vpop.f32.mrf.mxu0
        %v2804 = vadd.f32 %v2714, %v2803
        %2805 = vmatmul.bf16.gmra.mxu0 %v2735
        %v2806 = vpop.f32.mrf.mxu0
        %v2807 = vadd.f32 %v2714, %v2806
        %v2808 = vpop.f32.mrf.mxu0
        %v2809 = vadd.f32 %v2714, %v2808
        %2810 = vmatmul.bf16.gmra.mxu0 %v2738
        %v2811 = vpop.f32.mrf.mxu0
        %v2812 = vadd.f32 %v2714, %v2811
        %v2813 = vpop.f32.mrf.mxu0
        %v2814 = vadd.f32 %v2714, %v2813
        %2815 = vmatmul.bf16.gmra.mxu0 %v2741
        %v2816 = vpop.f32.mrf.mxu0
        %v2817 = vadd.f32 %v2714, %v2816
        %v2818 = vpop.f32.mrf.mxu0
        %v2819 = vadd.f32 %v2714, %v2818
        %2820 = vmatmul.bf16.gmra.mxu0 %v2744
        %v2821 = vpop.f32.mrf.mxu0
        %v2822 = vadd.f32 %v2714, %v2821
        %v2823 = vpop.f32.mrf.mxu0
        %v2824 = vadd.f32 %v2714, %v2823
        %2825 = vmatmul.bf16.gmra.mxu0 %v2747
        %v2826 = vpop.f32.mrf.mxu0
        %v2827 = vadd.f32 %v2714, %v2826
        %v2828 = vpop.f32.mrf.mxu0
        %v2829 = vadd.f32 %v2714, %v2828
        %2830 = vmatmul.bf16.gmra.mxu0 %v2750
        %v2831 = vpop.f32.mrf.mxu0
        %v2832 = vadd.f32 %v2714, %v2831
        %v2833 = vpop.f32.mrf.mxu0
        %v2834 = vadd.f32 %v2714, %v2833
        %2835 = vmatmul.bf16.gmra.mxu0 %v2753
        %v2836 = vpop.f32.mrf.mxu0
        %v2837 = vadd.f32 %v2714, %v2836
        %v2838 = vpop.f32.mrf.mxu0
        %v2839 = vadd.f32 %v2714, %v2838
        %2840 = vmatmul.bf16.gmra.mxu0 %v2756
        %v2841 = vpop.f32.mrf.mxu0
        %v2842 = vadd.f32 %v2714, %v2841
        %v2843 = vpop.f32.mrf.mxu0
        %v2844 = vadd.f32 %v2714, %v2843
        %2845 = vmatmul.bf16.gmra.mxu0 %v2759
        %v2846 = vpop.f32.mrf.mxu0
        %v2847 = vadd.f32 %v2714, %v2846
        %v2848 = vpop.f32.mrf.mxu0
        %v2849 = vadd.f32 %v2714, %v2848
        %2850 = vmatmul.bf16.gmra.mxu0 %v2762
        %v2851 = vpop.f32.mrf.mxu0
        %v2852 = vadd.f32 %v2714, %v2851
        %v2853 = vpop.f32.mrf.mxu0
        %v2854 = vadd.f32 %v2714, %v2853
        %2855 = vdwg.mxu0
        %v2856 = vtanh.pop %v2777
        %v2857 = vtanh.pop %v2779
        %v2858 = vtanh.pop %v2782
        %v2859 = vtanh.pop %v2784
        %v2860 = vtanh.pop %v2787
        %v2861 = vtanh.pop %v2789
        %v2862 = vtanh.pop %v2792
        %v2863 = vtanh.pop %v2794
        %v2864 = vtanh.pop %v2797
        %v2865 = vtanh.pop %v2799
        %v2866 = vtanh.pop %v2802
        %v2867 = vtanh.pop %v2804
        %v2868 = vtanh.pop %v2807
        %v2869 = vtanh.pop %v2809
        %v2870 = vtanh.pop %v2812
        %v2871 = vtanh.pop %v2814
        %v2872 = vtanh.pop %v2817
        %v2873 = vtanh.pop %v2819
        %v2874 = vtanh.pop %v2822
        %v2875 = vtanh.pop %v2824
        %v2876 = vtanh.pop %v2827
        %v2877 = vtanh.pop %v2829
        %v2878 = vtanh.pop %v2832
        %v2879 = vtanh.pop %v2834
        %v2880 = vtanh.pop %v2837
        %v2881 = vtanh.pop %v2839
        %v2882 = vtanh.pop %v2842
        %v2883 = vtanh.pop %v2844
        %v2884 = vtanh.pop %v2847
        %v2885 = vtanh.pop %v2849
        %v2886 = vtanh.pop %v2852
        %v2887 = vtanh.pop %v2854
        %v2888 = vadd.f32 %v2856, %v2349
        %v2889 = vadd.f32 %v2857, %v2350
        %v2890 = vadd.f32 %v2858, %v2351
        %v2891 = vadd.f32 %v2859, %v2352
        %v2892 = vadd.f32 %v2860, %v2353
        %v2893 = vadd.f32 %v2861, %v2354
        %v2894 = vadd.f32 %v2862, %v2355
        %v2895 = vadd.f32 %v2863, %v2356
        %v2896 = vadd.f32 %v2864, %v2357
        %v2897 = vadd.f32 %v2865, %v2358
        %v2898 = vadd.f32 %v2866, %v2359
        %v2899 = vadd.f32 %v2867, %v2360
        %v2900 = vadd.f32 %v2868, %v2361
        %v2901 = vadd.f32 %v2869, %v2362
        %v2902 = vadd.f32 %v2870, %v2363
        %v2903 = vadd.f32 %v2871, %v2364
        %v2904 = vadd.f32 %v2872, %v2365
        %v2905 = vadd.f32 %v2873, %v2366
        %v2906 = vadd.f32 %v2874, %v2367
        %v2907 = vadd.f32 %v2875, %v2368
        %v2908 = vadd.f32 %v2876, %v2369
        %v2909 = vadd.f32 %v2877, %v2370
        %v2910 = vadd.f32 %v2878, %v2371
        %v2911 = vadd.f32 %v2879, %v2372
        %v2912 = vadd.f32 %v2880, %v2373
        %v2913 = vadd.f32 %v2881, %v2374
        %v2914 = vadd.f32 %v2882, %v2375
        %v2915 = vadd.f32 %v2883, %v2376
        %v2916 = vadd.f32 %v2884, %v2377
        %v2917 = vadd.f32 %v2885, %v2378
        %v2918 = vadd.f32 %v2886, %v2379
        %v2919 = vadd.f32 %v2887, %v2380
        %s2920 = scalar_lea.vmem %s9, 64
        %v2921 = vld [vmem:[%s2920] sm:$0xff]
        %v2922 = vld [vmem:[%s2920 + $0x8] sm:$0xff]
        %v2923 = vld [vmem:[%s2920 + $0x10] sm:$0xff]
        %v2924 = vld [vmem:[%s2920 + $0x18] sm:$0xff]
        %v2925 = vld [vmem:[%s2920 + $0x20] sm:$0xff]
        %v2926 = vld [vmem:[%s2920 + $0x28] sm:$0xff]
        %v2927 = vld [vmem:[%s2920 + $0x30] sm:$0xff]
        %v2928 = vld [vmem:[%s2920 + $0x38] sm:$0xff]
        %s2929 = scalar_lea.vmem %s10, 1
        %v2930 = vld [vmem:[%s2929] sm:$0x1]
        %v2931 = vpack.c.bf16 %v2707, %v2706
        %v2932 = vpack.c.bf16 %v2709, %v2708
        %2933 = vmatpush.bf16.msra.mxu0 0
        %2934 = vmatpush.bf16.msra.mxu0 0
        %2935 = vmatpush.bf16.msra.mxu0 0
        %2936 = vmatpush.bf16.msra.mxu0 0
        %2937 = vmatpush.bf16.msra.mxu0 0
        %2938 = vmatpush.bf16.msra.mxu0 0
        %2939 = vmatpush.bf16.msra.mxu0 %v2932
        %2940 = vmatpush.bf16.msra.mxu0 %v2931
        %2941 = vmatmul.bf16.gmra.mxu0 %v1856
        %v2942 = vpop.f32.mrf.mxu0
        %v2943 = vadd.f32 0.0, %v2942
        %v2944 = vpop.f32.mrf.mxu0
        %v2945 = vadd.f32 0.0, %v2944
        %2946 = vmatmul.bf16.gmra.mxu0 %v1859
        %v2947 = vpop.f32.mrf.mxu0
        %v2948 = vadd.f32 0.0, %v2947
        %v2949 = vpop.f32.mrf.mxu0
        %v2950 = vadd.f32 0.0, %v2949
        %2951 = vdwg.mxu0
        %v2952 = vmul.f32 %v2943, 0.25
        %v2953 = vmul.f32 %v2945, 0.25
        %v2954 = vmul.f32 %v2948, 0.25
        %v2955 = vmul.f32 %v2950, 0.25
        %2956 = vmatpush.bf16.msra.mxu0 0
        %2957 = vmatpush.bf16.msra.mxu0 0
        %2958 = vmatpush.bf16.msra.mxu0 0
        %2959 = vmatpush.bf16.msra.mxu0 0
        %2960 = vmatpush.bf16.msra.mxu0 0
        %2961 = vmatpush.bf16.msra.mxu0 0
        %2962 = vmatpush.bf16.msra.mxu0 %v2932
        %2963 = vmatpush.bf16.msra.mxu0 %v2931
        %2964 = vmatmul.bf16.gmra.mxu0 %v1887
        %v2965 = vpop.f32.mrf.mxu0
        %v2966 = vadd.f32 0.0, %v2965
        %v2967 = vpop.f32.mrf.mxu0
        %v2968 = vadd.f32 0.0, %v2967
        %2969 = vmatmul.bf16.gmra.mxu0 %v1890
        %v2970 = vpop.f32.mrf.mxu0
        %v2971 = vadd.f32 0.0, %v2970
        %v2972 = vpop.f32.mrf.mxu0
        %v2973 = vadd.f32 0.0, %v2972
        %2974 = vdwg.mxu0
        %v2975 = vmul.f32 %v2966, 0.25
        %v2976 = vmul.f32 %v2968, 0.25
        %v2977 = vmul.f32 %v2971, 0.25
        %v2978 = vmul.f32 %v2973, 0.25
        %v2979 = vpack.c.bf16 %v2889, %v2888
        %v2980 = vpack.c.bf16 %v2891, %v2890
        %v2981 = vpack.c.bf16 %v2893, %v2892
        %v2982 = vpack.c.bf16 %v2895, %v2894
        %v2983 = vpack.c.bf16 %v2897, %v2896
        %v2984 = vpack.c.bf16 %v2899, %v2898
        %v2985 = vpack.c.bf16 %v2901, %v2900
        %v2986 = vpack.c.bf16 %v2903, %v2902
        %v2987 = vpack.c.bf16 %v2905, %v2904
        %v2988 = vpack.c.bf16 %v2907, %v2906
        %v2989 = vpack.c.bf16 %v2909, %v2908
        %v2990 = vpack.c.bf16 %v2911, %v2910
        %v2991 = vpack.c.bf16 %v2913, %v2912
        %v2992 = vpack.c.bf16 %v2915, %v2914
        %v2993 = vpack.c.bf16 %v2917, %v2916
        %v2994 = vpack.c.bf16 %v2919, %v2918
        %2995 = vmatpush.bf16.msra.mxu0 %v2986
        %2996 = vmatpush.bf16.msra.mxu0 %v2985
        %2997 = vmatpush.bf16.msra.mxu0 %v2984
        %2998 = vmatpush.bf16.msra.mxu0 %v2983
        %2999 = vmatpush.bf16.msra.mxu0 %v2982
        %3000 = vmatpush.bf16.msra.mxu0 %v2981
        %3001 = vmatpush.bf16.msra.mxu0 %v2980
        %3002 = vmatpush.bf16.msra.mxu0 %v2979
        %3003 = vmatmul.bf16.gmra.mxu0 %v1915
        %v3004 = vpop.f32.mrf.mxu0
        %v3005 = vadd.f32 0.0, %v3004
        %v3006 = vpop.f32.mrf.mxu0
        %v3007 = vadd.f32 0.0, %v3006
        %3008 = vmatmul.bf16.gmra.mxu0 %v1917
        %v3009 = vpop.f32.mrf.mxu0
        %v3010 = vadd.f32 0.0, %v3009
        %v3011 = vpop.f32.mrf.mxu0
        %v3012 = vadd.f32 0.0, %v3011
        %3013 = vdwg.mxu0
        %3014 = vmatpush.bf16.msra.mxu0 %v2994
        %3015 = vmatpush.bf16.msra.mxu0 %v2993
        %3016 = vmatpush.bf16.msra.mxu0 %v2992
        %3017 = vmatpush.bf16.msra.mxu0 %v2991
        %3018 = vmatpush.bf16.msra.mxu0 %v2990
        %3019 = vmatpush.bf16.msra.mxu0 %v2989
        %3020 = vmatpush.bf16.msra.mxu0 %v2988
        %3021 = vmatpush.bf16.msra.mxu0 %v2987
        %3022 = vmatmul.bf16.gmra.mxu0 %v1916
        %v3023 = vpop.f32.mrf.mxu0
        %v3024 = vadd.f32 %v3005, %v3023
        %v3025 = vpop.f32.mrf.mxu0
        %v3026 = vadd.f32 %v3007, %v3025
        %3027 = vmatmul.bf16.gmra.mxu0 %v1918
        %v3028 = vpop.f32.mrf.mxu0
        %v3029 = vadd.f32 %v3010, %v3028
        %v3030 = vpop.f32.mrf.mxu0
        %v3031 = vadd.f32 %v3012, %v3030
        %3032 = vdwg.mxu0
        %v3033 = vmul.f32 %v3024, 0.25
        %v3034 = vmul.f32 %v3026, 0.25
        %v3035 = vmul.f32 %v3029, 0.25
        %v3036 = vmul.f32 %v3031, 0.25
        %3037 = vmatpush.bf16.msra.mxu0 %v2986
        %3038 = vmatpush.bf16.msra.mxu0 %v2985
        %3039 = vmatpush.bf16.msra.mxu0 %v2984
        %3040 = vmatpush.bf16.msra.mxu0 %v2983
        %3041 = vmatpush.bf16.msra.mxu0 %v2982
        %3042 = vmatpush.bf16.msra.mxu0 %v2981
        %3043 = vmatpush.bf16.msra.mxu0 %v2980
        %3044 = vmatpush.bf16.msra.mxu0 %v2979
        %3045 = vmatmul.bf16.gmra.mxu0 %v1977
        %v3046 = vpop.f32.mrf.mxu0
        %v3047 = vadd.f32 0.0, %v3046
        %v3048 = vpop.f32.mrf.mxu0
        %v3049 = vadd.f32 0.0, %v3048
        %3050 = vmatmul.bf16.gmra.mxu0 %v1979
        %v3051 = vpop.f32.mrf.mxu0
        %v3052 = vadd.f32 0.0, %v3051
        %v3053 = vpop.f32.mrf.mxu0
        %v3054 = vadd.f32 0.0, %v3053
        %3055 = vdwg.mxu0
        %3056 = vmatpush.bf16.msra.mxu0 %v2994
        %3057 = vmatpush.bf16.msra.mxu0 %v2993
        %3058 = vmatpush.bf16.msra.mxu0 %v2992
        %3059 = vmatpush.bf16.msra.mxu0 %v2991
        %3060 = vmatpush.bf16.msra.mxu0 %v2990
        %3061 = vmatpush.bf16.msra.mxu0 %v2989
        %3062 = vmatpush.bf16.msra.mxu0 %v2988
        %3063 = vmatpush.bf16.msra.mxu0 %v2987
        %3064 = vmatmul.bf16.gmra.mxu0 %v1978
        %v3065 = vpop.f32.mrf.mxu0
        %v3066 = vadd.f32 %v3047, %v3065
        %v3067 = vpop.f32.mrf.mxu0
        %v3068 = vadd.f32 %v3049, %v3067
        %3069 = vmatmul.bf16.gmra.mxu0 %v1980
        %v3070 = vpop.f32.mrf.mxu0
        %v3071 = vadd.f32 %v3052, %v3070
        %v3072 = vpop.f32.mrf.mxu0
        %v3073 = vadd.f32 %v3054, %v3072
        %3074 = vdwg.mxu0
        %v3075 = vmul.f32 %v3066, 0.25
        %v3076 = vmul.f32 %v3068, 0.25
        %v3077 = vmul.f32 %v3071, 0.25
        %v3078 = vmul.f32 %v3073, 0.25
        %v3079 = vpack.c.bf16 %v2922, %v2921
        %v3080 = vpack.c.bf16 %v2953, %v2952
        %v3081 = vpack.c.bf16 %v2955, %v2954
        %v3082 = vpack.c.bf16 %v2924, %v2923
        %v3084 = vsel %vm2542, %v3080, 0
        %v3087 = vsel %vm2542, %v3081, 0
        %3089 = vmatpush.bf16.msra.mxu0 0
        %3090 = vmatpush.bf16.msra.mxu0 0
        %3091 = vmatpush.bf16.msra.mxu0 0
        %3092 = vmatpush.bf16.msra.mxu0 0
        %3093 = vmatpush.bf16.msra.mxu0 0
        %3094 = vmatpush.bf16.msra.mxu0 0
        %3095 = vmatpush.bf16.msra.mxu0 0
        %3096 = vmatpush.bf16.msra.mxu0 %v3082
        %3097 = vmatmul.bf16.gmra.mxu0 %v3084
        %v3098 = vpop.f32.mrf.mxu0
        %v3099 = vadd.f32 0.0, %v3098
        %v3100 = vpop.f32.mrf.mxu0
        %v3101 = vadd.f32 0.0, %v3100
        %3102 = vmatmul.bf16.gmra.mxu0 %v3087
        %v3103 = vpop.f32.mrf.mxu0
        %v3104 = vadd.f32 0.0, %v3103
        %v3105 = vpop.f32.mrf.mxu0
        %v3106 = vadd.f32 0.0, %v3105
        %3107 = vdwg.mxu0
        %v3109 = vsel %vm2542, %v2931, 0
        %v3112 = vsel %vm2542, %v2932, 0
        %3114 = vmatpush.bf16.msra.mxu0 0
        %3115 = vmatpush.bf16.msra.mxu0 0
        %3116 = vmatpush.bf16.msra.mxu0 0
        %3117 = vmatpush.bf16.msra.mxu0 0
        %3118 = vmatpush.bf16.msra.mxu0 0
        %3119 = vmatpush.bf16.msra.mxu0 0
        %3120 = vmatpush.bf16.msra.mxu0 0
        %3121 = vmatpush.bf16.msra.mxu0 %v3079
        %3122 = vmatmul.bf16.gmra.mxu0 %v3109
        %v3123 = vpop.f32.mrf.mxu0
        %v3124 = vadd.f32 %v3099, %v3123
        %v3125 = vpop.f32.mrf.mxu0
        %v3126 = vadd.f32 %v3101, %v3125
        %3127 = vmatmul.bf16.gmra.mxu0 %v3112
        %v3128 = vpop.f32.mrf.mxu0
        %v3129 = vadd.f32 %v3104, %v3128
        %v3130 = vpop.f32.mrf.mxu0
        %v3131 = vadd.f32 %v3106, %v3130
        %3132 = vdwg.mxu0
        %v3133 = vpack.c.bf16 %v2976, %v2975
        %v3134 = vpack.c.bf16 %v2978, %v2977
        %v3135 = vpack.c.bf16 %v2926, %v2925
        %v3137 = vsel %vm2542, %v3133, 0
        %v3140 = vsel %vm2542, %v3134, 0
        %3142 = vmatpush.bf16.msra.mxu0 0
        %3143 = vmatpush.bf16.msra.mxu0 0
        %3144 = vmatpush.bf16.msra.mxu0 0
        %3145 = vmatpush.bf16.msra.mxu0 0
        %3146 = vmatpush.bf16.msra.mxu0 0
        %3147 = vmatpush.bf16.msra.mxu0 0
        %3148 = vmatpush.bf16.msra.mxu0 0
        %3149 = vmatpush.bf16.msra.mxu0 %v3135
        %3150 = vmatmul.bf16.gmra.mxu0 %v3137
        %v3151 = vpop.f32.mrf.mxu0
        %v3152 = vadd.f32 0.0, %v3151
        %v3153 = vpop.f32.mrf.mxu0
        %v3154 = vadd.f32 0.0, %v3153
        %3155 = vmatmul.bf16.gmra.mxu0 %v3140
        %v3156 = vpop.f32.mrf.mxu0
        %v3157 = vadd.f32 0.0, %v3156
        %v3158 = vpop.f32.mrf.mxu0
        %v3159 = vadd.f32 0.0, %v3158
        %3160 = vdwg.mxu0
        %v3161 = vadd.f32 %v3124, %v3152
        %v3162 = vadd.f32 %v3126, %v3154
        %v3163 = vadd.f32 %v3129, %v3157
        %v3164 = vadd.f32 %v3131, %v3159
        %v3165 = vpack.c.bf16 %v3034, %v3033
        %v3166 = vpack.c.bf16 %v3036, %v3035
        %v3167 = vpack.c.bf16 %v2927, %v2927
        %v3169 = vsel %vm2027, %v3165, 0
        %v3172 = vsel %vm2027, %v3166, 0
        %v3175 = vsel %vm2034, %v3167, 0
        %3177 = vmatpush.bf16.msra.mxu0 0
        %3178 = vmatpush.bf16.msra.mxu0 0
        %3179 = vmatpush.bf16.msra.mxu0 0
        %3180 = vmatpush.bf16.msra.mxu0 0
        %3181 = vmatpush.bf16.msra.mxu0 0
        %3182 = vmatpush.bf16.msra.mxu0 0
        %3183 = vmatpush.bf16.msra.mxu0 0
        %3184 = vmatpush.bf16.msra.mxu0 %v3175
        %3185 = vmatmul.bf16.gmra.mxu0 %v3169
        %v3186 = vpop.f32.mrf.mxu0
        %v3187 = vadd.f32 0.0, %v3186
        %v3188 = vpop.f32.mrf.mxu0
        %v3189 = vadd.f32 0.0, %v3188
        %3190 = vmatmul.bf16.gmra.mxu0 %v3172
        %v3191 = vpop.f32.mrf.mxu0
        %v3192 = vadd.f32 0.0, %v3191
        %v3193 = vpop.f32.mrf.mxu0
        %v3194 = vadd.f32 0.0, %v3193
        %3195 = vdwg.mxu0
        %v3196 = vadd.f32 %v3161, %v3187
        %v3197 = vadd.f32 %v3162, %v3189
        %v3198 = vadd.f32 %v3163, %v3192
        %v3199 = vadd.f32 %v3164, %v3194
        %v3200 = vpack.c.bf16 %v3076, %v3075
        %v3201 = vpack.c.bf16 %v3078, %v3077
        %v3202 = vpack.c.bf16 %v2928, %v2928
        %v3204 = vsel %vm2027, %v3200, 0
        %v3207 = vsel %vm2027, %v3201, 0
        %v3210 = vsel %vm2034, %v3202, 0
        %3212 = vmatpush.bf16.msra.mxu0 0
        %3213 = vmatpush.bf16.msra.mxu0 0
        %3214 = vmatpush.bf16.msra.mxu0 0
        %3215 = vmatpush.bf16.msra.mxu0 0
        %3216 = vmatpush.bf16.msra.mxu0 0
        %3217 = vmatpush.bf16.msra.mxu0 0
        %3218 = vmatpush.bf16.msra.mxu0 0
        %3219 = vmatpush.bf16.msra.mxu0 %v3210
        %3220 = vmatmul.bf16.gmra.mxu0 %v3204
        %v3221 = vpop.f32.mrf.mxu0
        %v3222 = vadd.f32 0.0, %v3221
        %v3223 = vpop.f32.mrf.mxu0
        %v3224 = vadd.f32 0.0, %v3223
        %3225 = vmatmul.bf16.gmra.mxu0 %v3207
        %v3226 = vpop.f32.mrf.mxu0
        %v3227 = vadd.f32 0.0, %v3226
        %v3228 = vpop.f32.mrf.mxu0
        %v3229 = vadd.f32 0.0, %v3228
        %3230 = vdwg.mxu0
        %v3231 = vadd.f32 %v3196, %v3222
        %v3232 = vadd.f32 %v3197, %v3224
        %v3233 = vadd.f32 %v3198, %v3227
        %v3234 = vadd.f32 %v3199, %v3229
        %v3236 = vperm.slane %v2930, 0
        %v3238 = vadd.f32 %v3231, %v3236
        %v3239 = vadd.f32 %v3232, %v3236
        %v3240 = vadd.f32 %v3233, %v3236
        %v3241 = vadd.f32 %v3234, %v3236
        %v3242 = vtanh.pop %v3238
        %v3243 = vtanh.pop %v3239
        %v3244 = vtanh.pop %v3240
        %v3245 = vtanh.pop %v3241
        %v3246 = vadd.f32 %v3242, %v2706
        %v3247 = vadd.f32 %v3243, %v2707
        %v3248 = vadd.f32 %v3244, %v2708
        %v3249 = vadd.f32 %v3245, %v2709
        %s3250 = scalar_lea.vmem %s13, 8
        %v3251 = vld [vmem:[%s3250] sm:$0xff]
        %v3252 = vpack.c.bf16 %v3251, %v3251
        %s3253 = scalar_lea.vmem %s14, 1
        %v3254 = vld [vmem:[%s3253] sm:$0x1]
        %v3256 = vperm.slane %v3254, 0
        %v3259 = vsel %vm2027, %v2979, 0
        %v3262 = vsel %vm2027, %v2980, 0
        %v3265 = vsel %vm2027, %v2981, 0
        %v3268 = vsel %vm2027, %v2982, 0
        %v3271 = vsel %vm2027, %v2983, 0
        %v3274 = vsel %vm2027, %v2984, 0
        %v3277 = vsel %vm2027, %v2985, 0
        %v3280 = vsel %vm2027, %v2986, 0
        %v3283 = vsel %vm2027, %v2987, 0
        %v3286 = vsel %vm2027, %v2988, 0
        %v3289 = vsel %vm2027, %v2989, 0
        %v3292 = vsel %vm2027, %v2990, 0
        %v3295 = vsel %vm2027, %v2991, 0
        %v3298 = vsel %vm2027, %v2992, 0
        %v3301 = vsel %vm2027, %v2993, 0
        %v3304 = vsel %vm2027, %v2994, 0
        %v3307 = vsel %vm2034, %v3252, 0
        %3309 = vmatpush.bf16.msra.mxu0 0
        %3310 = vmatpush.bf16.msra.mxu0 0
        %3311 = vmatpush.bf16.msra.mxu0 0
        %3312 = vmatpush.bf16.msra.mxu0 0
        %3313 = vmatpush.bf16.msra.mxu0 0
        %3314 = vmatpush.bf16.msra.mxu0 0
        %3315 = vmatpush.bf16.msra.mxu0 0
        %3316 = vmatpush.bf16.msra.mxu0 %v3307
        %3317 = vmatmul.bf16.gmra.mxu0 %v3259
        %v3318 = vpop.f32.mrf.mxu0
        %v3319 = vadd.f32 %v3256, %v3318
        %v3320 = vpop.f32.mrf.mxu0
        %v3321 = vadd.f32 %v3256, %v3320
        %3322 = vmatmul.bf16.gmra.mxu0 %v3262
        %v3323 = vpop.f32.mrf.mxu0
        %v3324 = vadd.f32 %v3256, %v3323
        %v3325 = vpop.f32.mrf.mxu0
        %v3326 = vadd.f32 %v3256, %v3325
        %3327 = vmatmul.bf16.gmra.mxu0 %v3265
        %v3328 = vpop.f32.mrf.mxu0
        %v3329 = vadd.f32 %v3256, %v3328
        %v3330 = vpop.f32.mrf.mxu0
        %v3331 = vadd.f32 %v3256, %v3330
        %3332 = vmatmul.bf16.gmra.mxu0 %v3268
        %v3333 = vpop.f32.mrf.mxu0
        %v3334 = vadd.f32 %v3256, %v3333
        %v3335 = vpop.f32.mrf.mxu0
        %v3336 = vadd.f32 %v3256, %v3335
        %3337 = vmatmul.bf16.gmra.mxu0 %v3271
        %v3338 = vpop.f32.mrf.mxu0
        %v3339 = vadd.f32 %v3256, %v3338
        %v3340 = vpop.f32.mrf.mxu0
        %v3341 = vadd.f32 %v3256, %v3340
        %3342 = vmatmul.bf16.gmra.mxu0 %v3274
        %v3343 = vpop.f32.mrf.mxu0
        %v3344 = vadd.f32 %v3256, %v3343
        %v3345 = vpop.f32.mrf.mxu0
        %v3346 = vadd.f32 %v3256, %v3345
        %3347 = vmatmul.bf16.gmra.mxu0 %v3277
        %v3348 = vpop.f32.mrf.mxu0
        %v3349 = vadd.f32 %v3256, %v3348
        %v3350 = vpop.f32.mrf.mxu0
        %v3351 = vadd.f32 %v3256, %v3350
        %3352 = vmatmul.bf16.gmra.mxu0 %v3280
        %v3353 = vpop.f32.mrf.mxu0
        %v3354 = vadd.f32 %v3256, %v3353
        %v3355 = vpop.f32.mrf.mxu0
        %v3356 = vadd.f32 %v3256, %v3355
        %3357 = vmatmul.bf16.gmra.mxu0 %v3283
        %v3358 = vpop.f32.mrf.mxu0
        %v3359 = vadd.f32 %v3256, %v3358
        %v3360 = vpop.f32.mrf.mxu0
        %v3361 = vadd.f32 %v3256, %v3360
        %3362 = vmatmul.bf16.gmra.mxu0 %v3286
        %v3363 = vpop.f32.mrf.mxu0
        %v3364 = vadd.f32 %v3256, %v3363
        %v3365 = vpop.f32.mrf.mxu0
        %v3366 = vadd.f32 %v3256, %v3365
        %3367 = vmatmul.bf16.gmra.mxu0 %v3289
        %v3368 = vpop.f32.mrf.mxu0
        %v3369 = vadd.f32 %v3256, %v3368
        %v3370 = vpop.f32.mrf.mxu0
        %v3371 = vadd.f32 %v3256, %v3370
        %3372 = vmatmul.bf16.gmra.mxu0 %v3292
        %v3373 = vpop.f32.mrf.mxu0
        %v3374 = vadd.f32 %v3256, %v3373
        %v3375 = vpop.f32.mrf.mxu0
        %v3376 = vadd.f32 %v3256, %v3375
        %3377 = vmatmul.bf16.gmra.mxu0 %v3295
        %v3378 = vpop.f32.mrf.mxu0
        %v3379 = vadd.f32 %v3256, %v3378
        %v3380 = vpop.f32.mrf.mxu0
        %v3381 = vadd.f32 %v3256, %v3380
        %3382 = vmatmul.bf16.gmra.mxu0 %v3298
        %v3383 = vpop.f32.mrf.mxu0
        %v3384 = vadd.f32 %v3256, %v3383
        %v3385 = vpop.f32.mrf.mxu0
        %v3386 = vadd.f32 %v3256, %v3385
        %3387 = vmatmul.bf16.gmra.mxu0 %v3301
        %v3388 = vpop.f32.mrf.mxu0
        %v3389 = vadd.f32 %v3256, %v3388
        %v3390 = vpop.f32.mrf.mxu0
        %v3391 = vadd.f32 %v3256, %v3390
        %3392 = vmatmul.bf16.gmra.mxu0 %v3304
        %v3393 = vpop.f32.mrf.mxu0
        %v3394 = vadd.f32 %v3256, %v3393
        %v3395 = vpop.f32.mrf.mxu0
        %v3396 = vadd.f32 %v3256, %v3395
        %3397 = vdwg.mxu0
        %v3398 = vtanh.pop %v3319
        %v3399 = vtanh.pop %v3321
        %v3400 = vtanh.pop %v3324
        %v3401 = vtanh.pop %v3326
        %v3402 = vtanh.pop %v3329
        %v3403 = vtanh.pop %v3331
        %v3404 = vtanh.pop %v3334
        %v3405 = vtanh.pop %v3336
        %v3406 = vtanh.pop %v3339
        %v3407 = vtanh.pop %v3341
        %v3408 = vtanh.pop %v3344
        %v3409 = vtanh.pop %v3346
        %v3410 = vtanh.pop %v3349
        %v3411 = vtanh.pop %v3351
        %v3412 = vtanh.pop %v3354
        %v3413 = vtanh.pop %v3356
        %v3414 = vtanh.pop %v3359
        %v3415 = vtanh.pop %v3361
        %v3416 = vtanh.pop %v3364
        %v3417 = vtanh.pop %v3366
        %v3418 = vtanh.pop %v3369
        %v3419 = vtanh.pop %v3371
        %v3420 = vtanh.pop %v3374
        %v3421 = vtanh.pop %v3376
        %v3422 = vtanh.pop %v3379
        %v3423 = vtanh.pop %v3381
        %v3424 = vtanh.pop %v3384
        %v3425 = vtanh.pop %v3386
        %v3426 = vtanh.pop %v3389
        %v3427 = vtanh.pop %v3391
        %v3428 = vtanh.pop %v3394
        %v3429 = vtanh.pop %v3396
        %v3430 = vadd.f32 %v3398, %v2888
        %v3431 = vadd.f32 %v3399, %v2889
        %v3432 = vadd.f32 %v3400, %v2890
        %v3433 = vadd.f32 %v3401, %v2891
        %v3434 = vadd.f32 %v3402, %v2892
        %v3435 = vadd.f32 %v3403, %v2893
        %v3436 = vadd.f32 %v3404, %v2894
        %v3437 = vadd.f32 %v3405, %v2895
        %v3438 = vadd.f32 %v3406, %v2896
        %v3439 = vadd.f32 %v3407, %v2897
        %v3440 = vadd.f32 %v3408, %v2898
        %v3441 = vadd.f32 %v3409, %v2899
        %v3442 = vadd.f32 %v3410, %v2900
        %v3443 = vadd.f32 %v3411, %v2901
        %v3444 = vadd.f32 %v3412, %v2902
        %v3445 = vadd.f32 %v3413, %v2903
        %v3446 = vadd.f32 %v3414, %v2904
        %v3447 = vadd.f32 %v3415, %v2905
        %v3448 = vadd.f32 %v3416, %v2906
        %v3449 = vadd.f32 %v3417, %v2907
        %v3450 = vadd.f32 %v3418, %v2908
        %v3451 = vadd.f32 %v3419, %v2909
        %v3452 = vadd.f32 %v3420, %v2910
        %v3453 = vadd.f32 %v3421, %v2911
        %v3454 = vadd.f32 %v3422, %v2912
        %v3455 = vadd.f32 %v3423, %v2913
        %v3456 = vadd.f32 %v3424, %v2914
        %v3457 = vadd.f32 %v3425, %v2915
        %v3458 = vadd.f32 %v3426, %v2916
        %v3459 = vadd.f32 %v3427, %v2917
        %v3460 = vadd.f32 %v3428, %v2918
        %v3461 = vadd.f32 %v3429, %v2919
        %v3462 = vld [vmem:[%s15] sm:$0xff]
        %v3463 = vld [vmem:[%s15 + $0x8] sm:$0xff]
        %v3464 = vld [vmem:[%s15 + $0x10] sm:$0xff]
        %v3465 = vld [vmem:[%s15 + $0x18] sm:$0xff]
        %v3466 = vld [vmem:[%s15 + $0x20] sm:$0xff]
        %v3467 = vld [vmem:[%s15 + $0x28] sm:$0xff]
        %v3468 = vld [vmem:[%s15 + $0x30] sm:$0xff]
        %v3469 = vld [vmem:[%s15 + $0x38] sm:$0xff]
        %v3470 = vld [vmem:[%s16] sm:$0x1]
        %v3471 = vpack.c.bf16 %v3247, %v3246
        %v3472 = vpack.c.bf16 %v3249, %v3248
        %3473 = vmatpush.bf16.msra.mxu0 0
        %3474 = vmatpush.bf16.msra.mxu0 0
        %3475 = vmatpush.bf16.msra.mxu0 0
        %3476 = vmatpush.bf16.msra.mxu0 0
        %3477 = vmatpush.bf16.msra.mxu0 0
        %3478 = vmatpush.bf16.msra.mxu0 0
        %3479 = vmatpush.bf16.msra.mxu0 %v3472
        %3480 = vmatpush.bf16.msra.mxu0 %v3471
        %3481 = vmatmul.bf16.gmra.mxu0 %v1856
        %v3482 = vpop.f32.mrf.mxu0
        %v3483 = vadd.f32 0.0, %v3482
        %v3484 = vpop.f32.mrf.mxu0
        %v3485 = vadd.f32 0.0, %v3484
        %3486 = vmatmul.bf16.gmra.mxu0 %v1859
        %v3487 = vpop.f32.mrf.mxu0
        %v3488 = vadd.f32 0.0, %v3487
        %v3489 = vpop.f32.mrf.mxu0
        %v3490 = vadd.f32 0.0, %v3489
        %3491 = vdwg.mxu0
        %v3492 = vmul.f32 %v3483, 0.25
        %v3493 = vmul.f32 %v3485, 0.25
        %v3494 = vmul.f32 %v3488, 0.25
        %v3495 = vmul.f32 %v3490, 0.25
        %3496 = vmatpush.bf16.msra.mxu0 0
        %3497 = vmatpush.bf16.msra.mxu0 0
        %3498 = vmatpush.bf16.msra.mxu0 0
        %3499 = vmatpush.bf16.msra.mxu0 0
        %3500 = vmatpush.bf16.msra.mxu0 0
        %3501 = vmatpush.bf16.msra.mxu0 0
        %3502 = vmatpush.bf16.msra.mxu0 %v3472
        %3503 = vmatpush.bf16.msra.mxu0 %v3471
        %3504 = vmatmul.bf16.gmra.mxu0 %v1887
        %v3505 = vpop.f32.mrf.mxu0
        %v3506 = vadd.f32 0.0, %v3505
        %v3507 = vpop.f32.mrf.mxu0
        %v3508 = vadd.f32 0.0, %v3507
        %3509 = vmatmul.bf16.gmra.mxu0 %v1890
        %v3510 = vpop.f32.mrf.mxu0
        %v3511 = vadd.f32 0.0, %v3510
        %v3512 = vpop.f32.mrf.mxu0
        %v3513 = vadd.f32 0.0, %v3512
        %3514 = vdwg.mxu0
        %v3515 = vmul.f32 %v3506, 0.25
        %v3516 = vmul.f32 %v3508, 0.25
        %v3517 = vmul.f32 %v3511, 0.25
        %v3518 = vmul.f32 %v3513, 0.25
        %v3519 = vpack.c.bf16 %v3431, %v3430
        %v3520 = vpack.c.bf16 %v3433, %v3432
        %v3521 = vpack.c.bf16 %v3435, %v3434
        %v3522 = vpack.c.bf16 %v3437, %v3436
        %v3523 = vpack.c.bf16 %v3439, %v3438
        %v3524 = vpack.c.bf16 %v3441, %v3440
        %v3525 = vpack.c.bf16 %v3443, %v3442
        %v3526 = vpack.c.bf16 %v3445, %v3444
        %v3527 = vpack.c.bf16 %v3447, %v3446
        %v3528 = vpack.c.bf16 %v3449, %v3448
        %v3529 = vpack.c.bf16 %v3451, %v3450
        %v3530 = vpack.c.bf16 %v3453, %v3452
        %v3531 = vpack.c.bf16 %v3455, %v3454
        %v3532 = vpack.c.bf16 %v3457, %v3456
        %v3533 = vpack.c.bf16 %v3459, %v3458
        %v3534 = vpack.c.bf16 %v3461, %v3460
        %3535 = vmatpush.bf16.msra.mxu0 %v3526
        %3536 = vmatpush.bf16.msra.mxu0 %v3525
        %3537 = vmatpush.bf16.msra.mxu0 %v3524
        %3538 = vmatpush.bf16.msra.mxu0 %v3523
        %3539 = vmatpush.bf16.msra.mxu0 %v3522
        %3540 = vmatpush.bf16.msra.mxu0 %v3521
        %3541 = vmatpush.bf16.msra.mxu0 %v3520
        %3542 = vmatpush.bf16.msra.mxu0 %v3519
        %3543 = vmatmul.bf16.gmra.mxu0 %v1915
        %v3544 = vpop.f32.mrf.mxu0
        %v3545 = vadd.f32 0.0, %v3544
        %v3546 = vpop.f32.mrf.mxu0
        %v3547 = vadd.f32 0.0, %v3546
        %3548 = vmatmul.bf16.gmra.mxu0 %v1917
        %v3549 = vpop.f32.mrf.mxu0
        %v3550 = vadd.f32 0.0, %v3549
        %v3551 = vpop.f32.mrf.mxu0
        %v3552 = vadd.f32 0.0, %v3551
        %3553 = vdwg.mxu0
        %3554 = vmatpush.bf16.msra.mxu0 %v3534
        %3555 = vmatpush.bf16.msra.mxu0 %v3533
        %3556 = vmatpush.bf16.msra.mxu0 %v3532
        %3557 = vmatpush.bf16.msra.mxu0 %v3531
        %3558 = vmatpush.bf16.msra.mxu0 %v3530
        %3559 = vmatpush.bf16.msra.mxu0 %v3529
        %3560 = vmatpush.bf16.msra.mxu0 %v3528
        %3561 = vmatpush.bf16.msra.mxu0 %v3527
        %3562 = vmatmul.bf16.gmra.mxu0 %v1916
        %v3563 = vpop.f32.mrf.mxu0
        %v3564 = vadd.f32 %v3545, %v3563
        %v3565 = vpop.f32.mrf.mxu0
        %v3566 = vadd.f32 %v3547, %v3565
        %3567 = vmatmul.bf16.gmra.mxu0 %v1918
        %v3568 = vpop.f32.mrf.mxu0
        %v3569 = vadd.f32 %v3550, %v3568
        %v3570 = vpop.f32.mrf.mxu0
        %v3571 = vadd.f32 %v3552, %v3570
        %3572 = vdwg.mxu0
        %v3573 = vmul.f32 %v3564, 0.25
        %v3574 = vmul.f32 %v3566, 0.25
        %v3575 = vmul.f32 %v3569, 0.25
        %v3576 = vmul.f32 %v3571, 0.25
        %3577 = vmatpush.bf16.msra.mxu0 %v3526
        %3578 = vmatpush.bf16.msra.mxu0 %v3525
        %3579 = vmatpush.bf16.msra.mxu0 %v3524
        %3580 = vmatpush.bf16.msra.mxu0 %v3523
        %3581 = vmatpush.bf16.msra.mxu0 %v3522
        %3582 = vmatpush.bf16.msra.mxu0 %v3521
        %3583 = vmatpush.bf16.msra.mxu0 %v3520
        %3584 = vmatpush.bf16.msra.mxu0 %v3519
        %3585 = vmatmul.bf16.gmra.mxu0 %v1977
        %v3586 = vpop.f32.mrf.mxu0
        %v3587 = vadd.f32 0.0, %v3586
        %v3588 = vpop.f32.mrf.mxu0
        %v3589 = vadd.f32 0.0, %v3588
        %3590 = vmatmul.bf16.gmra.mxu0 %v1979
        %v3591 = vpop.f32.mrf.mxu0
        %v3592 = vadd.f32 0.0, %v3591
        %v3593 = vpop.f32.mrf.mxu0
        %v3594 = vadd.f32 0.0, %v3593
        %3595 = vdwg.mxu0
        %3596 = vmatpush.bf16.msra.mxu0 %v3534
        %3597 = vmatpush.bf16.msra.mxu0 %v3533
        %3598 = vmatpush.bf16.msra.mxu0 %v3532
        %3599 = vmatpush.bf16.msra.mxu0 %v3531
        %3600 = vmatpush.bf16.msra.mxu0 %v3530
        %3601 = vmatpush.bf16.msra.mxu0 %v3529
        %3602 = vmatpush.bf16.msra.mxu0 %v3528
        %3603 = vmatpush.bf16.msra.mxu0 %v3527
        %3604 = vmatmul.bf16.gmra.mxu0 %v1978
        %v3605 = vpop.f32.mrf.mxu0
        %v3606 = vadd.f32 %v3587, %v3605
        %v3607 = vpop.f32.mrf.mxu0
        %v3608 = vadd.f32 %v3589, %v3607
        %3609 = vmatmul.bf16.gmra.mxu0 %v1980
        %v3610 = vpop.f32.mrf.mxu0
        %v3611 = vadd.f32 %v3592, %v3610
        %v3612 = vpop.f32.mrf.mxu0
        %v3613 = vadd.f32 %v3594, %v3612
        %3614 = vdwg.mxu0
        %v3615 = vmul.f32 %v3606, 0.25
        %v3616 = vmul.f32 %v3608, 0.25
        %v3617 = vmul.f32 %v3611, 0.25
        %v3618 = vmul.f32 %v3613, 0.25
        %v3619 = vpack.c.bf16 %v3463, %v3462
        %v3620 = vpack.c.bf16 %v3493, %v3492
        %v3621 = vpack.c.bf16 %v3495, %v3494
        %v3622 = vpack.c.bf16 %v3465, %v3464
        %v3624 = vsel %vm2542, %v3620, 0
        %v3627 = vsel %vm2542, %v3621, 0
        %3629 = vmatpush.bf16.msra.mxu0 0
        %3630 = vmatpush.bf16.msra.mxu0 0
        %3631 = vmatpush.bf16.msra.mxu0 0
        %3632 = vmatpush.bf16.msra.mxu0 0
        %3633 = vmatpush.bf16.msra.mxu0 0
        %3634 = vmatpush.bf16.msra.mxu0 0
        %3635 = vmatpush.bf16.msra.mxu0 0
        %3636 = vmatpush.bf16.msra.mxu0 %v3622
        %3637 = vmatmul.bf16.gmra.mxu0 %v3624
        %v3638 = vpop.f32.mrf.mxu0
        %v3639 = vadd.f32 0.0, %v3638
        %v3640 = vpop.f32.mrf.mxu0
        %v3641 = vadd.f32 0.0, %v3640
        %3642 = vmatmul.bf16.gmra.mxu0 %v3627
        %v3643 = vpop.f32.mrf.mxu0
        %v3644 = vadd.f32 0.0, %v3643
        %v3645 = vpop.f32.mrf.mxu0
        %v3646 = vadd.f32 0.0, %v3645
        %3647 = vdwg.mxu0
        %v3649 = vsel %vm2542, %v3471, 0
        %v3652 = vsel %vm2542, %v3472, 0
        %3654 = vmatpush.bf16.msra.mxu0 0
        %3655 = vmatpush.bf16.msra.mxu0 0
        %3656 = vmatpush.bf16.msra.mxu0 0
        %3657 = vmatpush.bf16.msra.mxu0 0
        %3658 = vmatpush.bf16.msra.mxu0 0
        %3659 = vmatpush.bf16.msra.mxu0 0
        %3660 = vmatpush.bf16.msra.mxu0 0
        %3661 = vmatpush.bf16.msra.mxu0 %v3619
        %3662 = vmatmul.bf16.gmra.mxu0 %v3649
        %v3663 = vpop.f32.mrf.mxu0
        %v3664 = vadd.f32 %v3639, %v3663
        %v3665 = vpop.f32.mrf.mxu0
        %v3666 = vadd.f32 %v3641, %v3665
        %3667 = vmatmul.bf16.gmra.mxu0 %v3652
        %v3668 = vpop.f32.mrf.mxu0
        %v3669 = vadd.f32 %v3644, %v3668
        %v3670 = vpop.f32.mrf.mxu0
        %v3671 = vadd.f32 %v3646, %v3670
        %3672 = vdwg.mxu0
        %v3673 = vpack.c.bf16 %v3516, %v3515
        %v3674 = vpack.c.bf16 %v3518, %v3517
        %v3675 = vpack.c.bf16 %v3467, %v3466
        %v3677 = vsel %vm2542, %v3673, 0
        %v3680 = vsel %vm2542, %v3674, 0
        %3682 = vmatpush.bf16.msra.mxu0 0
        %3683 = vmatpush.bf16.msra.mxu0 0
        %3684 = vmatpush.bf16.msra.mxu0 0
        %3685 = vmatpush.bf16.msra.mxu0 0
        %3686 = vmatpush.bf16.msra.mxu0 0
        %3687 = vmatpush.bf16.msra.mxu0 0
        %3688 = vmatpush.bf16.msra.mxu0 0
        %3689 = vmatpush.bf16.msra.mxu0 %v3675
        %3690 = vmatmul.bf16.gmra.mxu0 %v3677
        %v3691 = vpop.f32.mrf.mxu0
        %v3692 = vadd.f32 0.0, %v3691
        %v3693 = vpop.f32.mrf.mxu0
        %v3694 = vadd.f32 0.0, %v3693
        %3695 = vmatmul.bf16.gmra.mxu0 %v3680
        %v3696 = vpop.f32.mrf.mxu0
        %v3697 = vadd.f32 0.0, %v3696
        %v3698 = vpop.f32.mrf.mxu0
        %v3699 = vadd.f32 0.0, %v3698
        %3700 = vdwg.mxu0
        %v3701 = vadd.f32 %v3664, %v3692
        %v3702 = vadd.f32 %v3666, %v3694
        %v3703 = vadd.f32 %v3669, %v3697
        %v3704 = vadd.f32 %v3671, %v3699
        %v3705 = vpack.c.bf16 %v3574, %v3573
        %v3706 = vpack.c.bf16 %v3576, %v3575
        %v3707 = vpack.c.bf16 %v3468, %v3468
        %v3709 = vsel %vm2027, %v3705, 0
        %v3712 = vsel %vm2027, %v3706, 0
        %v3715 = vsel %vm2034, %v3707, 0
        %3717 = vmatpush.bf16.msra.mxu0 0
        %3718 = vmatpush.bf16.msra.mxu0 0
        %3719 = vmatpush.bf16.msra.mxu0 0
        %3720 = vmatpush.bf16.msra.mxu0 0
        %3721 = vmatpush.bf16.msra.mxu0 0
        %3722 = vmatpush.bf16.msra.mxu0 0
        %3723 = vmatpush.bf16.msra.mxu0 0
        %3724 = vmatpush.bf16.msra.mxu0 %v3715
        %3725 = vmatmul.bf16.gmra.mxu0 %v3709
        %v3726 = vpop.f32.mrf.mxu0
        %v3727 = vadd.f32 0.0, %v3726
        %v3728 = vpop.f32.mrf.mxu0
        %v3729 = vadd.f32 0.0, %v3728
        %3730 = vmatmul.bf16.gmra.mxu0 %v3712
        %v3731 = vpop.f32.mrf.mxu0
        %v3732 = vadd.f32 0.0, %v3731
        %v3733 = vpop.f32.mrf.mxu0
        %v3734 = vadd.f32 0.0, %v3733
        %3735 = vdwg.mxu0
        %v3736 = vadd.f32 %v3701, %v3727
        %v3737 = vadd.f32 %v3702, %v3729
        %v3738 = vadd.f32 %v3703, %v3732
        %v3739 = vadd.f32 %v3704, %v3734
        %v3740 = vpack.c.bf16 %v3616, %v3615
        %v3741 = vpack.c.bf16 %v3618, %v3617
        %v3742 = vpack.c.bf16 %v3469, %v3469
        %v3744 = vsel %vm2027, %v3740, 0
        %v3747 = vsel %vm2027, %v3741, 0
        %v3750 = vsel %vm2034, %v3742, 0
        %3752 = vmatpush.bf16.msra.mxu0 0
        %3753 = vmatpush.bf16.msra.mxu0 0
        %3754 = vmatpush.bf16.msra.mxu0 0
        %3755 = vmatpush.bf16.msra.mxu0 0
        %3756 = vmatpush.bf16.msra.mxu0 0
        %3757 = vmatpush.bf16.msra.mxu0 0
        %3758 = vmatpush.bf16.msra.mxu0 0
        %3759 = vmatpush.bf16.msra.mxu0 %v3750
        %3760 = vmatmul.bf16.gmra.mxu0 %v3744
        %v3761 = vpop.f32.mrf.mxu0
        %v3762 = vadd.f32 0.0, %v3761
        %v3763 = vpop.f32.mrf.mxu0
        %v3764 = vadd.f32 0.0, %v3763
        %3765 = vmatmul.bf16.gmra.mxu0 %v3747
        %v3766 = vpop.f32.mrf.mxu0
        %v3767 = vadd.f32 0.0, %v3766
        %v3768 = vpop.f32.mrf.mxu0
        %v3769 = vadd.f32 0.0, %v3768
        %3770 = vdwg.mxu0
        %v3771 = vadd.f32 %v3736, %v3762
        %v3772 = vadd.f32 %v3737, %v3764
        %v3773 = vadd.f32 %v3738, %v3767
        %v3774 = vadd.f32 %v3739, %v3769
        %v3776 = vperm.slane %v3470, 0
        %v3778 = vadd.f32 %v3771, %v3776
        %v3779 = vadd.f32 %v3772, %v3776
        %v3780 = vadd.f32 %v3773, %v3776
        %v3781 = vadd.f32 %v3774, %v3776
        %v3782 = vtanh.pop %v3778
        %v3783 = vtanh.pop %v3779
        %v3784 = vtanh.pop %v3780
        %v3785 = vtanh.pop %v3781
        %v3786 = vld [vmem:[%s17] sm:$0xff]
        %v3787 = vld [vmem:[%s17 + $0x8] sm:$0xff]
        %v3788 = vpack.c.bf16 %v3783, %v3782
        %v3789 = vpack.c.bf16 %v3785, %v3784
        %v3790 = vpack.c.bf16 %v3787, %v3786
        %v3791 = vld [vmem:[%s18] sm:$0x1]
        %v3793 = vperm.slane %v3791, 0
        %v3796 = vsel %vm2542, %v3788, 0
        %v3799 = vsel %vm2542, %v3789, 0
        %3801 = vmatpush.bf16.msra.mxu0 0
        %3802 = vmatpush.bf16.msra.mxu0 0
        %3803 = vmatpush.bf16.msra.mxu0 0
        %3804 = vmatpush.bf16.msra.mxu0 0
        %3805 = vmatpush.bf16.msra.mxu0 0
        %3806 = vmatpush.bf16.msra.mxu0 0
        %3807 = vmatpush.bf16.msra.mxu0 0
        %3808 = vmatpush.bf16.msra.mxu0 %v3790
        %3809 = vmatmul.bf16.gmra.mxu0 %v3796
        %v3810 = vpop.f32.mrf.mxu0
        %v3811 = vadd.f32 %v3793, %v3810
        %v3812 = vpop.f32.mrf.mxu0
        %v3813 = vadd.f32 %v3793, %v3812
        %3814 = vmatmul.bf16.gmra.mxu0 %v3799
        %v3815 = vpop.f32.mrf.mxu0
        %v3816 = vadd.f32 %v3793, %v3815
        %v3817 = vpop.f32.mrf.mxu0
        %v3818 = vadd.f32 %v3793, %v3817
        %3819 = vdwg.mxu0
        %v3820 = vmul.f32 %v3811, %v915
        %v3821 = vmul.f32 %v3813, %v916
        %v3822 = vmul.f32 %v3816, %v917
        %v3823 = vmul.f32 %v3818, %v918
        %v3824 = vld [vmem:[%s19] sm:$0xff]
        %v3825 = vld [vmem:[%s19 + $0x8] sm:$0xff]
        %v3826 = vpack.c.bf16 %v3825, %v3824
        %v3827 = vld [vmem:[%s20] sm:$0x1]
        %v3829 = vperm.slane %v3827, 0
        %3831 = vmatpush.bf16.msra.mxu0 0
        %3832 = vmatpush.bf16.msra.mxu0 0
        %3833 = vmatpush.bf16.msra.mxu0 0
        %3834 = vmatpush.bf16.msra.mxu0 0
        %3835 = vmatpush.bf16.msra.mxu0 0
        %3836 = vmatpush.bf16.msra.mxu0 0
        %3837 = vmatpush.bf16.msra.mxu0 0
        %3838 = vmatpush.bf16.msra.mxu0 %v3826
        %3839 = vmatmul.bf16.gmra.mxu0 %v3796
        %v3840 = vpop.f32.mrf.mxu0
        %v3841 = vadd.f32 %v3829, %v3840
        %v3842 = vpop.f32.mrf.mxu0
        %v3843 = vadd.f32 %v3829, %v3842
        %3844 = vmatmul.bf16.gmra.mxu0 %v3799
        %v3845 = vpop.f32.mrf.mxu0
        %v3846 = vadd.f32 %v3829, %v3845
        %v3847 = vpop.f32.mrf.mxu0
        %v3848 = vadd.f32 %v3829, %v3847
        %3849 = vdwg.mxu0
        %v3850 = vmul.f32 %v3841, %v915
        %v3851 = vmul.f32 %v3843, %v916
        %v3852 = vmul.f32 %v3846, %v917
        %v3853 = vmul.f32 %v3848, %v918
        %vm3854 = vcmask 125952
        %3855 = vst.msk [vmem:[%s710] sm:$0xf] %vm3854, %v3820
        %3856 = vst.msk [vmem:[%s710 + $0x4] sm:$0xf] %vm3854, %v3821
        %3857 = vst.msk [vmem:[%s710 + $0x8] sm:$0xf] %vm3854, %v3822
        %3858 = vst.msk [vmem:[%s710 + $0xc] sm:$0xf] %vm3854, %v3823
        %vm3859 = vcmask 130052
        %3860 = vst.msk [vmem:[%s716 - $0x4] sm:$0xf0] %vm3859, %v3850
        %3861 = vst.msk [vmem:[%s716] sm:$0xf0] %vm3859, %v3851
        %3862 = vst.msk [vmem:[%s716 + $0x4] sm:$0xf0] %vm3859, %v3852
        %3863 = vst.msk [vmem:[%s716 + $0x8] sm:$0xf0] %vm3859, %v3853
        %s3864 = smul.u32 4, %s35
        %p3865 = scmp.lt.s32.totalorder %s3864, 7
        %s3866 = scalar_select %p3865, %s3864, 7
        %s3867 = smul.addr %s3866, 4
        %s3868 = scalar_lea.vmem %s21, %s3867
        %s3869 = smul.u32 4, %s35
        %p3870 = scmp.lt.s32.totalorder %s3869, 7
        %s3871 = scalar_select %p3870, %s3869, 7
        %s3872 = smul.addr %s3871, 4
        %s3873 = scalar_lea.vmem %s22, %s3872
        // Predicated region
        $region109: #{ansatz_fb_forward.1} parent=103 // pred_check
          %p3874 = pneg %p499
        $region110: #{ansatz_fb_forward.1} parent=103 // pred_check_branch
          %3876 = sbr.rel (%p3874) target = $region112
        $region111: #{ansatz_fb_forward.1} parent=103 // pred_region
          %s3877 = smul.u32 4, %s35
        $region112: #{ansatz_fb_forward.1} parent=103 // pred_fallthru
          _
        // Predicated region
        $region113: #{ansatz_fb_forward.1} parent=103 // pred_check
          %p3878 = pneg %p525
        $region114: #{ansatz_fb_forward.1} parent=103 // pred_check_branch
          %3880 = sbr.rel (%p3878) target = $region116
        $region115: #{ansatz_fb_forward.1} parent=103 // pred_region
          %s3881 = smul.u32 4, %s35
        $region116: #{ansatz_fb_forward.1} parent=103 // pred_fallthru
          _
      $region104: #{ansatz_fb_forward.1} parent=5 // pred_fallthru
        _
      %p3882 = scmp.le.s32.totalorder 2, %s30
      // Predicated region
      $region117: #{ansatz_fb_forward.1} parent=5 // pred_check
        %p3883 = pneg %p3882
      $region118: #{ansatz_fb_forward.1} parent=5 // pred_check_branch
        %3885 = sbr.rel (%p3883) target = $region120
      $region119: #{ansatz_fb_forward.1} parent=5 // pred_region
        %s3886 = ssub.s32 %s30, 2
        // Predicated region
        $region121: #{ansatz_fb_forward.1} parent=119 // pred_check
          %p3887 = pneg %p505
        $region122: #{ansatz_fb_forward.1} parent=119 // pred_check_branch
          %3889 = sbr.rel (%p3887) target = $region124
        $region123: #{ansatz_fb_forward.1} parent=119 // pred_region
          %s3890 = smul.u32 4, %s36
          %p3891 = scmp.lt.s32.totalorder %s3890, 7
          %s3892 = scalar_select %p3891, %s3890, 7
          %s3893 = smul.addr %s3892, 4
          %s3894 = scalar_lea.vmem %s21, %s3893
        $region124: #{ansatz_fb_forward.1} parent=119 // pred_fallthru
          _
        // Predicated region
        $region125: #{ansatz_fb_forward.1} parent=119 // pred_check
          %p3895 = pneg %p531
        $region126: #{ansatz_fb_forward.1} parent=119 // pred_check_branch
          %3897 = sbr.rel (%p3895) target = $region128
        $region127: #{ansatz_fb_forward.1} parent=119 // pred_region
          %s3898 = smul.u32 4, %s36
          %p3899 = scmp.lt.s32.totalorder %s3898, 7
          %s3900 = scalar_select %p3899, %s3898, 7
          %s3901 = smul.addr %s3900, 4
          %s3902 = scalar_lea.vmem %s22, %s3901
        $region128: #{ansatz_fb_forward.1} parent=119 // pred_fallthru
          _
      $region120: #{ansatz_fb_forward.1} parent=5 // pred_fallthru
        _
    $region6: #{ansatz_fb_forward.1} parent=1 // loop_footer
      %s34 = sadd.s32 1, %s30
    $region7: #{ansatz_fb_forward.1} parent=1 // loop_footer_branch
      %29 = sbr.rel target = $region3
    $region8: #{ansatz_fb_forward.1} parent=1 // loop_exit
      _
    %3903 = vsyncpa [#allocation3], 1
    %s3904 = scalar_lea.sflag [#allocation3], 1
    %3905 = vsyncpa %s3904, 1

</llo_original>
